<compile_context>
chip_gen: v7x
topology: tpu7x:2x2x1
jax: 0.10.0
libtpu: 0.0.40
codegen_flags: <defaults>
</compile_context>

<pallas_src>
import math
from functools import partial

import jax
import jax.numpy as jnp
from jax.experimental import pallas as pl
from jax.experimental.pallas import tpu as pltpu

CONFIG = dict(
    vocab_size=100,
    dim=128,                      # hidden size D
    n_layers=2,
    n_heads=2,                    # head_dim = 64
    hidden_dim=256,               # FFN inner size
    max_position_embeddings=32,
)

LN_EPS = 1e-12
MASK_BIAS = -1e30                 # additive key-mask bias (finite -> no -inf edge cases)
HEAD_PAD = 128                    # lane-dense padding for the 2-class classifier heads

_WEIGHT_KEYS = (
    "emb_ln_g", "emb_ln_b",
    "qkv_w", "qkv_b", "o_w", "o_b", "sa_ln_g", "sa_ln_b",
    "ff1_w", "ff1_b", "ff2_w", "ff2_b", "out_ln_g", "out_ln_b",
    "pre_w", "pre_b", "intent_w", "intent_b", "kw_w", "kw_b",
)


# ----------------------------------------------------------------------------
# In-kernel math helpers (pure jnp, traced inside the Pallas kernel)
# ----------------------------------------------------------------------------
def _erf_poly(x):
    # Abramowitz & Stegun 7.1.26 erf (max abs err ~1.5e-7): matches exact-erf GELU
    # to float32 precision for inference. (Kept: proven to lower cleanly on Mosaic.)
    a1, a2, a3, a4, a5 = 0.254829592, -0.284496736, 1.421413741, -1.453152027, 1.061405429
    p = 0.3275911
    sgn = jnp.where(x >= 0.0, 1.0, -1.0)
    ax = jnp.abs(x)
    t = 1.0 / (1.0 + p * ax)
    poly = ((((a5 * t + a4) * t + a3) * t + a2) * t + a1) * t
    return sgn * (1.0 - poly * jnp.exp(-ax * ax))


def _gelu(h):
    return 0.5 * h * (1.0 + _erf_poly(h * (1.0 / math.sqrt(2.0))))


def _layernorm(x, g, b):
    mu = jnp.mean(x, axis=-1, keepdims=True)
    var = jnp.mean((x - mu) ** 2, axis=-1, keepdims=True)
    return (x - mu) * jax.lax.rsqrt(var + LN_EPS) * g + b


# ----------------------------------------------------------------------------
# Fused whole-forward kernel (one grid step per batch element)
# ----------------------------------------------------------------------------
def _fused_forward_kernel(
    # per-batch inputs
    emb_ref, pos_ref, mask_ref,
    # embedding LN
    emb_ln_g_ref, emb_ln_b_ref,
    # stacked per-layer weights (leading axis = layer)
    qkv_w_ref, qkv_b_ref, o_w_ref, o_b_ref, sa_ln_g_ref, sa_ln_b_ref,
    ff1_w_ref, ff1_b_ref, ff2_w_ref, ff2_b_ref, out_ln_g_ref, out_ln_b_ref,
    # classifier heads (padded lane-dense)
    pre_w_ref, pre_b_ref, intent_w_ref, intent_b_ref, kw_w_ref, kw_b_ref,
    # outputs
    intent_out_ref, token_out_ref,
    *, n_layers, n_heads,
):
    f32 = jnp.float32

    # Embeddings: word + position, LayerNorm (dropout = identity in eval).
    x = _layernorm(emb_ref[0] + pos_ref[...], emb_ln_g_ref[...], emb_ln_b_ref[...])  # (S, D)
    S, D = x.shape
    Dh = D // n_heads
    key_bias = mask_ref[0]                                    # (1, S) additive bias over keys

    # Per-head lane masks: heads are contiguous on the lane axis (D = H * Dh).
    # Masking the other heads' lanes keeps every matmul full 128-lane wide and
    # aligned; the masked contractions equal the per-head slices exactly.
    lane = jax.lax.broadcasted_iota(jnp.int32, (1, D), 1)
    head_masks = [
        jnp.logical_and(lane >= h * Dh, lane < (h + 1) * Dh).astype(f32)
        for h in range(n_heads)
    ]

    def matmul(a, w, b):
        return jnp.dot(a, w, preferred_element_type=f32) + b

    for l in range(n_layers):
        # Fused QKV: one (S, D) x (D, 3D) matmul.  1/sqrt(Dh) is already folded
        # into the Q weights/bias (prepare_params).
        qkv = matmul(x, qkv_w_ref[l], qkv_b_ref[l])           # (S, 3D)
        q = qkv[:, 0 * D:1 * D]                               # 128-aligned static slices
        k = qkv[:, 1 * D:2 * D]
        v = qkv[:, 2 * D:3 * D]

        ctx = jnp.zeros_like(x)                               # (S, D)
        for m_h in head_masks:
            scores = jax.lax.dot_general(                     # (S, S)
                q * m_h, k, (((1,), (1,)), ((), ())),
                preferred_element_type=f32) + key_bias
            mx = jnp.max(scores, axis=-1, keepdims=True)
            e = jnp.exp(scores - mx)
            p = e * pl.reciprocal(jnp.sum(e, axis=-1, keepdims=True), approx=True)
            # (v * m_h) is zero outside this head's lanes, so the sum over heads
            # assembles the merged context with no concatenation / transposes.
            ctx = ctx + jnp.dot(p, v * m_h, preferred_element_type=f32)

        attn_out = matmul(ctx, o_w_ref[l], o_b_ref[l])
        sa = _layernorm(attn_out + x, sa_ln_g_ref[l], sa_ln_b_ref[l])     # residual folded in

        h1 = _gelu(matmul(sa, ff1_w_ref[l], ff1_b_ref[l]))
        ff = matmul(h1, ff2_w_ref[l], ff2_b_ref[l])
        x = _layernorm(ff + sa, out_ln_g_ref[l], out_ln_b_ref[l])         # residual folded in

    # Classifier heads (padded to 128 lanes -> unmasked lane-dense stores).
    cls = x[0:1, :]                                           # (1, D)
    pre = matmul(cls, pre_w_ref[...], pre_b_ref[...])         # dropout = identity in eval
    intent_out_ref[0] = matmul(pre, intent_w_ref[...], intent_b_ref[...])   # (1, HEAD_PAD)
    token_out_ref[0] = matmul(x, kw_w_ref[...], kw_b_ref[...])              # (S, HEAD_PAD)


# ----------------------------------------------------------------------------
# pallas_call wrapper
# ----------------------------------------------------------------------------
def _full_spec(arr):
    nd = arr.ndim
    return pl.BlockSpec(arr.shape, lambda b, _nd=nd: (0,) * _nd)


def _fused_forward(emb, pos, mask_bias, fp, *, n_layers, n_heads):
    B, S, D = emb.shape
    weights = [fp[k] for k in _WEIGHT_KEYS]
    kernel = partial(_fused_forward_kernel, n_layers=n_layers, n_heads=n_heads)

    in_specs = [
        pl.BlockSpec((1, S, D), lambda b: (b, 0, 0)),     # gathered word embeddings
        _full_spec(pos),                                   # positional embeddings
        pl.BlockSpec((1, 1, S), lambda b: (b, 0, 0)),     # additive key-mask bias
    ] + [_full_spec(w) for w in weights]                   # all weights: full resident blocks

    out_specs = (
        pl.BlockSpec((1, 1, HEAD_PAD), lambda b: (b, 0, 0)),
        pl.BlockSpec((1, S, HEAD_PAD), lambda b: (b, 0, 0)),
    )
    out_shape = (
        jax.ShapeDtypeStruct((B, 1, HEAD_PAD), jnp.float32),
        jax.ShapeDtypeStruct((B, S, HEAD_PAD), jnp.float32),
    )
    return pl.pallas_call(
        kernel,
        out_shape=out_shape,
        grid=(B,),
        in_specs=in_specs,
        out_specs=out_specs,
        compiler_params=pltpu.CompilerParams(
            dimension_semantics=("parallel",)),            # batch axis -> 2 TCs on v7x
    )(emb, pos, mask_bias, *weights)


@jax.jit
def hybrid_classifier_forward(prepared, query_ids, query_mask):
    B, S = query_ids.shape
    # Embedding gather is data-dependent glue; everything else runs in the fused kernel.
    emb = prepared["word_emb"][query_ids]                                   # (B, S, D)
    pos = prepared["pos_emb"][:S]                                           # (S, D)
    mask_bias = ((1.0 - query_mask.astype(jnp.float32)) * MASK_BIAS).reshape(B, 1, S)

    intent_pad, token_pad = _fused_forward(
        emb, pos, mask_bias, prepared,
        n_layers=prepared["qkv_w"].shape[0], n_heads=CONFIG["n_heads"])

    return {"intent_logits": intent_pad[:, 0, :2],                          # (B, 2)
            "token_logits": token_pad[:, :, :2]}                            # (B, S, 2)


# ----------------------------------------------------------------------------
# One-time (outside jit) parameter repacking
# ----------------------------------------------------------------------------
def prepare_params(params, cfg, head_pad=HEAD_PAD):
    """Transpose torch-layout weights, fuse QKV (with 1/sqrt(Dh) folded into Q),
    stack per-layer weights, pad the 2-class heads to a lane-dense width.
    NOTE: for v6e/v7x, casting the matmul weights here to bfloat16 (keeping f32
    accumulation + f32 LayerNorm) is a further speedup; kept f32 for exact eval
    numerics vs. the PyTorch reference."""
    D = cfg["dim"]
    Dh = D // cfg["n_heads"]
    scale = 1.0 / math.sqrt(Dh)

    def t(w):                        # torch (out, in) -> (in, out)
        return jnp.asarray(w).T

    def row(b):                      # (N,) -> (1, N)
        return jnp.asarray(b)[None, :]

    layers = params["layers"]
    prepared = dict(
        word_emb=params["word_emb"],
        pos_emb=params["pos_emb"],
        emb_ln_g=row(params["emb_ln_g"]),
        emb_ln_b=row(params["emb_ln_b"]),
        qkv_w=jnp.stack([jnp.concatenate(
            [t(p["q_w"]) * scale, t(p["k_w"]), t(p["v_w"])], axis=1) for p in layers]),
        qkv_b=jnp.stack([jnp.concatenate(
            [p["q_b"] * scale, p["k_b"], p["v_b"]])[None, :] for p in layers]),
        o_w=jnp.stack([t(p["o_w"]) for p in layers]),
        o_b=jnp.stack([row(p["o_b"]) for p in layers]),
        sa_ln_g=jnp.stack([row(p["sa_ln_g"]) for p in layers]),
        sa_ln_b=jnp.stack([row(p["sa_ln_b"]) for p in layers]),
        ff1_w=jnp.stack([t(p["ff1_w"]) for p in layers]),
        ff1_b=jnp.stack([row(p["ff1_b"]) for p in layers]),
        ff2_w=jnp.stack([t(p["ff2_w"]) for p in layers]),
        ff2_b=jnp.stack([row(p["ff2_b"]) for p in layers]),
        out_ln_g=jnp.stack([row(p["out_ln_g"]) for p in layers]),
        out_ln_b=jnp.stack([row(p["out_ln_b"]) for p in layers]),
        pre_w=t(params["pre_w"]),
        pre_b=row(params["pre_b"]),
    )

    def pad_head(w, b):              # torch (2, D) -> (D, head_pad), (1, head_pad)
        wt = t(w)
        n = wt.shape[1]
        wp = jnp.zeros((D, head_pad), jnp.float32).at[:, :n].set(wt)
        bp = jnp.zeros((1, head_pad), jnp.float32).at[0, :n].set(jnp.asarray(b))
        return wp, bp

    prepared["intent_w"], prepared["intent_b"] = pad_head(params["intent_w"], params["intent_b"])
    prepared["kw_w"], prepared["kw_b"] = pad_head(params["kw_w"], params["kw_b"])
    return prepared


# ----------------------------------------------------------------------------
# Deterministic parameter initialization (BERT-style N(0, 0.02), zero biases)
# ----------------------------------------------------------------------------
def init_params(key, cfg):
    D, FF = cfg["dim"], cfg["hidden_dim"]
    V, P = cfg["vocab_size"], cfg["max_position_embeddings"]
    keys = iter(jax.random.split(key, 64))

    def w(shape):
        return 0.02 * jax.random.normal(next(keys), shape, jnp.float32)

    def zeros(n):
        return jnp.zeros((n,), jnp.float32)

    params = {
        "word_emb": w((V, D)),
        "pos_emb": w((P, D)),
        "emb_ln_g": jnp.ones((D,), jnp.float32),
        "emb_ln_b": zeros(D),
        "layers": [],
        "pre_w": w((D, D)), "pre_b": zeros(D),          # pre_classifier
        "intent_w": w((2, D)), "intent_b": zeros(2),    # intent_classifier
        "kw_w": w((2, D)), "kw_b": zeros(2),            # keyword_classifier
    }
    for _ in range(cfg["n_layers"]):
        params["layers"].append({
            "q_w": w((D, D)), "q_b": zeros(D),
            "k_w": w((D, D)), "k_b": zeros(D),
            "v_w": w((D, D)), "v_b": zeros(D),
            "o_w": w((D, D)), "o_b": zeros(D),
            "sa_ln_g": jnp.ones((D,), jnp.float32), "sa_ln_b": zeros(D),
            "ff1_w": w((FF, D)), "ff1_b": zeros(FF),
            "ff2_w": w((D, FF)), "ff2_b": zeros(D),
            "out_ln_g": jnp.ones((D,), jnp.float32), "out_ln_b": zeros(D),
        })
    return params


# ----------------------------------------------------------------------------
# Pure-JAX reference (independent of the prepared/packed params)
# ----------------------------------------------------------------------------
def _reference_forward(params, query_ids, query_mask, cfg):
    HI = jax.lax.Precision.HIGHEST
    D, H = cfg["dim"], cfg["n_heads"]
    Dh = D // H
    B, S = query_ids.shape

    def lin(x, w, b):
        return jnp.dot(x, w.T, precision=HI) + b

    def ln(x, g, b):
        mu = jnp.mean(x, -1, keepdims=True)
        var = jnp.mean((x - mu) ** 2, -1, keepdims=True)
        return (x - mu) / jnp.sqrt(var + LN_EPS) * g + b

    x = ln(params["word_emb"][query_ids] + params["pos_emb"][:S][None],
           params["emb_ln_g"], params["emb_ln_b"])
    mask = query_mask.astype(jnp.float32)[:, None, None, :]       # (B,1,1,S) over keys
    for p in params["layers"]:
        def split(t):
            return t.reshape(B, S, H, Dh).transpose(0, 2, 1, 3)
        q = split(lin(x, p["q_w"], p["q_b"])) / math.sqrt(Dh)
        k = split(lin(x, p["k_w"], p["k_b"]))
        v = split(lin(x, p["v_w"], p["v_b"]))
        scores = jnp.einsum("bhqd,bhkd->bhqk", q, k, precision=HI)
        scores = jnp.where(mask == 0.0, jnp.finfo(jnp.float32).min, scores)
        attn = jax.nn.softmax(scores, axis=-1)
        ctx = jnp.einsum("bhqk,bhkd->bhqd", attn, v, precision=HI)
        ctx = ctx.transpose(0, 2, 1, 3).reshape(B, S, D)
        sa = ln(lin(ctx, p["o_w"], p["o_b"]) + x, p["sa_ln_g"], p["sa_ln_b"])
        h1 = lin(sa, p["ff1_w"], p["ff1_b"])
        h1 = 0.5 * h1 * (1.0 + jax.lax.erf(h1 / math.sqrt(2.0)))
        x = ln(lin(h1, p["ff2_w"], p["ff2_b"]) + sa, p["out_ln_g"], p["out_ln_b"])
    cls = x[:, 0, :]
    pre = lin(cls, params["pre_w"], params["pre_b"])
    return {"intent_logits": lin(pre, params["intent_w"], params["intent_b"]),
            "token_logits": lin(x, params["kw_w"], params["kw_b"])}


if __name__ == "__main__":
    key = jax.random.PRNGKey(0)
    pkey, ikey = jax.random.split(key)
    params = init_params(pkey, CONFIG)
    prepared = prepare_params(params, CONFIG)        # one-time repack, outside jit

    B, S = 2, 8
    query_ids = jax.random.randint(ikey, (B, S), 0, CONFIG["vocab_size"], dtype=jnp.int32)
    # second sequence has 3 padding tokens at the end
    query_mask = jnp.array([[1, 1, 1, 1, 1, 1, 1, 1],
                            [1, 1, 1, 1, 1, 0, 0, 0]], dtype=jnp.int32)

    out = hybrid_classifier_forward(prepared, query_ids, query_mask)
    out = jax.block_until_ready(out)

    assert out["intent_logits"].shape == (B, 2)
    assert out["token_logits"].shape == (B, S, 2)
    assert jnp.all(jnp.isfinite(out["intent_logits"]))
    assert jnp.all(jnp.isfinite(out["token_logits"]))

    # Correctness check against a pure-JAX reference (tolerances cover the erf
    # polynomial, approximate-reciprocal softmax and matmul precision deltas).
    ref = _reference_forward(params, query_ids, query_mask, CONFIG)
    assert jnp.allclose(out["intent_logits"], ref["intent_logits"], rtol=5e-2, atol=5e-3)
    assert jnp.allclose(out["token_logits"], ref["token_logits"], rtol=5e-2, atol=5e-3)

    print("KERNEL_OK")
</pallas_src>

<mosaic_0001>
module attributes {stable_mosaic.version = 11 : i64} {
  func.func @_fused_forward_kernel(%arg0: i32, %arg1: memref<1x8x128xf32, #tpu.memory_space<vmem>>, %arg2: memref<8x128xf32, #tpu.memory_space<vmem>>, %arg3: memref<1x1x8xf32, #tpu.memory_space<vmem>>, %arg4: memref<1x128xf32, #tpu.memory_space<vmem>>, %arg5: memref<1x128xf32, #tpu.memory_space<vmem>>, %arg6: memref<2x128x384xf32, #tpu.memory_space<vmem>>, %arg7: memref<2x1x384xf32, #tpu.memory_space<vmem>>, %arg8: memref<2x128x128xf32, #tpu.memory_space<vmem>>, %arg9: memref<2x1x128xf32, #tpu.memory_space<vmem>>, %arg10: memref<2x1x128xf32, #tpu.memory_space<vmem>>, %arg11: memref<2x1x128xf32, #tpu.memory_space<vmem>>, %arg12: memref<2x128x256xf32, #tpu.memory_space<vmem>>, %arg13: memref<2x1x256xf32, #tpu.memory_space<vmem>>, %arg14: memref<2x256x128xf32, #tpu.memory_space<vmem>>, %arg15: memref<2x1x128xf32, #tpu.memory_space<vmem>>, %arg16: memref<2x1x128xf32, #tpu.memory_space<vmem>>, %arg17: memref<2x1x128xf32, #tpu.memory_space<vmem>>, %arg18: memref<128x128xf32, #tpu.memory_space<vmem>>, %arg19: memref<1x128xf32, #tpu.memory_space<vmem>>, %arg20: memref<128x128xf32, #tpu.memory_space<vmem>>, %arg21: memref<1x128xf32, #tpu.memory_space<vmem>>, %arg22: memref<128x128xf32, #tpu.memory_space<vmem>>, %arg23: memref<1x128xf32, #tpu.memory_space<vmem>>, %arg24: memref<1x1x128xf32, #tpu.memory_space<vmem>>, %arg25: memref<1x8x128xf32, #tpu.memory_space<vmem>>) attributes {dimension_semantics = [#tpu.dimension_semantics<parallel>], iteration_bounds = array<i64: 2>, scalar_prefetch = 0 : i64, scratch_operands = 0 : i64, tpu.core_type = #tpu.core_type<tc>, window_params = [{transform_indices = @transform_0, window_bounds = array<i64: 1, 8, 128>}, {pipeline_mode = #tpu.pipeline_mode<synchronous>, transform_indices = @transform_1, window_bounds = array<i64: 8, 128>}, {transform_indices = @transform_2, window_bounds = array<i64: 1, 1, 8>}, {pipeline_mode = #tpu.pipeline_mode<synchronous>, transform_indices = @transform_3, window_bounds = array<i64: 1, 128>}, {pipeline_mode = #tpu.pipeline_mode<synchronous>, transform_indices = @transform_4, window_bounds = array<i64: 1, 128>}, {pipeline_mode = #tpu.pipeline_mode<synchronous>, transform_indices = @transform_5, window_bounds = array<i64: 2, 128, 384>}, {pipeline_mode = #tpu.pipeline_mode<synchronous>, transform_indices = @transform_6, window_bounds = array<i64: 2, 1, 384>}, {pipeline_mode = #tpu.pipeline_mode<synchronous>, transform_indices = @transform_7, window_bounds = array<i64: 2, 128, 128>}, {pipeline_mode = #tpu.pipeline_mode<synchronous>, transform_indices = @transform_8, window_bounds = array<i64: 2, 1, 128>}, {pipeline_mode = #tpu.pipeline_mode<synchronous>, transform_indices = @transform_9, window_bounds = array<i64: 2, 1, 128>}, {pipeline_mode = #tpu.pipeline_mode<synchronous>, transform_indices = @transform_10, window_bounds = array<i64: 2, 1, 128>}, {pipeline_mode = #tpu.pipeline_mode<synchronous>, transform_indices = @transform_11, window_bounds = array<i64: 2, 128, 256>}, {pipeline_mode = #tpu.pipeline_mode<synchronous>, transform_indices = @transform_12, window_bounds = array<i64: 2, 1, 256>}, {pipeline_mode = #tpu.pipeline_mode<synchronous>, transform_indices = @transform_13, window_bounds = array<i64: 2, 256, 128>}, {pipeline_mode = #tpu.pipeline_mode<synchronous>, transform_indices = @transform_14, window_bounds = array<i64: 2, 1, 128>}, {pipeline_mode = #tpu.pipeline_mode<synchronous>, transform_indices = @transform_15, window_bounds = array<i64: 2, 1, 128>}, {pipeline_mode = #tpu.pipeline_mode<synchronous>, transform_indices = @transform_16, window_bounds = array<i64: 2, 1, 128>}, {pipeline_mode = #tpu.pipeline_mode<synchronous>, transform_indices = @transform_17, window_bounds = array<i64: 128, 128>}, {pipeline_mode = #tpu.pipeline_mode<synchronous>, transform_indices = @transform_18, window_bounds = array<i64: 1, 128>}, {pipeline_mode = #tpu.pipeline_mode<synchronous>, transform_indices = @transform_19, window_bounds = array<i64: 128, 128>}, {pipeline_mode = #tpu.pipeline_mode<synchronous>, transform_indices = @transform_20, window_bounds = array<i64: 1, 128>}, {pipeline_mode = #tpu.pipeline_mode<synchronous>, transform_indices = @transform_21, window_bounds = array<i64: 128, 128>}, {pipeline_mode = #tpu.pipeline_mode<synchronous>, transform_indices = @transform_22, window_bounds = array<i64: 1, 128>}, {transform_indices = @transform_23, window_bounds = array<i64: 1, 1, 128>}, {transform_indices = @transform_24, window_bounds = array<i64: 1, 8, 128>}]} {
    %c0 = arith.constant 0 : index
    %c0_0 = arith.constant 0 : index
    %c0_1 = arith.constant 0 : index
    %0 = vector.load %arg1[%c0, %c0_0, %c0_1] : memref<1x8x128xf32, #tpu.memory_space<vmem>>, vector<1x8x128xf32>
    %1 = vector.shape_cast %0 : vector<1x8x128xf32> to vector<8x128xf32>
    %c0_2 = arith.constant 0 : index
    %c0_3 = arith.constant 0 : index
    %2 = vector.load %arg2[%c0_2, %c0_3] : memref<8x128xf32, #tpu.memory_space<vmem>>, vector<8x128xf32>
    %3 = arith.addf %1, %2 : vector<8x128xf32>
    %c0_4 = arith.constant 0 : index
    %c0_5 = arith.constant 0 : index
    %4 = vector.load %arg4[%c0_4, %c0_5] : memref<1x128xf32, #tpu.memory_space<vmem>>, vector<1x128xf32>
    %c0_6 = arith.constant 0 : index
    %c0_7 = arith.constant 0 : index
    %5 = vector.load %arg5[%c0_6, %c0_7] : memref<1x128xf32, #tpu.memory_space<vmem>>, vector<1x128xf32>
    %cst = arith.constant dense<0.000000e+00> : vector<8xf32>
    %6 = vector.multi_reduction <add>, %3, %cst [1] : vector<8x128xf32> to vector<8xf32>
    %7 = vector.shape_cast %6 : vector<8xf32> to vector<8x1xf32>
    %cst_8 = arith.constant 1.280000e+02 : f32
    %8 = vector.broadcast %cst_8 : f32 to vector<8x1xf32>
    %9 = arith.divf %7, %8 : vector<8x1xf32>
    %10 = vector.broadcast %9 : vector<8x1xf32> to vector<8x128xf32>
    %11 = arith.subf %3, %10 : vector<8x128xf32>
    %12 = arith.mulf %11, %11 : vector<8x128xf32>
    %cst_9 = arith.constant dense<0.000000e+00> : vector<8xf32>
    %13 = vector.multi_reduction <add>, %12, %cst_9 [1] : vector<8x128xf32> to vector<8xf32>
    %14 = vector.shape_cast %13 : vector<8xf32> to vector<8x1xf32>
    %cst_10 = arith.constant 1.280000e+02 : f32
    %15 = vector.broadcast %cst_10 : f32 to vector<8x1xf32>
    %16 = arith.divf %14, %15 : vector<8x1xf32>
    %17 = vector.broadcast %9 : vector<8x1xf32> to vector<8x128xf32>
    %18 = arith.subf %3, %17 : vector<8x128xf32>
    %cst_11 = arith.constant 9.99999996E-13 : f32
    %19 = vector.broadcast %cst_11 : f32 to vector<8x1xf32>
    %20 = arith.addf %16, %19 : vector<8x1xf32>
    %21 = math.rsqrt %20 : vector<8x1xf32>
    %22 = vector.broadcast %21 : vector<8x1xf32> to vector<8x128xf32>
    %23 = arith.mulf %18, %22 : vector<8x128xf32>
    %24 = vector.broadcast %4 : vector<1x128xf32> to vector<8x128xf32>
    %25 = arith.mulf %23, %24 : vector<8x128xf32>
    %26 = vector.broadcast %5 : vector<1x128xf32> to vector<8x128xf32>
    %27 = arith.addf %25, %26 : vector<8x128xf32>
    %c0_12 = arith.constant 0 : index
    %c0_13 = arith.constant 0 : index
    %c0_14 = arith.constant 0 : index
    %28 = vector.load %arg3[%c0_12, %c0_13, %c0_14] : memref<1x1x8xf32, #tpu.memory_space<vmem>>, vector<1x1x8xf32>
    %29 = vector.shape_cast %28 : vector<1x1x8xf32> to vector<1x8xf32>
    %30 = tpu.iota {dimensions = array<i32: 1>} : vector<1x128xi32>
    %c0_i32 = arith.constant 0 : i32
    %31 = vector.broadcast %c0_i32 : i32 to vector<1x128xi32>
    %32 = arith.cmpi sge, %30, %31 : vector<1x128xi32>
    %c64_i32 = arith.constant 64 : i32
    %33 = vector.broadcast %c64_i32 : i32 to vector<1x128xi32>
    %34 = arith.cmpi slt, %30, %33 : vector<1x128xi32>
    %35 = arith.andi %32, %34 : vector<1x128xi1>
    %36 = arith.extui %35 : vector<1x128xi1> to vector<1x128xi32>
    %37 = arith.sitofp %36 : vector<1x128xi32> to vector<1x128xf32>
    %c64_i32_15 = arith.constant 64 : i32
    %38 = vector.broadcast %c64_i32_15 : i32 to vector<1x128xi32>
    %39 = arith.cmpi sge, %30, %38 : vector<1x128xi32>
    %c128_i32 = arith.constant 128 : i32
    %40 = vector.broadcast %c128_i32 : i32 to vector<1x128xi32>
    %41 = arith.cmpi slt, %30, %40 : vector<1x128xi32>
    %42 = arith.andi %39, %41 : vector<1x128xi1>
    %43 = arith.extui %42 : vector<1x128xi1> to vector<1x128xi32>
    %44 = arith.sitofp %43 : vector<1x128xi32> to vector<1x128xf32>
    %c0_16 = arith.constant 0 : index
    %c0_17 = arith.constant 0 : index
    %c0_18 = arith.constant 0 : index
    %45 = vector.load %arg6[%c0_16, %c0_17, %c0_18] : memref<2x128x384xf32, #tpu.memory_space<vmem>>, vector<1x128x384xf32>
    %46 = vector.shape_cast %45 : vector<1x128x384xf32> to vector<128x384xf32>
    %c0_19 = arith.constant 0 : index
    %c0_20 = arith.constant 0 : index
    %c0_21 = arith.constant 0 : index
    %47 = vector.load %arg7[%c0_19, %c0_20, %c0_21] : memref<2x1x384xf32, #tpu.memory_space<vmem>>, vector<1x1x384xf32>
    %48 = vector.shape_cast %47 : vector<1x1x384xf32> to vector<1x384xf32>
    %cst_22 = arith.constant dense<0.000000e+00> : vector<8x384xf32>
    %49 = tpu.matmul %27, %46, %cst_22 {dimension_numbers = #tpu.dot_dimension_numbers<[1], [0], [0], [1], [0, 0, 1, 1], [], []>} : vector<8x128xf32>, vector<128x384xf32>, vector<8x384xf32> -> vector<8x384xf32>
    %50 = vector.broadcast %48 : vector<1x384xf32> to vector<8x384xf32>
    %51 = arith.addf %49, %50 : vector<8x384xf32>
    %52 = vector.extract_strided_slice %51 {offsets = [0, 0], sizes = [8, 128], strides = [1, 1]} : vector<8x384xf32> to vector<8x128xf32>
    %53 = vector.extract_strided_slice %51 {offsets = [0, 128], sizes = [8, 128], strides = [1, 1]} : vector<8x384xf32> to vector<8x128xf32>
    %54 = vector.extract_strided_slice %51 {offsets = [0, 256], sizes = [8, 128], strides = [1, 1]} : vector<8x384xf32> to vector<8x128xf32>
    %cst_23 = arith.constant 0.000000e+00 : f32
    %55 = vector.broadcast %cst_23 : f32 to vector<8x128xf32>
    %56 = vector.broadcast %37 : vector<1x128xf32> to vector<8x128xf32>
    %57 = arith.mulf %52, %56 : vector<8x128xf32>
    %cst_24 = arith.constant dense<0.000000e+00> : vector<8x8xf32>
    %58 = tpu.matmul %57, %53, %cst_24 {dimension_numbers = #tpu.dot_dimension_numbers<[1], [1], [0], [0], [0, 0, 1, 0], [], []>} : vector<8x128xf32>, vector<8x128xf32>, vector<8x8xf32> -> vector<8x8xf32>
    %59 = vector.broadcast %29 : vector<1x8xf32> to vector<8x8xf32>
    %60 = arith.addf %58, %59 : vector<8x8xf32>
    %cst_25 = arith.constant dense<0xFF800000> : vector<8xf32>
    %61 = vector.multi_reduction <maximumf>, %60, %cst_25 [1] : vector<8x8xf32> to vector<8xf32>
    %62 = vector.shape_cast %61 : vector<8xf32> to vector<8x1xf32>
    %63 = vector.broadcast %62 : vector<8x1xf32> to vector<8x8xf32>
    %64 = arith.subf %60, %63 : vector<8x8xf32>
    %65 = math.exp %64 : vector<8x8xf32>
    %cst_26 = arith.constant dense<0.000000e+00> : vector<8xf32>
    %66 = vector.multi_reduction <add>, %65, %cst_26 [1] : vector<8x8xf32> to vector<8xf32>
    %67 = vector.shape_cast %66 : vector<8xf32> to vector<8x1xf32>
    %68 = tpu.reciprocal %67 {approx = true} : vector<8x1xf32> -> vector<8x1xf32>
    %69 = vector.broadcast %68 : vector<8x1xf32> to vector<8x8xf32>
    %70 = arith.mulf %65, %69 : vector<8x8xf32>
    %71 = vector.broadcast %37 : vector<1x128xf32> to vector<8x128xf32>
    %72 = arith.mulf %54, %71 : vector<8x128xf32>
    %cst_27 = arith.constant dense<0.000000e+00> : vector<8x128xf32>
    %73 = tpu.matmul %70, %72, %cst_27 {dimension_numbers = #tpu.dot_dimension_numbers<[1], [0], [0], [1], [0, 0, 1, 1], [], []>} : vector<8x8xf32>, vector<8x128xf32>, vector<8x128xf32> -> vector<8x128xf32>
    %74 = arith.addf %55, %73 : vector<8x128xf32>
    %75 = vector.broadcast %44 : vector<1x128xf32> to vector<8x128xf32>
    %76 = arith.mulf %52, %75 : vector<8x128xf32>
    %cst_28 = arith.constant dense<0.000000e+00> : vector<8x8xf32>
    %77 = tpu.matmul %76, %53, %cst_28 {dimension_numbers = #tpu.dot_dimension_numbers<[1], [1], [0], [0], [0, 0, 1, 0], [], []>} : vector<8x128xf32>, vector<8x128xf32>, vector<8x8xf32> -> vector<8x8xf32>
    %78 = vector.broadcast %29 : vector<1x8xf32> to vector<8x8xf32>
    %79 = arith.addf %77, %78 : vector<8x8xf32>
    %cst_29 = arith.constant dense<0xFF800000> : vector<8xf32>
    %80 = vector.multi_reduction <maximumf>, %79, %cst_29 [1] : vector<8x8xf32> to vector<8xf32>
    %81 = vector.shape_cast %80 : vector<8xf32> to vector<8x1xf32>
    %82 = vector.broadcast %81 : vector<8x1xf32> to vector<8x8xf32>
    %83 = arith.subf %79, %82 : vector<8x8xf32>
    %84 = math.exp %83 : vector<8x8xf32>
    %cst_30 = arith.constant dense<0.000000e+00> : vector<8xf32>
    %85 = vector.multi_reduction <add>, %84, %cst_30 [1] : vector<8x8xf32> to vector<8xf32>
    %86 = vector.shape_cast %85 : vector<8xf32> to vector<8x1xf32>
    %87 = tpu.reciprocal %86 {approx = true} : vector<8x1xf32> -> vector<8x1xf32>
    %88 = vector.broadcast %87 : vector<8x1xf32> to vector<8x8xf32>
    %89 = arith.mulf %84, %88 : vector<8x8xf32>
    %90 = vector.broadcast %44 : vector<1x128xf32> to vector<8x128xf32>
    %91 = arith.mulf %54, %90 : vector<8x128xf32>
    %cst_31 = arith.constant dense<0.000000e+00> : vector<8x128xf32>
    %92 = tpu.matmul %89, %91, %cst_31 {dimension_numbers = #tpu.dot_dimension_numbers<[1], [0], [0], [1], [0, 0, 1, 1], [], []>} : vector<8x8xf32>, vector<8x128xf32>, vector<8x128xf32> -> vector<8x128xf32>
    %93 = arith.addf %74, %92 : vector<8x128xf32>
    %c0_32 = arith.constant 0 : index
    %c0_33 = arith.constant 0 : index
    %c0_34 = arith.constant 0 : index
    %94 = vector.load %arg8[%c0_32, %c0_33, %c0_34] : memref<2x128x128xf32, #tpu.memory_space<vmem>>, vector<1x128x128xf32>
    %95 = vector.shape_cast %94 : vector<1x128x128xf32> to vector<128x128xf32>
    %c0_35 = arith.constant 0 : index
    %c0_36 = arith.constant 0 : index
    %c0_37 = arith.constant 0 : index
    %96 = vector.load %arg9[%c0_35, %c0_36, %c0_37] : memref<2x1x128xf32, #tpu.memory_space<vmem>>, vector<1x1x128xf32>
    %97 = vector.shape_cast %96 : vector<1x1x128xf32> to vector<1x128xf32>
    %cst_38 = arith.constant dense<0.000000e+00> : vector<8x128xf32>
    %98 = tpu.matmul %93, %95, %cst_38 {dimension_numbers = #tpu.dot_dimension_numbers<[1], [0], [0], [1], [0, 0, 1, 1], [], []>} : vector<8x128xf32>, vector<128x128xf32>, vector<8x128xf32> -> vector<8x128xf32>
    %99 = vector.broadcast %97 : vector<1x128xf32> to vector<8x128xf32>
    %100 = arith.addf %98, %99 : vector<8x128xf32>
    %101 = arith.addf %100, %27 : vector<8x128xf32>
    %c0_39 = arith.constant 0 : index
    %c0_40 = arith.constant 0 : index
    %c0_41 = arith.constant 0 : index
    %102 = vector.load %arg10[%c0_39, %c0_40, %c0_41] : memref<2x1x128xf32, #tpu.memory_space<vmem>>, vector<1x1x128xf32>
    %103 = vector.shape_cast %102 : vector<1x1x128xf32> to vector<1x128xf32>
    %c0_42 = arith.constant 0 : index
    %c0_43 = arith.constant 0 : index
    %c0_44 = arith.constant 0 : index
    %104 = vector.load %arg11[%c0_42, %c0_43, %c0_44] : memref<2x1x128xf32, #tpu.memory_space<vmem>>, vector<1x1x128xf32>
    %105 = vector.shape_cast %104 : vector<1x1x128xf32> to vector<1x128xf32>
    %cst_45 = arith.constant dense<0.000000e+00> : vector<8xf32>
    %106 = vector.multi_reduction <add>, %101, %cst_45 [1] : vector<8x128xf32> to vector<8xf32>
    %107 = vector.shape_cast %106 : vector<8xf32> to vector<8x1xf32>
    %cst_46 = arith.constant 1.280000e+02 : f32
    %108 = vector.broadcast %cst_46 : f32 to vector<8x1xf32>
    %109 = arith.divf %107, %108 : vector<8x1xf32>
    %110 = vector.broadcast %109 : vector<8x1xf32> to vector<8x128xf32>
    %111 = arith.subf %101, %110 : vector<8x128xf32>
    %112 = arith.mulf %111, %111 : vector<8x128xf32>
    %cst_47 = arith.constant dense<0.000000e+00> : vector<8xf32>
    %113 = vector.multi_reduction <add>, %112, %cst_47 [1] : vector<8x128xf32> to vector<8xf32>
    %114 = vector.shape_cast %113 : vector<8xf32> to vector<8x1xf32>
    %cst_48 = arith.constant 1.280000e+02 : f32
    %115 = vector.broadcast %cst_48 : f32 to vector<8x1xf32>
    %116 = arith.divf %114, %115 : vector<8x1xf32>
    %117 = vector.broadcast %109 : vector<8x1xf32> to vector<8x128xf32>
    %118 = arith.subf %101, %117 : vector<8x128xf32>
    %cst_49 = arith.constant 9.99999996E-13 : f32
    %119 = vector.broadcast %cst_49 : f32 to vector<8x1xf32>
    %120 = arith.addf %116, %119 : vector<8x1xf32>
    %121 = math.rsqrt %120 : vector<8x1xf32>
    %122 = vector.broadcast %121 : vector<8x1xf32> to vector<8x128xf32>
    %123 = arith.mulf %118, %122 : vector<8x128xf32>
    %124 = vector.broadcast %103 : vector<1x128xf32> to vector<8x128xf32>
    %125 = arith.mulf %123, %124 : vector<8x128xf32>
    %126 = vector.broadcast %105 : vector<1x128xf32> to vector<8x128xf32>
    %127 = arith.addf %125, %126 : vector<8x128xf32>
    %c0_50 = arith.constant 0 : index
    %c0_51 = arith.constant 0 : index
    %c0_52 = arith.constant 0 : index
    %128 = vector.load %arg12[%c0_50, %c0_51, %c0_52] : memref<2x128x256xf32, #tpu.memory_space<vmem>>, vector<1x128x256xf32>
    %129 = vector.shape_cast %128 : vector<1x128x256xf32> to vector<128x256xf32>
    %c0_53 = arith.constant 0 : index
    %c0_54 = arith.constant 0 : index
    %c0_55 = arith.constant 0 : index
    %130 = vector.load %arg13[%c0_53, %c0_54, %c0_55] : memref<2x1x256xf32, #tpu.memory_space<vmem>>, vector<1x1x256xf32>
    %131 = vector.shape_cast %130 : vector<1x1x256xf32> to vector<1x256xf32>
    %cst_56 = arith.constant dense<0.000000e+00> : vector<8x256xf32>
    %132 = tpu.matmul %127, %129, %cst_56 {dimension_numbers = #tpu.dot_dimension_numbers<[1], [0], [0], [1], [0, 0, 1, 1], [], []>} : vector<8x128xf32>, vector<128x256xf32>, vector<8x256xf32> -> vector<8x256xf32>
    %133 = vector.broadcast %131 : vector<1x256xf32> to vector<8x256xf32>
    %134 = arith.addf %132, %133 : vector<8x256xf32>
    %cst_57 = arith.constant 5.000000e-01 : f32
    %135 = vector.broadcast %cst_57 : f32 to vector<8x256xf32>
    %136 = arith.mulf %135, %134 : vector<8x256xf32>
    %cst_58 = arith.constant 0.707106769 : f32
    %137 = vector.broadcast %cst_58 : f32 to vector<8x256xf32>
    %138 = arith.mulf %134, %137 : vector<8x256xf32>
    %cst_59 = arith.constant 0.000000e+00 : f32
    %139 = vector.broadcast %cst_59 : f32 to vector<8x256xf32>
    %140 = arith.cmpf oge, %138, %139 : vector<8x256xf32>
    %cst_60 = arith.constant 1.000000e+00 : f32
    %cst_61 = arith.constant -1.000000e+00 : f32
    %141 = vector.broadcast %cst_60 : f32 to vector<8x256xf32>
    %142 = vector.broadcast %cst_61 : f32 to vector<8x256xf32>
    %143 = arith.select %140, %141, %142 : vector<8x256xi1>, vector<8x256xf32>
    %144 = math.absf %138 : vector<8x256xf32>
    %cst_62 = arith.constant 0.327591091 : f32
    %145 = vector.broadcast %cst_62 : f32 to vector<8x256xf32>
    %146 = arith.mulf %145, %144 : vector<8x256xf32>
    %cst_63 = arith.constant 1.000000e+00 : f32
    %147 = vector.broadcast %cst_63 : f32 to vector<8x256xf32>
    %148 = arith.addf %147, %146 : vector<8x256xf32>
    %cst_64 = arith.constant 1.000000e+00 : f32
    %149 = vector.broadcast %cst_64 : f32 to vector<8x256xf32>
    %150 = arith.divf %149, %148 : vector<8x256xf32>
    %cst_65 = arith.constant 1.06140542 : f32
    %151 = vector.broadcast %cst_65 : f32 to vector<8x256xf32>
    %152 = arith.mulf %151, %150 : vector<8x256xf32>
    %cst_66 = arith.constant -1.45315206 : f32
    %153 = vector.broadcast %cst_66 : f32 to vector<8x256xf32>
    %154 = arith.addf %152, %153 : vector<8x256xf32>
    %155 = arith.mulf %154, %150 : vector<8x256xf32>
    %cst_67 = arith.constant 1.42141378 : f32
    %156 = vector.broadcast %cst_67 : f32 to vector<8x256xf32>
    %157 = arith.addf %155, %156 : vector<8x256xf32>
    %158 = arith.mulf %157, %150 : vector<8x256xf32>
    %cst_68 = arith.constant -0.284496725 : f32
    %159 = vector.broadcast %cst_68 : f32 to vector<8x256xf32>
    %160 = arith.addf %158, %159 : vector<8x256xf32>
    %161 = arith.mulf %160, %150 : vector<8x256xf32>
    %cst_69 = arith.constant 0.254829586 : f32
    %162 = vector.broadcast %cst_69 : f32 to vector<8x256xf32>
    %163 = arith.addf %161, %162 : vector<8x256xf32>
    %164 = arith.mulf %163, %150 : vector<8x256xf32>
    %cst_70 = arith.constant 0.000000e+00 : f32
    %165 = vector.broadcast %cst_70 : f32 to vector<8x256xf32>
    %166 = arith.subf %165, %144 : vector<8x256xf32>
    %167 = arith.mulf %166, %144 : vector<8x256xf32>
    %168 = math.exp %167 : vector<8x256xf32>
    %169 = arith.mulf %164, %168 : vector<8x256xf32>
    %cst_71 = arith.constant 1.000000e+00 : f32
    %170 = vector.broadcast %cst_71 : f32 to vector<8x256xf32>
    %171 = arith.subf %170, %169 : vector<8x256xf32>
    %172 = arith.mulf %143, %171 : vector<8x256xf32>
    %cst_72 = arith.constant 1.000000e+00 : f32
    %173 = vector.broadcast %cst_72 : f32 to vector<8x256xf32>
    %174 = arith.addf %173, %172 : vector<8x256xf32>
    %175 = arith.mulf %136, %174 : vector<8x256xf32>
    %c0_73 = arith.constant 0 : index
    %c0_74 = arith.constant 0 : index
    %c0_75 = arith.constant 0 : index
    %176 = vector.load %arg14[%c0_73, %c0_74, %c0_75] : memref<2x256x128xf32, #tpu.memory_space<vmem>>, vector<1x256x128xf32>
    %177 = vector.shape_cast %176 : vector<1x256x128xf32> to vector<256x128xf32>
    %c0_76 = arith.constant 0 : index
    %c0_77 = arith.constant 0 : index
    %c0_78 = arith.constant 0 : index
    %178 = vector.load %arg15[%c0_76, %c0_77, %c0_78] : memref<2x1x128xf32, #tpu.memory_space<vmem>>, vector<1x1x128xf32>
    %179 = vector.shape_cast %178 : vector<1x1x128xf32> to vector<1x128xf32>
    %cst_79 = arith.constant dense<0.000000e+00> : vector<8x128xf32>
    %180 = tpu.matmul %175, %177, %cst_79 {dimension_numbers = #tpu.dot_dimension_numbers<[1], [0], [0], [1], [0, 0, 1, 1], [], []>} : vector<8x256xf32>, vector<256x128xf32>, vector<8x128xf32> -> vector<8x128xf32>
    %181 = vector.broadcast %179 : vector<1x128xf32> to vector<8x128xf32>
    %182 = arith.addf %180, %181 : vector<8x128xf32>
    %183 = arith.addf %182, %127 : vector<8x128xf32>
    %c0_80 = arith.constant 0 : index
    %c0_81 = arith.constant 0 : index
    %c0_82 = arith.constant 0 : index
    %184 = vector.load %arg16[%c0_80, %c0_81, %c0_82] : memref<2x1x128xf32, #tpu.memory_space<vmem>>, vector<1x1x128xf32>
    %185 = vector.shape_cast %184 : vector<1x1x128xf32> to vector<1x128xf32>
    %c0_83 = arith.constant 0 : index
    %c0_84 = arith.constant 0 : index
    %c0_85 = arith.constant 0 : index
    %186 = vector.load %arg17[%c0_83, %c0_84, %c0_85] : memref<2x1x128xf32, #tpu.memory_space<vmem>>, vector<1x1x128xf32>
    %187 = vector.shape_cast %186 : vector<1x1x128xf32> to vector<1x128xf32>
    %cst_86 = arith.constant dense<0.000000e+00> : vector<8xf32>
    %188 = vector.multi_reduction <add>, %183, %cst_86 [1] : vector<8x128xf32> to vector<8xf32>
    %189 = vector.shape_cast %188 : vector<8xf32> to vector<8x1xf32>
    %cst_87 = arith.constant 1.280000e+02 : f32
    %190 = vector.broadcast %cst_87 : f32 to vector<8x1xf32>
    %191 = arith.divf %189, %190 : vector<8x1xf32>
    %192 = vector.broadcast %191 : vector<8x1xf32> to vector<8x128xf32>
    %193 = arith.subf %183, %192 : vector<8x128xf32>
    %194 = arith.mulf %193, %193 : vector<8x128xf32>
    %cst_88 = arith.constant dense<0.000000e+00> : vector<8xf32>
    %195 = vector.multi_reduction <add>, %194, %cst_88 [1] : vector<8x128xf32> to vector<8xf32>
    %196 = vector.shape_cast %195 : vector<8xf32> to vector<8x1xf32>
    %cst_89 = arith.constant 1.280000e+02 : f32
    %197 = vector.broadcast %cst_89 : f32 to vector<8x1xf32>
    %198 = arith.divf %196, %197 : vector<8x1xf32>
    %199 = vector.broadcast %191 : vector<8x1xf32> to vector<8x128xf32>
    %200 = arith.subf %183, %199 : vector<8x128xf32>
    %cst_90 = arith.constant 9.99999996E-13 : f32
    %201 = vector.broadcast %cst_90 : f32 to vector<8x1xf32>
    %202 = arith.addf %198, %201 : vector<8x1xf32>
    %203 = math.rsqrt %202 : vector<8x1xf32>
    %204 = vector.broadcast %203 : vector<8x1xf32> to vector<8x128xf32>
    %205 = arith.mulf %200, %204 : vector<8x128xf32>
    %206 = vector.broadcast %185 : vector<1x128xf32> to vector<8x128xf32>
    %207 = arith.mulf %205, %206 : vector<8x128xf32>
    %208 = vector.broadcast %187 : vector<1x128xf32> to vector<8x128xf32>
    %209 = arith.addf %207, %208 : vector<8x128xf32>
    %c1 = arith.constant 1 : index
    %c0_91 = arith.constant 0 : index
    %c0_92 = arith.constant 0 : index
    %210 = vector.load %arg6[%c1, %c0_91, %c0_92] : memref<2x128x384xf32, #tpu.memory_space<vmem>>, vector<1x128x384xf32>
    %211 = vector.shape_cast %210 : vector<1x128x384xf32> to vector<128x384xf32>
    %c1_93 = arith.constant 1 : index
    %c0_94 = arith.constant 0 : index
    %c0_95 = arith.constant 0 : index
    %212 = vector.load %arg7[%c1_93, %c0_94, %c0_95] : memref<2x1x384xf32, #tpu.memory_space<vmem>>, vector<1x1x384xf32>
    %213 = vector.shape_cast %212 : vector<1x1x384xf32> to vector<1x384xf32>
    %cst_96 = arith.constant dense<0.000000e+00> : vector<8x384xf32>
    %214 = tpu.matmul %209, %211, %cst_96 {dimension_numbers = #tpu.dot_dimension_numbers<[1], [0], [0], [1], [0, 0, 1, 1], [], []>} : vector<8x128xf32>, vector<128x384xf32>, vector<8x384xf32> -> vector<8x384xf32>
    %215 = vector.broadcast %213 : vector<1x384xf32> to vector<8x384xf32>
    %216 = arith.addf %214, %215 : vector<8x384xf32>
    %217 = vector.extract_strided_slice %216 {offsets = [0, 0], sizes = [8, 128], strides = [1, 1]} : vector<8x384xf32> to vector<8x128xf32>
    %218 = vector.extract_strided_slice %216 {offsets = [0, 128], sizes = [8, 128], strides = [1, 1]} : vector<8x384xf32> to vector<8x128xf32>
    %219 = vector.extract_strided_slice %216 {offsets = [0, 256], sizes = [8, 128], strides = [1, 1]} : vector<8x384xf32> to vector<8x128xf32>
    %cst_97 = arith.constant 0.000000e+00 : f32
    %220 = vector.broadcast %cst_97 : f32 to vector<8x128xf32>
    %221 = vector.broadcast %37 : vector<1x128xf32> to vector<8x128xf32>
    %222 = arith.mulf %217, %221 : vector<8x128xf32>
    %cst_98 = arith.constant dense<0.000000e+00> : vector<8x8xf32>
    %223 = tpu.matmul %222, %218, %cst_98 {dimension_numbers = #tpu.dot_dimension_numbers<[1], [1], [0], [0], [0, 0, 1, 0], [], []>} : vector<8x128xf32>, vector<8x128xf32>, vector<8x8xf32> -> vector<8x8xf32>
    %224 = vector.broadcast %29 : vector<1x8xf32> to vector<8x8xf32>
    %225 = arith.addf %223, %224 : vector<8x8xf32>
    %cst_99 = arith.constant dense<0xFF800000> : vector<8xf32>
    %226 = vector.multi_reduction <maximumf>, %225, %cst_99 [1] : vector<8x8xf32> to vector<8xf32>
    %227 = vector.shape_cast %226 : vector<8xf32> to vector<8x1xf32>
    %228 = vector.broadcast %227 : vector<8x1xf32> to vector<8x8xf32>
    %229 = arith.subf %225, %228 : vector<8x8xf32>
    %230 = math.exp %229 : vector<8x8xf32>
    %cst_100 = arith.constant dense<0.000000e+00> : vector<8xf32>
    %231 = vector.multi_reduction <add>, %230, %cst_100 [1] : vector<8x8xf32> to vector<8xf32>
    %232 = vector.shape_cast %231 : vector<8xf32> to vector<8x1xf32>
    %233 = tpu.reciprocal %232 {approx = true} : vector<8x1xf32> -> vector<8x1xf32>
    %234 = vector.broadcast %233 : vector<8x1xf32> to vector<8x8xf32>
    %235 = arith.mulf %230, %234 : vector<8x8xf32>
    %236 = vector.broadcast %37 : vector<1x128xf32> to vector<8x128xf32>
    %237 = arith.mulf %219, %236 : vector<8x128xf32>
    %cst_101 = arith.constant dense<0.000000e+00> : vector<8x128xf32>
    %238 = tpu.matmul %235, %237, %cst_101 {dimension_numbers = #tpu.dot_dimension_numbers<[1], [0], [0], [1], [0, 0, 1, 1], [], []>} : vector<8x8xf32>, vector<8x128xf32>, vector<8x128xf32> -> vector<8x128xf32>
    %239 = arith.addf %220, %238 : vector<8x128xf32>
    %240 = vector.broadcast %44 : vector<1x128xf32> to vector<8x128xf32>
    %241 = arith.mulf %217, %240 : vector<8x128xf32>
    %cst_102 = arith.constant dense<0.000000e+00> : vector<8x8xf32>
    %242 = tpu.matmul %241, %218, %cst_102 {dimension_numbers = #tpu.dot_dimension_numbers<[1], [1], [0], [0], [0, 0, 1, 0], [], []>} : vector<8x128xf32>, vector<8x128xf32>, vector<8x8xf32> -> vector<8x8xf32>
    %243 = vector.broadcast %29 : vector<1x8xf32> to vector<8x8xf32>
    %244 = arith.addf %242, %243 : vector<8x8xf32>
    %cst_103 = arith.constant dense<0xFF800000> : vector<8xf32>
    %245 = vector.multi_reduction <maximumf>, %244, %cst_103 [1] : vector<8x8xf32> to vector<8xf32>
    %246 = vector.shape_cast %245 : vector<8xf32> to vector<8x1xf32>
    %247 = vector.broadcast %246 : vector<8x1xf32> to vector<8x8xf32>
    %248 = arith.subf %244, %247 : vector<8x8xf32>
    %249 = math.exp %248 : vector<8x8xf32>
    %cst_104 = arith.constant dense<0.000000e+00> : vector<8xf32>
    %250 = vector.multi_reduction <add>, %249, %cst_104 [1] : vector<8x8xf32> to vector<8xf32>
    %251 = vector.shape_cast %250 : vector<8xf32> to vector<8x1xf32>
    %252 = tpu.reciprocal %251 {approx = true} : vector<8x1xf32> -> vector<8x1xf32>
    %253 = vector.broadcast %252 : vector<8x1xf32> to vector<8x8xf32>
    %254 = arith.mulf %249, %253 : vector<8x8xf32>
    %255 = vector.broadcast %44 : vector<1x128xf32> to vector<8x128xf32>
    %256 = arith.mulf %219, %255 : vector<8x128xf32>
    %cst_105 = arith.constant dense<0.000000e+00> : vector<8x128xf32>
    %257 = tpu.matmul %254, %256, %cst_105 {dimension_numbers = #tpu.dot_dimension_numbers<[1], [0], [0], [1], [0, 0, 1, 1], [], []>} : vector<8x8xf32>, vector<8x128xf32>, vector<8x128xf32> -> vector<8x128xf32>
    %258 = arith.addf %239, %257 : vector<8x128xf32>
    %c1_106 = arith.constant 1 : index
    %c0_107 = arith.constant 0 : index
    %c0_108 = arith.constant 0 : index
    %259 = vector.load %arg8[%c1_106, %c0_107, %c0_108] : memref<2x128x128xf32, #tpu.memory_space<vmem>>, vector<1x128x128xf32>
    %260 = vector.shape_cast %259 : vector<1x128x128xf32> to vector<128x128xf32>
    %c1_109 = arith.constant 1 : index
    %c0_110 = arith.constant 0 : index
    %c0_111 = arith.constant 0 : index
    %261 = vector.load %arg9[%c1_109, %c0_110, %c0_111] : memref<2x1x128xf32, #tpu.memory_space<vmem>>, vector<1x1x128xf32>
    %262 = vector.shape_cast %261 : vector<1x1x128xf32> to vector<1x128xf32>
    %cst_112 = arith.constant dense<0.000000e+00> : vector<8x128xf32>
    %263 = tpu.matmul %258, %260, %cst_112 {dimension_numbers = #tpu.dot_dimension_numbers<[1], [0], [0], [1], [0, 0, 1, 1], [], []>} : vector<8x128xf32>, vector<128x128xf32>, vector<8x128xf32> -> vector<8x128xf32>
    %264 = vector.broadcast %262 : vector<1x128xf32> to vector<8x128xf32>
    %265 = arith.addf %263, %264 : vector<8x128xf32>
    %266 = arith.addf %265, %209 : vector<8x128xf32>
    %c1_113 = arith.constant 1 : index
    %c0_114 = arith.constant 0 : index
    %c0_115 = arith.constant 0 : index
    %267 = vector.load %arg10[%c1_113, %c0_114, %c0_115] : memref<2x1x128xf32, #tpu.memory_space<vmem>>, vector<1x1x128xf32>
    %268 = vector.shape_cast %267 : vector<1x1x128xf32> to vector<1x128xf32>
    %c1_116 = arith.constant 1 : index
    %c0_117 = arith.constant 0 : index
    %c0_118 = arith.constant 0 : index
    %269 = vector.load %arg11[%c1_116, %c0_117, %c0_118] : memref<2x1x128xf32, #tpu.memory_space<vmem>>, vector<1x1x128xf32>
    %270 = vector.shape_cast %269 : vector<1x1x128xf32> to vector<1x128xf32>
    %cst_119 = arith.constant dense<0.000000e+00> : vector<8xf32>
    %271 = vector.multi_reduction <add>, %266, %cst_119 [1] : vector<8x128xf32> to vector<8xf32>
    %272 = vector.shape_cast %271 : vector<8xf32> to vector<8x1xf32>
    %cst_120 = arith.constant 1.280000e+02 : f32
    %273 = vector.broadcast %cst_120 : f32 to vector<8x1xf32>
    %274 = arith.divf %272, %273 : vector<8x1xf32>
    %275 = vector.broadcast %274 : vector<8x1xf32> to vector<8x128xf32>
    %276 = arith.subf %266, %275 : vector<8x128xf32>
    %277 = arith.mulf %276, %276 : vector<8x128xf32>
    %cst_121 = arith.constant dense<0.000000e+00> : vector<8xf32>
    %278 = vector.multi_reduction <add>, %277, %cst_121 [1] : vector<8x128xf32> to vector<8xf32>
    %279 = vector.shape_cast %278 : vector<8xf32> to vector<8x1xf32>
    %cst_122 = arith.constant 1.280000e+02 : f32
    %280 = vector.broadcast %cst_122 : f32 to vector<8x1xf32>
    %281 = arith.divf %279, %280 : vector<8x1xf32>
    %282 = vector.broadcast %274 : vector<8x1xf32> to vector<8x128xf32>
    %283 = arith.subf %266, %282 : vector<8x128xf32>
    %cst_123 = arith.constant 9.99999996E-13 : f32
    %284 = vector.broadcast %cst_123 : f32 to vector<8x1xf32>
    %285 = arith.addf %281, %284 : vector<8x1xf32>
    %286 = math.rsqrt %285 : vector<8x1xf32>
    %287 = vector.broadcast %286 : vector<8x1xf32> to vector<8x128xf32>
    %288 = arith.mulf %283, %287 : vector<8x128xf32>
    %289 = vector.broadcast %268 : vector<1x128xf32> to vector<8x128xf32>
    %290 = arith.mulf %288, %289 : vector<8x128xf32>
    %291 = vector.broadcast %270 : vector<1x128xf32> to vector<8x128xf32>
    %292 = arith.addf %290, %291 : vector<8x128xf32>
    %c1_124 = arith.constant 1 : index
    %c0_125 = arith.constant 0 : index
    %c0_126 = arith.constant 0 : index
    %293 = vector.load %arg12[%c1_124, %c0_125, %c0_126] : memref<2x128x256xf32, #tpu.memory_space<vmem>>, vector<1x128x256xf32>
    %294 = vector.shape_cast %293 : vector<1x128x256xf32> to vector<128x256xf32>
    %c1_127 = arith.constant 1 : index
    %c0_128 = arith.constant 0 : index
    %c0_129 = arith.constant 0 : index
    %295 = vector.load %arg13[%c1_127, %c0_128, %c0_129] : memref<2x1x256xf32, #tpu.memory_space<vmem>>, vector<1x1x256xf32>
    %296 = vector.shape_cast %295 : vector<1x1x256xf32> to vector<1x256xf32>
    %cst_130 = arith.constant dense<0.000000e+00> : vector<8x256xf32>
    %297 = tpu.matmul %292, %294, %cst_130 {dimension_numbers = #tpu.dot_dimension_numbers<[1], [0], [0], [1], [0, 0, 1, 1], [], []>} : vector<8x128xf32>, vector<128x256xf32>, vector<8x256xf32> -> vector<8x256xf32>
    %298 = vector.broadcast %296 : vector<1x256xf32> to vector<8x256xf32>
    %299 = arith.addf %297, %298 : vector<8x256xf32>
    %cst_131 = arith.constant 5.000000e-01 : f32
    %300 = vector.broadcast %cst_131 : f32 to vector<8x256xf32>
    %301 = arith.mulf %300, %299 : vector<8x256xf32>
    %cst_132 = arith.constant 0.707106769 : f32
    %302 = vector.broadcast %cst_132 : f32 to vector<8x256xf32>
    %303 = arith.mulf %299, %302 : vector<8x256xf32>
    %cst_133 = arith.constant 0.000000e+00 : f32
    %304 = vector.broadcast %cst_133 : f32 to vector<8x256xf32>
    %305 = arith.cmpf oge, %303, %304 : vector<8x256xf32>
    %cst_134 = arith.constant 1.000000e+00 : f32
    %cst_135 = arith.constant -1.000000e+00 : f32
    %306 = vector.broadcast %cst_134 : f32 to vector<8x256xf32>
    %307 = vector.broadcast %cst_135 : f32 to vector<8x256xf32>
    %308 = arith.select %305, %306, %307 : vector<8x256xi1>, vector<8x256xf32>
    %309 = math.absf %303 : vector<8x256xf32>
    %cst_136 = arith.constant 0.327591091 : f32
    %310 = vector.broadcast %cst_136 : f32 to vector<8x256xf32>
    %311 = arith.mulf %310, %309 : vector<8x256xf32>
    %cst_137 = arith.constant 1.000000e+00 : f32
    %312 = vector.broadcast %cst_137 : f32 to vector<8x256xf32>
    %313 = arith.addf %312, %311 : vector<8x256xf32>
    %cst_138 = arith.constant 1.000000e+00 : f32
    %314 = vector.broadcast %cst_138 : f32 to vector<8x256xf32>
    %315 = arith.divf %314, %313 : vector<8x256xf32>
    %cst_139 = arith.constant 1.06140542 : f32
    %316 = vector.broadcast %cst_139 : f32 to vector<8x256xf32>
    %317 = arith.mulf %316, %315 : vector<8x256xf32>
    %cst_140 = arith.constant -1.45315206 : f32
    %318 = vector.broadcast %cst_140 : f32 to vector<8x256xf32>
    %319 = arith.addf %317, %318 : vector<8x256xf32>
    %320 = arith.mulf %319, %315 : vector<8x256xf32>
    %cst_141 = arith.constant 1.42141378 : f32
    %321 = vector.broadcast %cst_141 : f32 to vector<8x256xf32>
    %322 = arith.addf %320, %321 : vector<8x256xf32>
    %323 = arith.mulf %322, %315 : vector<8x256xf32>
    %cst_142 = arith.constant -0.284496725 : f32
    %324 = vector.broadcast %cst_142 : f32 to vector<8x256xf32>
    %325 = arith.addf %323, %324 : vector<8x256xf32>
    %326 = arith.mulf %325, %315 : vector<8x256xf32>
    %cst_143 = arith.constant 0.254829586 : f32
    %327 = vector.broadcast %cst_143 : f32 to vector<8x256xf32>
    %328 = arith.addf %326, %327 : vector<8x256xf32>
    %329 = arith.mulf %328, %315 : vector<8x256xf32>
    %cst_144 = arith.constant 0.000000e+00 : f32
    %330 = vector.broadcast %cst_144 : f32 to vector<8x256xf32>
    %331 = arith.subf %330, %309 : vector<8x256xf32>
    %332 = arith.mulf %331, %309 : vector<8x256xf32>
    %333 = math.exp %332 : vector<8x256xf32>
    %334 = arith.mulf %329, %333 : vector<8x256xf32>
    %cst_145 = arith.constant 1.000000e+00 : f32
    %335 = vector.broadcast %cst_145 : f32 to vector<8x256xf32>
    %336 = arith.subf %335, %334 : vector<8x256xf32>
    %337 = arith.mulf %308, %336 : vector<8x256xf32>
    %cst_146 = arith.constant 1.000000e+00 : f32
    %338 = vector.broadcast %cst_146 : f32 to vector<8x256xf32>
    %339 = arith.addf %338, %337 : vector<8x256xf32>
    %340 = arith.mulf %301, %339 : vector<8x256xf32>
    %c1_147 = arith.constant 1 : index
    %c0_148 = arith.constant 0 : index
    %c0_149 = arith.constant 0 : index
    %341 = vector.load %arg14[%c1_147, %c0_148, %c0_149] : memref<2x256x128xf32, #tpu.memory_space<vmem>>, vector<1x256x128xf32>
    %342 = vector.shape_cast %341 : vector<1x256x128xf32> to vector<256x128xf32>
    %c1_150 = arith.constant 1 : index
    %c0_151 = arith.constant 0 : index
    %c0_152 = arith.constant 0 : index
    %343 = vector.load %arg15[%c1_150, %c0_151, %c0_152] : memref<2x1x128xf32, #tpu.memory_space<vmem>>, vector<1x1x128xf32>
    %344 = vector.shape_cast %343 : vector<1x1x128xf32> to vector<1x128xf32>
    %cst_153 = arith.constant dense<0.000000e+00> : vector<8x128xf32>
    %345 = tpu.matmul %340, %342, %cst_153 {dimension_numbers = #tpu.dot_dimension_numbers<[1], [0], [0], [1], [0, 0, 1, 1], [], []>} : vector<8x256xf32>, vector<256x128xf32>, vector<8x128xf32> -> vector<8x128xf32>
    %346 = vector.broadcast %344 : vector<1x128xf32> to vector<8x128xf32>
    %347 = arith.addf %345, %346 : vector<8x128xf32>
    %348 = arith.addf %347, %292 : vector<8x128xf32>
    %c1_154 = arith.constant 1 : index
    %c0_155 = arith.constant 0 : index
    %c0_156 = arith.constant 0 : index
    %349 = vector.load %arg16[%c1_154, %c0_155, %c0_156] : memref<2x1x128xf32, #tpu.memory_space<vmem>>, vector<1x1x128xf32>
    %350 = vector.shape_cast %349 : vector<1x1x128xf32> to vector<1x128xf32>
    %c1_157 = arith.constant 1 : index
    %c0_158 = arith.constant 0 : index
    %c0_159 = arith.constant 0 : index
    %351 = vector.load %arg17[%c1_157, %c0_158, %c0_159] : memref<2x1x128xf32, #tpu.memory_space<vmem>>, vector<1x1x128xf32>
    %352 = vector.shape_cast %351 : vector<1x1x128xf32> to vector<1x128xf32>
    %cst_160 = arith.constant dense<0.000000e+00> : vector<8xf32>
    %353 = vector.multi_reduction <add>, %348, %cst_160 [1] : vector<8x128xf32> to vector<8xf32>
    %354 = vector.shape_cast %353 : vector<8xf32> to vector<8x1xf32>
    %cst_161 = arith.constant 1.280000e+02 : f32
    %355 = vector.broadcast %cst_161 : f32 to vector<8x1xf32>
    %356 = arith.divf %354, %355 : vector<8x1xf32>
    %357 = vector.broadcast %356 : vector<8x1xf32> to vector<8x128xf32>
    %358 = arith.subf %348, %357 : vector<8x128xf32>
    %359 = arith.mulf %358, %358 : vector<8x128xf32>
    %cst_162 = arith.constant dense<0.000000e+00> : vector<8xf32>
    %360 = vector.multi_reduction <add>, %359, %cst_162 [1] : vector<8x128xf32> to vector<8xf32>
    %361 = vector.shape_cast %360 : vector<8xf32> to vector<8x1xf32>
    %cst_163 = arith.constant 1.280000e+02 : f32
    %362 = vector.broadcast %cst_163 : f32 to vector<8x1xf32>
    %363 = arith.divf %361, %362 : vector<8x1xf32>
    %364 = vector.broadcast %356 : vector<8x1xf32> to vector<8x128xf32>
    %365 = arith.subf %348, %364 : vector<8x128xf32>
    %cst_164 = arith.constant 9.99999996E-13 : f32
    %366 = vector.broadcast %cst_164 : f32 to vector<8x1xf32>
    %367 = arith.addf %363, %366 : vector<8x1xf32>
    %368 = math.rsqrt %367 : vector<8x1xf32>
    %369 = vector.broadcast %368 : vector<8x1xf32> to vector<8x128xf32>
    %370 = arith.mulf %365, %369 : vector<8x128xf32>
    %371 = vector.broadcast %350 : vector<1x128xf32> to vector<8x128xf32>
    %372 = arith.mulf %370, %371 : vector<8x128xf32>
    %373 = vector.broadcast %352 : vector<1x128xf32> to vector<8x128xf32>
    %374 = arith.addf %372, %373 : vector<8x128xf32>
    %375 = vector.extract_strided_slice %374 {offsets = [0, 0], sizes = [1, 128], strides = [1, 1]} : vector<8x128xf32> to vector<1x128xf32>
    %c0_165 = arith.constant 0 : index
    %c0_166 = arith.constant 0 : index
    %376 = vector.load %arg18[%c0_165, %c0_166] : memref<128x128xf32, #tpu.memory_space<vmem>>, vector<128x128xf32>
    %c0_167 = arith.constant 0 : index
    %c0_168 = arith.constant 0 : index
    %377 = vector.load %arg19[%c0_167, %c0_168] : memref<1x128xf32, #tpu.memory_space<vmem>>, vector<1x128xf32>
    %cst_169 = arith.constant dense<0.000000e+00> : vector<1x128xf32>
    %378 = tpu.matmul %375, %376, %cst_169 {dimension_numbers = #tpu.dot_dimension_numbers<[1], [0], [0], [1], [0, 0, 1, 1], [], []>} : vector<1x128xf32>, vector<128x128xf32>, vector<1x128xf32> -> vector<1x128xf32>
    %379 = arith.addf %378, %377 : vector<1x128xf32>
    %c0_170 = arith.constant 0 : index
    %c0_171 = arith.constant 0 : index
    %380 = vector.load %arg20[%c0_170, %c0_171] : memref<128x128xf32, #tpu.memory_space<vmem>>, vector<128x128xf32>
    %c0_172 = arith.constant 0 : index
    %c0_173 = arith.constant 0 : index
    %381 = vector.load %arg21[%c0_172, %c0_173] : memref<1x128xf32, #tpu.memory_space<vmem>>, vector<1x128xf32>
    %cst_174 = arith.constant dense<0.000000e+00> : vector<1x128xf32>
    %382 = tpu.matmul %379, %380, %cst_174 {dimension_numbers = #tpu.dot_dimension_numbers<[1], [0], [0], [1], [0, 0, 1, 1], [], []>} : vector<1x128xf32>, vector<128x128xf32>, vector<1x128xf32> -> vector<1x128xf32>
    %383 = arith.addf %382, %381 : vector<1x128xf32>
    %c0_175 = arith.constant 0 : index
    %c0_176 = arith.constant 0 : index
    %c0_177 = arith.constant 0 : index
    %384 = vector.load %arg24[%c0_175, %c0_176, %c0_177] : memref<1x1x128xf32, #tpu.memory_space<vmem>>, vector<1x1x128xf32>
    %385 = vector.shape_cast %384 : vector<1x1x128xf32> to vector<1x128xf32>
    %386 = vector.shape_cast %383 : vector<1x128xf32> to vector<1x1x128xf32>
    tpu.vector_store %arg24[%c0_175, %c0_176, %c0_177], %386 {strides = array<i32>} : memref<1x1x128xf32, #tpu.memory_space<vmem>>, vector<1x1x128xf32>,
    %c0_178 = arith.constant 0 : index
    %c0_179 = arith.constant 0 : index
    %387 = vector.load %arg22[%c0_178, %c0_179] : memref<128x128xf32, #tpu.memory_space<vmem>>, vector<128x128xf32>
    %c0_180 = arith.constant 0 : index
    %c0_181 = arith.constant 0 : index
    %388 = vector.load %arg23[%c0_180, %c0_181] : memref<1x128xf32, #tpu.memory_space<vmem>>, vector<1x128xf32>
    %cst_182 = arith.constant dense<0.000000e+00> : vector<8x128xf32>
    %389 = tpu.matmul %374, %387, %cst_182 {dimension_numbers = #tpu.dot_dimension_numbers<[1], [0], [0], [1], [0, 0, 1, 1], [], []>} : vector<8x128xf32>, vector<128x128xf32>, vector<8x128xf32> -> vector<8x128xf32>
    %390 = vector.broadcast %388 : vector<1x128xf32> to vector<8x128xf32>
    %391 = arith.addf %389, %390 : vector<8x128xf32>
    %c0_183 = arith.constant 0 : index
    %c0_184 = arith.constant 0 : index
    %c0_185 = arith.constant 0 : index
    %392 = vector.load %arg25[%c0_183, %c0_184, %c0_185] : memref<1x8x128xf32, #tpu.memory_space<vmem>>, vector<1x8x128xf32>
    %393 = vector.shape_cast %392 : vector<1x8x128xf32> to vector<8x128xf32>
    %394 = vector.shape_cast %391 : vector<8x128xf32> to vector<1x8x128xf32>
    tpu.vector_store %arg25[%c0_183, %c0_184, %c0_185], %394 {strides = array<i32>} : memref<1x8x128xf32, #tpu.memory_space<vmem>>, vector<1x8x128xf32>,
    return
  }
  func.func @transform_0(%arg0: i32) -> (i32, i32, i32) {
    %c0_i32 = arith.constant 0 : i32
    %c0_i32_0 = arith.constant 0 : i32
    %c0_i32_1 = arith.constant 0 : i32
    return %arg0, %c0_i32, %c0_i32_0 : i32, i32, i32
  }
  func.func @transform_1(%arg0: i32) -> (i32, i32) {
    %c0_i32 = arith.constant 0 : i32
    %c0_i32_0 = arith.constant 0 : i32
    %c0_i32_1 = arith.constant 0 : i32
    return %c0_i32, %c0_i32_0 : i32, i32
  }
  func.func @transform_2(%arg0: i32) -> (i32, i32, i32) {
    %c0_i32 = arith.constant 0 : i32
    %c0_i32_0 = arith.constant 0 : i32
    %c0_i32_1 = arith.constant 0 : i32
    return %arg0, %c0_i32, %c0_i32_0 : i32, i32, i32
  }
  func.func @transform_3(%arg0: i32) -> (i32, i32) {
    %c0_i32 = arith.constant 0 : i32
    %c0_i32_0 = arith.constant 0 : i32
    %c0_i32_1 = arith.constant 0 : i32
    return %c0_i32, %c0_i32_0 : i32, i32
  }
  func.func @transform_4(%arg0: i32) -> (i32, i32) {
    %c0_i32 = arith.constant 0 : i32
    %c0_i32_0 = arith.constant 0 : i32
    %c0_i32_1 = arith.constant 0 : i32
    return %c0_i32, %c0_i32_0 : i32, i32
  }
  func.func @transform_5(%arg0: i32) -> (i32, i32, i32) {
    %c0_i32 = arith.constant 0 : i32
    %c0_i32_0 = arith.constant 0 : i32
    %c0_i32_1 = arith.constant 0 : i32
    %c0_i32_2 = arith.constant 0 : i32
    return %c0_i32, %c0_i32_0, %c0_i32_1 : i32, i32, i32
  }
  func.func @transform_6(%arg0: i32) -> (i32, i32, i32) {
    %c0_i32 = arith.constant 0 : i32
    %c0_i32_0 = arith.constant 0 : i32
    %c0_i32_1 = arith.constant 0 : i32
    %c0_i32_2 = arith.constant 0 : i32
    return %c0_i32, %c0_i32_0, %c0_i32_1 : i32, i32, i32
  }
  func.func @transform_7(%arg0: i32) -> (i32, i32, i32) {
    %c0_i32 = arith.constant 0 : i32
    %c0_i32_0 = arith.constant 0 : i32
    %c0_i32_1 = arith.constant 0 : i32
    %c0_i32_2 = arith.constant 0 : i32
    return %c0_i32, %c0_i32_0, %c0_i32_1 : i32, i32, i32
  }
  func.func @transform_8(%arg0: i32) -> (i32, i32, i32) {
    %c0_i32 = arith.constant 0 : i32
    %c0_i32_0 = arith.constant 0 : i32
    %c0_i32_1 = arith.constant 0 : i32
    %c0_i32_2 = arith.constant 0 : i32
    return %c0_i32, %c0_i32_0, %c0_i32_1 : i32, i32, i32
  }
  func.func @transform_9(%arg0: i32) -> (i32, i32, i32) {
    %c0_i32 = arith.constant 0 : i32
    %c0_i32_0 = arith.constant 0 : i32
    %c0_i32_1 = arith.constant 0 : i32
    %c0_i32_2 = arith.constant 0 : i32
    return %c0_i32, %c0_i32_0, %c0_i32_1 : i32, i32, i32
  }
  func.func @transform_10(%arg0: i32) -> (i32, i32, i32) {
    %c0_i32 = arith.constant 0 : i32
    %c0_i32_0 = arith.constant 0 : i32
    %c0_i32_1 = arith.constant 0 : i32
    %c0_i32_2 = arith.constant 0 : i32
    return %c0_i32, %c0_i32_0, %c0_i32_1 : i32, i32, i32
  }
  func.func @transform_11(%arg0: i32) -> (i32, i32, i32) {
    %c0_i32 = arith.constant 0 : i32
    %c0_i32_0 = arith.constant 0 : i32
    %c0_i32_1 = arith.constant 0 : i32
    %c0_i32_2 = arith.constant 0 : i32
    return %c0_i32, %c0_i32_0, %c0_i32_1 : i32, i32, i32
  }
  func.func @transform_12(%arg0: i32) -> (i32, i32, i32) {
    %c0_i32 = arith.constant 0 : i32
    %c0_i32_0 = arith.constant 0 : i32
    %c0_i32_1 = arith.constant 0 : i32
    %c0_i32_2 = arith.constant 0 : i32
    return %c0_i32, %c0_i32_0, %c0_i32_1 : i32, i32, i32
  }
  func.func @transform_13(%arg0: i32) -> (i32, i32, i32) {
    %c0_i32 = arith.constant 0 : i32
    %c0_i32_0 = arith.constant 0 : i32
    %c0_i32_1 = arith.constant 0 : i32
    %c0_i32_2 = arith.constant 0 : i32
    return %c0_i32, %c0_i32_0, %c0_i32_1 : i32, i32, i32
  }
  func.func @transform_14(%arg0: i32) -> (i32, i32, i32) {
    %c0_i32 = arith.constant 0 : i32
    %c0_i32_0 = arith.constant 0 : i32
    %c0_i32_1 = arith.constant 0 : i32
    %c0_i32_2 = arith.constant 0 : i32
    return %c0_i32, %c0_i32_0, %c0_i32_1 : i32, i32, i32
  }
  func.func @transform_15(%arg0: i32) -> (i32, i32, i32) {
    %c0_i32 = arith.constant 0 : i32
    %c0_i32_0 = arith.constant 0 : i32
    %c0_i32_1 = arith.constant 0 : i32
    %c0_i32_2 = arith.constant 0 : i32
    return %c0_i32, %c0_i32_0, %c0_i32_1 : i32, i32, i32
  }
  func.func @transform_16(%arg0: i32) -> (i32, i32, i32) {
    %c0_i32 = arith.constant 0 : i32
    %c0_i32_0 = arith.constant 0 : i32
    %c0_i32_1 = arith.constant 0 : i32
    %c0_i32_2 = arith.constant 0 : i32
    return %c0_i32, %c0_i32_0, %c0_i32_1 : i32, i32, i32
  }
  func.func @transform_17(%arg0: i32) -> (i32, i32) {
    %c0_i32 = arith.constant 0 : i32
    %c0_i32_0 = arith.constant 0 : i32
    %c0_i32_1 = arith.constant 0 : i32
    return %c0_i32, %c0_i32_0 : i32, i32
  }
  func.func @transform_18(%arg0: i32) -> (i32, i32) {
    %c0_i32 = arith.constant 0 : i32
    %c0_i32_0 = arith.constant 0 : i32
    %c0_i32_1 = arith.constant 0 : i32
    return %c0_i32, %c0_i32_0 : i32, i32
  }
  func.func @transform_19(%arg0: i32) -> (i32, i32) {
    %c0_i32 = arith.constant 0 : i32
    %c0_i32_0 = arith.constant 0 : i32
    %c0_i32_1 = arith.constant 0 : i32
    return %c0_i32, %c0_i32_0 : i32, i32
  }
  func.func @transform_20(%arg0: i32) -> (i32, i32) {
    %c0_i32 = arith.constant 0 : i32
    %c0_i32_0 = arith.constant 0 : i32
    %c0_i32_1 = arith.constant 0 : i32
    return %c0_i32, %c0_i32_0 : i32, i32
  }
  func.func @transform_21(%arg0: i32) -> (i32, i32) {
    %c0_i32 = arith.constant 0 : i32
    %c0_i32_0 = arith.constant 0 : i32
    %c0_i32_1 = arith.constant 0 : i32
    return %c0_i32, %c0_i32_0 : i32, i32
  }
  func.func @transform_22(%arg0: i32) -> (i32, i32) {
    %c0_i32 = arith.constant 0 : i32
    %c0_i32_0 = arith.constant 0 : i32
    %c0_i32_1 = arith.constant 0 : i32
    return %c0_i32, %c0_i32_0 : i32, i32
  }
  func.func @transform_23(%arg0: i32) -> (i32, i32, i32) {
    %c0_i32 = arith.constant 0 : i32
    %c0_i32_0 = arith.constant 0 : i32
    %c0_i32_1 = arith.constant 0 : i32
    return %arg0, %c0_i32, %c0_i32_0 : i32, i32, i32
  }
  func.func @transform_24(%arg0: i32) -> (i32, i32, i32) {
    %c0_i32 = arith.constant 0 : i32
    %c0_i32_0 = arith.constant 0 : i32
    %c0_i32_1 = arith.constant 0 : i32
    return %arg0, %c0_i32, %c0_i32_0 : i32, i32, i32
  }
}

</mosaic_0001>

<llo_original>
// kernel: hybrid_classifier_forward.1
$region0: #{hybrid_classifier_forward.1}
  #allocation0 [shape = 'u32[]', space=smem, size = 0x4, offset = 0x4, fixed_abs, tag = 'smem constant byte address 0x4 - core index']
  #allocation1 [shape = 'u32[144,128]{1,0:T(1,128)}', space=vmem, size = 0x12000, scoped, tag = 'internal scratch']
  %s0 = inlined_call_operand.vmem [shape: f32[2,8,128], index: 0, kind: input, shape index: {}]
  %s1 = inlined_call_operand.vmem [shape: f32[8,128], index: 1, kind: input, shape index: {}]
  %s2 = inlined_call_operand.vmem [shape: f32[2,1,8], index: 2, kind: input, shape index: {}]
  %s3 = inlined_call_operand.vmem [shape: f32[1,128], index: 3, kind: input, shape index: {}]
  %s4 = inlined_call_operand.vmem [shape: f32[1,128], index: 4, kind: input, shape index: {}]
  %s5 = inlined_call_operand.hbm [shape: f32[2,128,384], index: 5, kind: input, shape index: {}]
  %s6 = inlined_call_operand.vmem [shape: f32[2,1,384], index: 6, kind: input, shape index: {}]
  %s7 = inlined_call_operand.hbm [shape: f32[2,128,128], index: 7, kind: input, shape index: {}]
  %s8 = inlined_call_operand.vmem [shape: f32[2,1,128], index: 8, kind: input, shape index: {}]
  %s9 = inlined_call_operand.vmem [shape: f32[2,1,128], index: 9, kind: input, shape index: {}]
  %s10 = inlined_call_operand.vmem [shape: f32[2,1,128], index: 10, kind: input, shape index: {}]
  %s11 = inlined_call_operand.hbm [shape: f32[2,128,256], index: 11, kind: input, shape index: {}]
  %s12 = inlined_call_operand.vmem [shape: f32[2,1,256], index: 12, kind: input, shape index: {}]
  %s13 = inlined_call_operand.hbm [shape: f32[2,256,128], index: 13, kind: input, shape index: {}]
  %s14 = inlined_call_operand.vmem [shape: f32[2,1,128], index: 14, kind: input, shape index: {}]
  %s15 = inlined_call_operand.vmem [shape: f32[2,1,128], index: 15, kind: input, shape index: {}]
  %s16 = inlined_call_operand.vmem [shape: f32[2,1,128], index: 16, kind: input, shape index: {}]
  %s17 = inlined_call_operand.vmem [shape: f32[128,128], index: 17, kind: input, shape index: {}]
  %s18 = inlined_call_operand.vmem [shape: f32[1,128], index: 18, kind: input, shape index: {}]
  %s19 = inlined_call_operand.hbm [shape: f32[128,128], index: 19, kind: input, shape index: {}]
  %s20 = inlined_call_operand.vmem [shape: f32[1,128], index: 20, kind: input, shape index: {}]
  %s21 = inlined_call_operand.hbm [shape: f32[128,128], index: 21, kind: input, shape index: {}]
  %s22 = inlined_call_operand.vmem [shape: f32[1,128], index: 22, kind: input, shape index: {}]
  %s23 = inlined_call_operand.hbm [shape: f32[2,1,128], index: 23, kind: output, shape index: {0}]
  %s24 = inlined_call_operand.vmem [shape: f32[2,8,128], index: 24, kind: output, shape index: {1}]
  %25 = xla_tuple %s23, %s24
  %s26 = sld [smem:[#allocation0]]
  $region157: #{hybrid_classifier_forward.1} parent=0
    _
  %s28 = ssub.s32 1, %s26
  %s29 = scalar_select 0, %s28, %s26
  $region1: #{hybrid_classifier_forward.1} parent=0
    #allocation2 [shape = 'u8[393216]{0}', space=vmem, size = 0x60000, scoped, tag = 'input window, operand 5, single buffered']
    #allocation3 [shape = 's32[2]{0}', space=sflag, size = 0x8, scoped, tag = 'scoped memory for hybrid_classifier_forward.1']
    #allocation4 [shape = 's32[2]{0}', space=sflag, size = 0x8, scoped, tag = 'scoped memory for hybrid_classifier_forward.1']
    #allocation5 [shape = 'u8[131072]{0}', space=vmem, size = 0x20000, scoped, tag = 'input window, operand 7, single buffered']
    #allocation6 [shape = 's32[1]{0}', space=sflag, size = 0x4, scoped, tag = 'scoped memory for hybrid_classifier_forward.1']
    #allocation7 [shape = 'u8[262144]{0}', space=vmem, size = 0x40000, scoped, tag = 'input window, operand 11, single buffered']
    #allocation8 [shape = 'u8[262144]{0}', space=vmem, size = 0x40000, scoped, tag = 'input window, operand 13, single buffered']
    #allocation9 [shape = 's32[1]{0}', space=sflag, size = 0x4, scoped, tag = 'scoped memory for hybrid_classifier_forward.1']
    #allocation10 [shape = 'u8[65536]{0}', space=vmem, size = 0x10000, scoped, tag = 'input window, operand 19, single buffered']
    #allocation11 [shape = 'u8[65536]{0}', space=vmem, size = 0x10000, scoped, tag = 'input window, operand 21, single buffered']
    #allocation12 [shape = 's32[1]{0}', space=sflag, size = 0x4, scoped, tag = 'scoped memory for hybrid_classifier_forward.1']
    #allocation13 [shape = 'u8[1024]{0}', space=vmem, size = 0x400, scoped, tag = 'output window, operand 0']
    %30 = vsyncpa [#allocation3], 0
    %31 = vsyncpa [#allocation6], 0
    %32 = vsyncpa [#allocation9], 0
    %33 = vsyncpa [#allocation12], 0
    %34 = vsyncpa [#allocation4], 0
    %s35 = scalar_lea.sflag [#allocation4], 1
    %36 = vsyncpa %s35, 0
    loop: start=0, step=1, limit=4
    $region2: #{hybrid_classifier_forward.1} parent=1 // loop_pre_header
      _
    $region3: #{hybrid_classifier_forward.1} parent=1 // loop_header
      %s38 = sphi 0, %s42
      %p39 = scmp.ge.s32.totalorder %s38, 4
      %s48 = sphi 0, %s50
      %s51 = sphi 0, %s48
      %s52 = sphi 0, %s51
      %s68 = sphi 0, %s52
      %s72 = sphi 0, %s72
      %s74 = sphi 0, %s72
      %s75 = sphi 0, %s74
      %s89 = sphi 0, %s75
      %s95 = sphi 0, %s97
      %s98 = sphi 0, %s95
      %s99 = sphi 0, %s98
      %s115 = sphi 0, %s99
      %s119 = sphi 0, %s119
      %s121 = sphi 0, %s119
      %s122 = sphi 0, %s121
      %s136 = sphi 0, %s122
      %s140 = sphi 0, %s140
      %s142 = sphi 0, %s140
      %s143 = sphi 0, %s142
      %s157 = sphi 0, %s143
      %s161 = sphi 0, %s161
      %s163 = sphi 0, %s161
      %s164 = sphi 0, %s163
      %s178 = sphi 0, %s164
      %s182 = sphi 0, %s182
      %s184 = sphi 0, %s182
      %s185 = sphi 0, %s184
      %s199 = sphi 0, %s185
      %s203 = sphi 0, %s203
      %s205 = sphi 0, %s203
      %s206 = sphi 0, %s205
      %s220 = sphi 0, %s206
      %s224 = sphi 0, %s224
      %s226 = sphi 0, %s224
      %s227 = sphi 0, %s226
      %s241 = sphi 0, %s227
      %s245 = sphi 0, %s245
      %s247 = sphi 0, %s245
      %s248 = sphi 0, %s247
      %s262 = sphi 0, %s248
      %s266 = sphi 0, %s266
      %s268 = sphi 0, %s266
      %s269 = sphi 0, %s268
      %s283 = sphi 0, %s269
      %s287 = sphi 0, %s287
      %s289 = sphi 0, %s287
      %s290 = sphi 0, %s289
      %s304 = sphi 0, %s290
      %s308 = sphi 0, %s308
      %s310 = sphi 0, %s308
      %s311 = sphi 0, %s310
      %s325 = sphi 0, %s311
      %s329 = sphi 0, %s329
      %s331 = sphi 0, %s329
      %s332 = sphi 0, %s331
      %s346 = sphi 0, %s332
      %s350 = sphi 0, %s350
      %s352 = sphi 0, %s350
      %s353 = sphi 0, %s352
      %s367 = sphi 0, %s353
      %s371 = sphi 0, %s371
      %s373 = sphi 0, %s371
      %s374 = sphi 0, %s373
      %s388 = sphi 0, %s374
      %s392 = sphi 0, %s392
      %s394 = sphi 0, %s392
      %s395 = sphi 0, %s394
      %s409 = sphi 0, %s395
      %s413 = sphi 0, %s413
      %s415 = sphi 0, %s413
      %s416 = sphi 0, %s415
      %s430 = sphi 0, %s416
      %s434 = sphi 0, %s434
      %s436 = sphi 0, %s434
      %s437 = sphi 0, %s436
      %s451 = sphi 0, %s437
      %s455 = sphi 0, %s455
      %s457 = sphi 0, %s455
      %s458 = sphi 0, %s457
      %s472 = sphi 0, %s458
      %s476 = sphi 0, %s476
      %s478 = sphi 0, %s476
      %s479 = sphi 0, %s478
      %s493 = sphi 0, %s479
      %s497 = sphi 0, %s497
      %s499 = sphi 0, %s497
      %s500 = sphi 0, %s499
      %s514 = sphi 0, %s500
      %s518 = sphi 0, %s518
      %s520 = sphi 0, %s518
      %s521 = sphi 0, %s520
      %s535 = sphi 0, %s521
      %s541 = sphi 0, %s543
      %s544 = sphi 0, %s541
      %s545 = sphi 0, %s544
      %s561 = sphi 0, %s545
      %s567 = sphi 0, %s569
      %s570 = sphi 0, %s567
      %s571 = sphi 0, %s570
      %s587 = sphi 0, %s571
    $region4: #{hybrid_classifier_forward.1} parent=1 // loop_header_branch
      %41 = sbr.rel (%p39) target = $region8
    $region5: #{hybrid_classifier_forward.1} parent=1 // loop_body
      %s43 = ssub.s32 %s38, 1
      %s44 = ssub.s32 %s38, 2
      %s45 = sadd.s32 %s38, 1
      %s46 = ssub.s32 %s38, %s45
      %p47 = scmp.eq.s32.totalorder %s46, 0
      %s49 = sadd.s32 %s48, 1
      %s50 = scalar_select %p47, %s48, %s49
      %p53 = pneg %p47
      %p54 = scmp.eq.s32.totalorder %s38, 1
      %p55 = por %p53, %p54
      %p56 = scmp.ne.s32.totalorder %s48, %s51
      %p57 = scmp.eq.s32.totalorder %s38, 0
      %p58 = por %p56, %p57
      %p59 = scmp.ne.s32.totalorder %s48, %s51
      %p60 = scmp.eq.s32.totalorder %s43, 1
      %p61 = por %p59, %p60
      %p62 = scmp.ne.s32.totalorder %s51, %s52
      %p63 = scmp.eq.s32.totalorder %s43, 0
      %p64 = por %p62, %p63
      %p65 = scmp.ne.s32.totalorder %s51, %s52
      %p66 = scmp.eq.s32.totalorder %s44, 1
      %p67 = por %p65, %p66
      %p69 = scmp.ne.s32.totalorder %s52, %s68
      %p70 = scmp.eq.s32.totalorder %s44, 0
      %p71 = por %p69, %p70
      %s73 = sadd.s32 %s72, 1
      %p76 = scmp.eq.s32.totalorder %s38, 1
      %p77 = scmp.ne.s32.totalorder %s72, %s74
      %p78 = scmp.eq.s32.totalorder %s38, 0
      %p79 = por %p77, %p78
      %p80 = scmp.ne.s32.totalorder %s72, %s74
      %p81 = scmp.eq.s32.totalorder %s43, 1
      %p82 = por %p80, %p81
      %p83 = scmp.ne.s32.totalorder %s74, %s75
      %p84 = scmp.eq.s32.totalorder %s43, 0
      %p85 = por %p83, %p84
      %p86 = scmp.ne.s32.totalorder %s74, %s75
      %p87 = scmp.eq.s32.totalorder %s44, 1
      %p88 = por %p86, %p87
      %p90 = scmp.ne.s32.totalorder %s75, %s89
      %p91 = scmp.eq.s32.totalorder %s44, 0
      %p92 = por %p90, %p91
      %s93 = ssub.s32 %s38, %s45
      %p94 = scmp.eq.s32.totalorder %s93, 0
      %s96 = sadd.s32 %s95, 1
      %s97 = scalar_select %p94, %s95, %s96
      %p100 = pneg %p94
      %p101 = scmp.eq.s32.totalorder %s38, 1
      %p102 = por %p100, %p101
      %p103 = scmp.ne.s32.totalorder %s95, %s98
      %p104 = scmp.eq.s32.totalorder %s38, 0
      %p105 = por %p103, %p104
      %p106 = scmp.ne.s32.totalorder %s95, %s98
      %p107 = scmp.eq.s32.totalorder %s43, 1
      %p108 = por %p106, %p107
      %p109 = scmp.ne.s32.totalorder %s98, %s99
      %p110 = scmp.eq.s32.totalorder %s43, 0
      %p111 = por %p109, %p110
      %p112 = scmp.ne.s32.totalorder %s98, %s99
      %p113 = scmp.eq.s32.totalorder %s44, 1
      %p114 = por %p112, %p113
      %p116 = scmp.ne.s32.totalorder %s99, %s115
      %p117 = scmp.eq.s32.totalorder %s44, 0
      %p118 = por %p116, %p117
      %s120 = sadd.s32 %s119, 1
      %p123 = scmp.eq.s32.totalorder %s38, 1
      %p124 = scmp.ne.s32.totalorder %s119, %s121
      %p125 = scmp.eq.s32.totalorder %s38, 0
      %p126 = por %p124, %p125
      %p127 = scmp.ne.s32.totalorder %s119, %s121
      %p128 = scmp.eq.s32.totalorder %s43, 1
      %p129 = por %p127, %p128
      %p130 = scmp.ne.s32.totalorder %s121, %s122
      %p131 = scmp.eq.s32.totalorder %s43, 0
      %p132 = por %p130, %p131
      %p133 = scmp.ne.s32.totalorder %s121, %s122
      %p134 = scmp.eq.s32.totalorder %s44, 1
      %p135 = por %p133, %p134
      %p137 = scmp.ne.s32.totalorder %s122, %s136
      %p138 = scmp.eq.s32.totalorder %s44, 0
      %p139 = por %p137, %p138
      %s141 = sadd.s32 %s140, 1
      %p144 = scmp.eq.s32.totalorder %s38, 1
      %p145 = scmp.ne.s32.totalorder %s140, %s142
      %p146 = scmp.eq.s32.totalorder %s38, 0
      %p147 = por %p145, %p146
      %p148 = scmp.ne.s32.totalorder %s140, %s142
      %p149 = scmp.eq.s32.totalorder %s43, 1
      %p150 = por %p148, %p149
      %p151 = scmp.ne.s32.totalorder %s142, %s143
      %p152 = scmp.eq.s32.totalorder %s43, 0
      %p153 = por %p151, %p152
      %p154 = scmp.ne.s32.totalorder %s142, %s143
      %p155 = scmp.eq.s32.totalorder %s44, 1
      %p156 = por %p154, %p155
      %p158 = scmp.ne.s32.totalorder %s143, %s157
      %p159 = scmp.eq.s32.totalorder %s44, 0
      %p160 = por %p158, %p159
      %s162 = sadd.s32 %s161, 1
      %p165 = scmp.eq.s32.totalorder %s38, 1
      %p166 = scmp.ne.s32.totalorder %s161, %s163
      %p167 = scmp.eq.s32.totalorder %s38, 0
      %p168 = por %p166, %p167
      %p169 = scmp.ne.s32.totalorder %s161, %s163
      %p170 = scmp.eq.s32.totalorder %s43, 1
      %p171 = por %p169, %p170
      %p172 = scmp.ne.s32.totalorder %s163, %s164
      %p173 = scmp.eq.s32.totalorder %s43, 0
      %p174 = por %p172, %p173
      %p175 = scmp.ne.s32.totalorder %s163, %s164
      %p176 = scmp.eq.s32.totalorder %s44, 1
      %p177 = por %p175, %p176
      %p179 = scmp.ne.s32.totalorder %s164, %s178
      %p180 = scmp.eq.s32.totalorder %s44, 0
      %p181 = por %p179, %p180
      %s183 = sadd.s32 %s182, 1
      %p186 = scmp.eq.s32.totalorder %s38, 1
      %p187 = scmp.ne.s32.totalorder %s182, %s184
      %p188 = scmp.eq.s32.totalorder %s38, 0
      %p189 = por %p187, %p188
      %p190 = scmp.ne.s32.totalorder %s182, %s184
      %p191 = scmp.eq.s32.totalorder %s43, 1
      %p192 = por %p190, %p191
      %p193 = scmp.ne.s32.totalorder %s184, %s185
      %p194 = scmp.eq.s32.totalorder %s43, 0
      %p195 = por %p193, %p194
      %p196 = scmp.ne.s32.totalorder %s184, %s185
      %p197 = scmp.eq.s32.totalorder %s44, 1
      %p198 = por %p196, %p197
      %p200 = scmp.ne.s32.totalorder %s185, %s199
      %p201 = scmp.eq.s32.totalorder %s44, 0
      %p202 = por %p200, %p201
      %s204 = sadd.s32 %s203, 1
      %p207 = scmp.eq.s32.totalorder %s38, 1
      %p208 = scmp.ne.s32.totalorder %s203, %s205
      %p209 = scmp.eq.s32.totalorder %s38, 0
      %p210 = por %p208, %p209
      %p211 = scmp.ne.s32.totalorder %s203, %s205
      %p212 = scmp.eq.s32.totalorder %s43, 1
      %p213 = por %p211, %p212
      %p214 = scmp.ne.s32.totalorder %s205, %s206
      %p215 = scmp.eq.s32.totalorder %s43, 0
      %p216 = por %p214, %p215
      %p217 = scmp.ne.s32.totalorder %s205, %s206
      %p218 = scmp.eq.s32.totalorder %s44, 1
      %p219 = por %p217, %p218
      %p221 = scmp.ne.s32.totalorder %s206, %s220
      %p222 = scmp.eq.s32.totalorder %s44, 0
      %p223 = por %p221, %p222
      %s225 = sadd.s32 %s224, 1
      %p228 = scmp.eq.s32.totalorder %s38, 1
      %p229 = scmp.ne.s32.totalorder %s224, %s226
      %p230 = scmp.eq.s32.totalorder %s38, 0
      %p231 = por %p229, %p230
      %p232 = scmp.ne.s32.totalorder %s224, %s226
      %p233 = scmp.eq.s32.totalorder %s43, 1
      %p234 = por %p232, %p233
      %p235 = scmp.ne.s32.totalorder %s226, %s227
      %p236 = scmp.eq.s32.totalorder %s43, 0
      %p237 = por %p235, %p236
      %p238 = scmp.ne.s32.totalorder %s226, %s227
      %p239 = scmp.eq.s32.totalorder %s44, 1
      %p240 = por %p238, %p239
      %p242 = scmp.ne.s32.totalorder %s227, %s241
      %p243 = scmp.eq.s32.totalorder %s44, 0
      %p244 = por %p242, %p243
      %s246 = sadd.s32 %s245, 1
      %p249 = scmp.eq.s32.totalorder %s38, 1
      %p250 = scmp.ne.s32.totalorder %s245, %s247
      %p251 = scmp.eq.s32.totalorder %s38, 0
      %p252 = por %p250, %p251
      %p253 = scmp.ne.s32.totalorder %s245, %s247
      %p254 = scmp.eq.s32.totalorder %s43, 1
      %p255 = por %p253, %p254
      %p256 = scmp.ne.s32.totalorder %s247, %s248
      %p257 = scmp.eq.s32.totalorder %s43, 0
      %p258 = por %p256, %p257
      %p259 = scmp.ne.s32.totalorder %s247, %s248
      %p260 = scmp.eq.s32.totalorder %s44, 1
      %p261 = por %p259, %p260
      %p263 = scmp.ne.s32.totalorder %s248, %s262
      %p264 = scmp.eq.s32.totalorder %s44, 0
      %p265 = por %p263, %p264
      %s267 = sadd.s32 %s266, 1
      %p270 = scmp.eq.s32.totalorder %s38, 1
      %p271 = scmp.ne.s32.totalorder %s266, %s268
      %p272 = scmp.eq.s32.totalorder %s38, 0
      %p273 = por %p271, %p272
      %p274 = scmp.ne.s32.totalorder %s266, %s268
      %p275 = scmp.eq.s32.totalorder %s43, 1
      %p276 = por %p274, %p275
      %p277 = scmp.ne.s32.totalorder %s268, %s269
      %p278 = scmp.eq.s32.totalorder %s43, 0
      %p279 = por %p277, %p278
      %p280 = scmp.ne.s32.totalorder %s268, %s269
      %p281 = scmp.eq.s32.totalorder %s44, 1
      %p282 = por %p280, %p281
      %p284 = scmp.ne.s32.totalorder %s269, %s283
      %p285 = scmp.eq.s32.totalorder %s44, 0
      %p286 = por %p284, %p285
      %s288 = sadd.s32 %s287, 1
      %p291 = scmp.eq.s32.totalorder %s38, 1
      %p292 = scmp.ne.s32.totalorder %s287, %s289
      %p293 = scmp.eq.s32.totalorder %s38, 0
      %p294 = por %p292, %p293
      %p295 = scmp.ne.s32.totalorder %s287, %s289
      %p296 = scmp.eq.s32.totalorder %s43, 1
      %p297 = por %p295, %p296
      %p298 = scmp.ne.s32.totalorder %s289, %s290
      %p299 = scmp.eq.s32.totalorder %s43, 0
      %p300 = por %p298, %p299
      %p301 = scmp.ne.s32.totalorder %s289, %s290
      %p302 = scmp.eq.s32.totalorder %s44, 1
      %p303 = por %p301, %p302
      %p305 = scmp.ne.s32.totalorder %s290, %s304
      %p306 = scmp.eq.s32.totalorder %s44, 0
      %p307 = por %p305, %p306
      %s309 = sadd.s32 %s308, 1
      %p312 = scmp.eq.s32.totalorder %s38, 1
      %p313 = scmp.ne.s32.totalorder %s308, %s310
      %p314 = scmp.eq.s32.totalorder %s38, 0
      %p315 = por %p313, %p314
      %p316 = scmp.ne.s32.totalorder %s308, %s310
      %p317 = scmp.eq.s32.totalorder %s43, 1
      %p318 = por %p316, %p317
      %p319 = scmp.ne.s32.totalorder %s310, %s311
      %p320 = scmp.eq.s32.totalorder %s43, 0
      %p321 = por %p319, %p320
      %p322 = scmp.ne.s32.totalorder %s310, %s311
      %p323 = scmp.eq.s32.totalorder %s44, 1
      %p324 = por %p322, %p323
      %p326 = scmp.ne.s32.totalorder %s311, %s325
      %p327 = scmp.eq.s32.totalorder %s44, 0
      %p328 = por %p326, %p327
      %s330 = sadd.s32 %s329, 1
      %p333 = scmp.eq.s32.totalorder %s38, 1
      %p334 = scmp.ne.s32.totalorder %s329, %s331
      %p335 = scmp.eq.s32.totalorder %s38, 0
      %p336 = por %p334, %p335
      %p337 = scmp.ne.s32.totalorder %s329, %s331
      %p338 = scmp.eq.s32.totalorder %s43, 1
      %p339 = por %p337, %p338
      %p340 = scmp.ne.s32.totalorder %s331, %s332
      %p341 = scmp.eq.s32.totalorder %s43, 0
      %p342 = por %p340, %p341
      %p343 = scmp.ne.s32.totalorder %s331, %s332
      %p344 = scmp.eq.s32.totalorder %s44, 1
      %p345 = por %p343, %p344
      %p347 = scmp.ne.s32.totalorder %s332, %s346
      %p348 = scmp.eq.s32.totalorder %s44, 0
      %p349 = por %p347, %p348
      %s351 = sadd.s32 %s350, 1
      %p354 = scmp.eq.s32.totalorder %s38, 1
      %p355 = scmp.ne.s32.totalorder %s350, %s352
      %p356 = scmp.eq.s32.totalorder %s38, 0
      %p357 = por %p355, %p356
      %p358 = scmp.ne.s32.totalorder %s350, %s352
      %p359 = scmp.eq.s32.totalorder %s43, 1
      %p360 = por %p358, %p359
      %p361 = scmp.ne.s32.totalorder %s352, %s353
      %p362 = scmp.eq.s32.totalorder %s43, 0
      %p363 = por %p361, %p362
      %p364 = scmp.ne.s32.totalorder %s352, %s353
      %p365 = scmp.eq.s32.totalorder %s44, 1
      %p366 = por %p364, %p365
      %p368 = scmp.ne.s32.totalorder %s353, %s367
      %p369 = scmp.eq.s32.totalorder %s44, 0
      %p370 = por %p368, %p369
      %s372 = sadd.s32 %s371, 1
      %p375 = scmp.eq.s32.totalorder %s38, 1
      %p376 = scmp.ne.s32.totalorder %s371, %s373
      %p377 = scmp.eq.s32.totalorder %s38, 0
      %p378 = por %p376, %p377
      %p379 = scmp.ne.s32.totalorder %s371, %s373
      %p380 = scmp.eq.s32.totalorder %s43, 1
      %p381 = por %p379, %p380
      %p382 = scmp.ne.s32.totalorder %s373, %s374
      %p383 = scmp.eq.s32.totalorder %s43, 0
      %p384 = por %p382, %p383
      %p385 = scmp.ne.s32.totalorder %s373, %s374
      %p386 = scmp.eq.s32.totalorder %s44, 1
      %p387 = por %p385, %p386
      %p389 = scmp.ne.s32.totalorder %s374, %s388
      %p390 = scmp.eq.s32.totalorder %s44, 0
      %p391 = por %p389, %p390
      %s393 = sadd.s32 %s392, 1
      %p396 = scmp.eq.s32.totalorder %s38, 1
      %p397 = scmp.ne.s32.totalorder %s392, %s394
      %p398 = scmp.eq.s32.totalorder %s38, 0
      %p399 = por %p397, %p398
      %p400 = scmp.ne.s32.totalorder %s392, %s394
      %p401 = scmp.eq.s32.totalorder %s43, 1
      %p402 = por %p400, %p401
      %p403 = scmp.ne.s32.totalorder %s394, %s395
      %p404 = scmp.eq.s32.totalorder %s43, 0
      %p405 = por %p403, %p404
      %p406 = scmp.ne.s32.totalorder %s394, %s395
      %p407 = scmp.eq.s32.totalorder %s44, 1
      %p408 = por %p406, %p407
      %p410 = scmp.ne.s32.totalorder %s395, %s409
      %p411 = scmp.eq.s32.totalorder %s44, 0
      %p412 = por %p410, %p411
      %s414 = sadd.s32 %s413, 1
      %p417 = scmp.eq.s32.totalorder %s38, 1
      %p418 = scmp.ne.s32.totalorder %s413, %s415
      %p419 = scmp.eq.s32.totalorder %s38, 0
      %p420 = por %p418, %p419
      %p421 = scmp.ne.s32.totalorder %s413, %s415
      %p422 = scmp.eq.s32.totalorder %s43, 1
      %p423 = por %p421, %p422
      %p424 = scmp.ne.s32.totalorder %s415, %s416
      %p425 = scmp.eq.s32.totalorder %s43, 0
      %p426 = por %p424, %p425
      %p427 = scmp.ne.s32.totalorder %s415, %s416
      %p428 = scmp.eq.s32.totalorder %s44, 1
      %p429 = por %p427, %p428
      %p431 = scmp.ne.s32.totalorder %s416, %s430
      %p432 = scmp.eq.s32.totalorder %s44, 0
      %p433 = por %p431, %p432
      %s435 = sadd.s32 %s434, 1
      %p438 = scmp.eq.s32.totalorder %s38, 1
      %p439 = scmp.ne.s32.totalorder %s434, %s436
      %p440 = scmp.eq.s32.totalorder %s38, 0
      %p441 = por %p439, %p440
      %p442 = scmp.ne.s32.totalorder %s434, %s436
      %p443 = scmp.eq.s32.totalorder %s43, 1
      %p444 = por %p442, %p443
      %p445 = scmp.ne.s32.totalorder %s436, %s437
      %p446 = scmp.eq.s32.totalorder %s43, 0
      %p447 = por %p445, %p446
      %p448 = scmp.ne.s32.totalorder %s436, %s437
      %p449 = scmp.eq.s32.totalorder %s44, 1
      %p450 = por %p448, %p449
      %p452 = scmp.ne.s32.totalorder %s437, %s451
      %p453 = scmp.eq.s32.totalorder %s44, 0
      %p454 = por %p452, %p453
      %s456 = sadd.s32 %s455, 1
      %p459 = scmp.eq.s32.totalorder %s38, 1
      %p460 = scmp.ne.s32.totalorder %s455, %s457
      %p461 = scmp.eq.s32.totalorder %s38, 0
      %p462 = por %p460, %p461
      %p463 = scmp.ne.s32.totalorder %s455, %s457
      %p464 = scmp.eq.s32.totalorder %s43, 1
      %p465 = por %p463, %p464
      %p466 = scmp.ne.s32.totalorder %s457, %s458
      %p467 = scmp.eq.s32.totalorder %s43, 0
      %p468 = por %p466, %p467
      %p469 = scmp.ne.s32.totalorder %s457, %s458
      %p470 = scmp.eq.s32.totalorder %s44, 1
      %p471 = por %p469, %p470
      %p473 = scmp.ne.s32.totalorder %s458, %s472
      %p474 = scmp.eq.s32.totalorder %s44, 0
      %p475 = por %p473, %p474
      %s477 = sadd.s32 %s476, 1
      %p480 = scmp.eq.s32.totalorder %s38, 1
      %p481 = scmp.ne.s32.totalorder %s476, %s478
      %p482 = scmp.eq.s32.totalorder %s38, 0
      %p483 = por %p481, %p482
      %p484 = scmp.ne.s32.totalorder %s476, %s478
      %p485 = scmp.eq.s32.totalorder %s43, 1
      %p486 = por %p484, %p485
      %p487 = scmp.ne.s32.totalorder %s478, %s479
      %p488 = scmp.eq.s32.totalorder %s43, 0
      %p489 = por %p487, %p488
      %p490 = scmp.ne.s32.totalorder %s478, %s479
      %p491 = scmp.eq.s32.totalorder %s44, 1
      %p492 = por %p490, %p491
      %p494 = scmp.ne.s32.totalorder %s479, %s493
      %p495 = scmp.eq.s32.totalorder %s44, 0
      %p496 = por %p494, %p495
      %s498 = sadd.s32 %s497, 1
      %p501 = scmp.eq.s32.totalorder %s38, 1
      %p502 = scmp.ne.s32.totalorder %s497, %s499
      %p503 = scmp.eq.s32.totalorder %s38, 0
      %p504 = por %p502, %p503
      %p505 = scmp.ne.s32.totalorder %s497, %s499
      %p506 = scmp.eq.s32.totalorder %s43, 1
      %p507 = por %p505, %p506
      %p508 = scmp.ne.s32.totalorder %s499, %s500
      %p509 = scmp.eq.s32.totalorder %s43, 0
      %p510 = por %p508, %p509
      %p511 = scmp.ne.s32.totalorder %s499, %s500
      %p512 = scmp.eq.s32.totalorder %s44, 1
      %p513 = por %p511, %p512
      %p515 = scmp.ne.s32.totalorder %s500, %s514
      %p516 = scmp.eq.s32.totalorder %s44, 0
      %p517 = por %p515, %p516
      %s519 = sadd.s32 %s518, 1
      %p522 = scmp.eq.s32.totalorder %s38, 1
      %p523 = scmp.ne.s32.totalorder %s518, %s520
      %p524 = scmp.eq.s32.totalorder %s38, 0
      %p525 = por %p523, %p524
      %p526 = scmp.ne.s32.totalorder %s518, %s520
      %p527 = scmp.eq.s32.totalorder %s43, 1
      %p528 = por %p526, %p527
      %p529 = scmp.ne.s32.totalorder %s520, %s521
      %p530 = scmp.eq.s32.totalorder %s43, 0
      %p531 = por %p529, %p530
      %p532 = scmp.ne.s32.totalorder %s520, %s521
      %p533 = scmp.eq.s32.totalorder %s44, 1
      %p534 = por %p532, %p533
      %p536 = scmp.ne.s32.totalorder %s521, %s535
      %p537 = scmp.eq.s32.totalorder %s44, 0
      %p538 = por %p536, %p537
      %s539 = ssub.s32 %s38, %s45
      %p540 = scmp.eq.s32.totalorder %s539, 0
      %s542 = sadd.s32 %s541, 1
      %s543 = scalar_select %p540, %s541, %s542
      %p546 = pneg %p540
      %p547 = scmp.eq.s32.totalorder %s38, 1
      %p548 = por %p546, %p547
      %p549 = scmp.ne.s32.totalorder %s541, %s544
      %p550 = scmp.eq.s32.totalorder %s38, 0
      %p551 = por %p549, %p550
      %p552 = scmp.ne.s32.totalorder %s541, %s544
      %p553 = scmp.eq.s32.totalorder %s43, 1
      %p554 = por %p552, %p553
      %p555 = scmp.ne.s32.totalorder %s544, %s545
      %p556 = scmp.eq.s32.totalorder %s43, 0
      %p557 = por %p555, %p556
      %p558 = scmp.ne.s32.totalorder %s544, %s545
      %p559 = scmp.eq.s32.totalorder %s44, 1
      %p560 = por %p558, %p559
      %p562 = scmp.ne.s32.totalorder %s545, %s561
      %p563 = scmp.eq.s32.totalorder %s44, 0
      %p564 = por %p562, %p563
      %s565 = ssub.s32 %s38, %s45
      %p566 = scmp.eq.s32.totalorder %s565, 0
      %s568 = sadd.s32 %s567, 1
      %s569 = scalar_select %p566, %s567, %s568
      %p572 = pneg %p566
      %p573 = scmp.eq.s32.totalorder %s38, 1
      %p574 = por %p572, %p573
      %p575 = scmp.ne.s32.totalorder %s567, %s570
      %p576 = scmp.eq.s32.totalorder %s38, 0
      %p577 = por %p575, %p576
      %p578 = scmp.ne.s32.totalorder %s567, %s570
      %p579 = scmp.eq.s32.totalorder %s43, 1
      %p580 = por %p578, %p579
      %p581 = scmp.ne.s32.totalorder %s570, %s571
      %p582 = scmp.eq.s32.totalorder %s43, 0
      %p583 = por %p581, %p582
      %p584 = scmp.ne.s32.totalorder %s570, %s571
      %p585 = scmp.eq.s32.totalorder %s44, 1
      %p586 = por %p584, %p585
      %p588 = scmp.ne.s32.totalorder %s571, %s587
      %p589 = scmp.eq.s32.totalorder %s44, 0
      %p590 = por %p588, %p589
      %p591 = scmp.le.s32.totalorder 1, %s38
      %p592 = scmp.lt.s32.totalorder %s38, 3
      %p593 = pnand %p591, %p592
      %p594 = pneg %p593
      // Predicated region
      $region9: #{hybrid_classifier_forward.1} parent=5 // pred_check
        _
      $region10: #{hybrid_classifier_forward.1} parent=5 // pred_check_branch
        %596 = sbr.rel (%p593) target = $region12
      $region11: #{hybrid_classifier_forward.1} parent=5 // pred_region
        %s597 = ssub.s32 %s38, 1
        // Predicated region
        $region13: #{hybrid_classifier_forward.1} parent=11 // pred_check
          %p598 = pneg %p85
        $region14: #{hybrid_classifier_forward.1} parent=11 // pred_check_branch
          %600 = sbr.rel (%p598) target = $region16
        $region15: #{hybrid_classifier_forward.1} parent=11 // pred_region
          _
        $region16: #{hybrid_classifier_forward.1} parent=11 // pred_fallthru
          _
        // Predicated region
        $region17: #{hybrid_classifier_forward.1} parent=11 // pred_check
          %p601 = pneg %p132
        $region18: #{hybrid_classifier_forward.1} parent=11 // pred_check_branch
          %603 = sbr.rel (%p601) target = $region20
        $region19: #{hybrid_classifier_forward.1} parent=11 // pred_region
          _
        $region20: #{hybrid_classifier_forward.1} parent=11 // pred_fallthru
          _
        // Predicated region
        $region21: #{hybrid_classifier_forward.1} parent=11 // pred_check
          %p604 = pneg %p153
        $region22: #{hybrid_classifier_forward.1} parent=11 // pred_check_branch
          %606 = sbr.rel (%p604) target = $region24
        $region23: #{hybrid_classifier_forward.1} parent=11 // pred_region
          _
        $region24: #{hybrid_classifier_forward.1} parent=11 // pred_fallthru
          _
        // Predicated region
        $region25: #{hybrid_classifier_forward.1} parent=11 // pred_check
          %p607 = pneg %p174
        $region26: #{hybrid_classifier_forward.1} parent=11 // pred_check_branch
          %609 = sbr.rel (%p607) target = $region28
        $region27: #{hybrid_classifier_forward.1} parent=11 // pred_region
          %s611 = ssub.s32 12288, 12288
          %612 = vsyncadd [#allocation3], %s611
          %s613 = sshll.u32 [#allocation2], 4
          %s614 = int_to_ptr.vmem [resolvable:$true] %s613
          %619 = dma.hbm_to_vmem [thread:$0]  %s5, 12288, %s614, [#allocation3], 384, 384, 24
        $region28: #{hybrid_classifier_forward.1} parent=11 // pred_fallthru
          _
        // Predicated region
        $region29: #{hybrid_classifier_forward.1} parent=11 // pred_check
          %p620 = pneg %p195
        $region30: #{hybrid_classifier_forward.1} parent=11 // pred_check_branch
          %622 = sbr.rel (%p620) target = $region32
        $region31: #{hybrid_classifier_forward.1} parent=11 // pred_region
          _
        $region32: #{hybrid_classifier_forward.1} parent=11 // pred_fallthru
          _
        // Predicated region
        $region33: #{hybrid_classifier_forward.1} parent=11 // pred_check
          %p623 = pneg %p216
        $region34: #{hybrid_classifier_forward.1} parent=11 // pred_check_branch
          %625 = sbr.rel (%p623) target = $region36
        $region35: #{hybrid_classifier_forward.1} parent=11 // pred_region
          %s627 = ssub.s32 4096, 4096
          %628 = vsyncadd [#allocation6], %s627
          %s629 = sshll.u32 [#allocation5], 4
          %s630 = int_to_ptr.vmem [resolvable:$true] %s629
          %635 = dma.hbm_to_vmem [thread:$0]  %s7, 4096, %s630, [#allocation6], 128, 128, 8
        $region36: #{hybrid_classifier_forward.1} parent=11 // pred_fallthru
          _
        // Predicated region
        $region37: #{hybrid_classifier_forward.1} parent=11 // pred_check
          %p636 = pneg %p237
        $region38: #{hybrid_classifier_forward.1} parent=11 // pred_check_branch
          %638 = sbr.rel (%p636) target = $region40
        $region39: #{hybrid_classifier_forward.1} parent=11 // pred_region
          _
        $region40: #{hybrid_classifier_forward.1} parent=11 // pred_fallthru
          _
        // Predicated region
        $region41: #{hybrid_classifier_forward.1} parent=11 // pred_check
          %p639 = pneg %p258
        $region42: #{hybrid_classifier_forward.1} parent=11 // pred_check_branch
          %641 = sbr.rel (%p639) target = $region44
        $region43: #{hybrid_classifier_forward.1} parent=11 // pred_region
          _
        $region44: #{hybrid_classifier_forward.1} parent=11 // pred_fallthru
          _
        // Predicated region
        $region45: #{hybrid_classifier_forward.1} parent=11 // pred_check
          %p642 = pneg %p279
        $region46: #{hybrid_classifier_forward.1} parent=11 // pred_check_branch
          %644 = sbr.rel (%p642) target = $region48
        $region47: #{hybrid_classifier_forward.1} parent=11 // pred_region
          _
        $region48: #{hybrid_classifier_forward.1} parent=11 // pred_fallthru
          _
        // Predicated region
        $region49: #{hybrid_classifier_forward.1} parent=11 // pred_check
          %p645 = pneg %p300
        $region50: #{hybrid_classifier_forward.1} parent=11 // pred_check_branch
          %647 = sbr.rel (%p645) target = $region52
        $region51: #{hybrid_classifier_forward.1} parent=11 // pred_region
          %s649 = ssub.s32 8192, 8192
          %650 = vsyncadd [#allocation6], %s649
          %s651 = sshll.u32 [#allocation7], 4
          %s652 = int_to_ptr.vmem [resolvable:$true] %s651
          %657 = dma.hbm_to_vmem [thread:$0]  %s11, 8192, %s652, [#allocation6], 256, 256, 16
        $region52: #{hybrid_classifier_forward.1} parent=11 // pred_fallthru
          _
        // Predicated region
        $region53: #{hybrid_classifier_forward.1} parent=11 // pred_check
          %p658 = pneg %p321
        $region54: #{hybrid_classifier_forward.1} parent=11 // pred_check_branch
          %660 = sbr.rel (%p658) target = $region56
        $region55: #{hybrid_classifier_forward.1} parent=11 // pred_region
          _
        $region56: #{hybrid_classifier_forward.1} parent=11 // pred_fallthru
          _
        // Predicated region
        $region57: #{hybrid_classifier_forward.1} parent=11 // pred_check
          %p661 = pneg %p342
        $region58: #{hybrid_classifier_forward.1} parent=11 // pred_check_branch
          %663 = sbr.rel (%p661) target = $region60
        $region59: #{hybrid_classifier_forward.1} parent=11 // pred_region
          %s665 = ssub.s32 8192, 8192
          %666 = vsyncadd [#allocation9], %s665
          %s667 = sshll.u32 [#allocation8], 4
          %s668 = int_to_ptr.vmem [resolvable:$true] %s667
          %673 = dma.hbm_to_vmem [thread:$0]  %s13, 8192, %s668, [#allocation9], 128, 128, 8
        $region60: #{hybrid_classifier_forward.1} parent=11 // pred_fallthru
          _
        // Predicated region
        $region61: #{hybrid_classifier_forward.1} parent=11 // pred_check
          %p674 = pneg %p363
        $region62: #{hybrid_classifier_forward.1} parent=11 // pred_check_branch
          %676 = sbr.rel (%p674) target = $region64
        $region63: #{hybrid_classifier_forward.1} parent=11 // pred_region
          _
        $region64: #{hybrid_classifier_forward.1} parent=11 // pred_fallthru
          _
        // Predicated region
        $region65: #{hybrid_classifier_forward.1} parent=11 // pred_check
          %p677 = pneg %p384
        $region66: #{hybrid_classifier_forward.1} parent=11 // pred_check_branch
          %679 = sbr.rel (%p677) target = $region68
        $region67: #{hybrid_classifier_forward.1} parent=11 // pred_region
          _
        $region68: #{hybrid_classifier_forward.1} parent=11 // pred_fallthru
          _
        // Predicated region
        $region69: #{hybrid_classifier_forward.1} parent=11 // pred_check
          %p680 = pneg %p405
        $region70: #{hybrid_classifier_forward.1} parent=11 // pred_check_branch
          %682 = sbr.rel (%p680) target = $region72
        $region71: #{hybrid_classifier_forward.1} parent=11 // pred_region
          _
        $region72: #{hybrid_classifier_forward.1} parent=11 // pred_fallthru
          _
        // Predicated region
        $region73: #{hybrid_classifier_forward.1} parent=11 // pred_check
          %p683 = pneg %p426
        $region74: #{hybrid_classifier_forward.1} parent=11 // pred_check_branch
          %685 = sbr.rel (%p683) target = $region76
        $region75: #{hybrid_classifier_forward.1} parent=11 // pred_region
          _
        $region76: #{hybrid_classifier_forward.1} parent=11 // pred_fallthru
          _
        // Predicated region
        $region77: #{hybrid_classifier_forward.1} parent=11 // pred_check
          %p686 = pneg %p447
        $region78: #{hybrid_classifier_forward.1} parent=11 // pred_check_branch
          %688 = sbr.rel (%p686) target = $region80
        $region79: #{hybrid_classifier_forward.1} parent=11 // pred_region
          _
        $region80: #{hybrid_classifier_forward.1} parent=11 // pred_fallthru
          _
        // Predicated region
        $region81: #{hybrid_classifier_forward.1} parent=11 // pred_check
          %p689 = pneg %p468
        $region82: #{hybrid_classifier_forward.1} parent=11 // pred_check_branch
          %691 = sbr.rel (%p689) target = $region84
        $region83: #{hybrid_classifier_forward.1} parent=11 // pred_region
          %s693 = ssub.s32 2048, 2048
          %694 = vsyncadd [#allocation9], %s693
          %s695 = sshll.u32 [#allocation10], 4
          %s696 = int_to_ptr.vmem [resolvable:$true] %s695
          %701 = dma.hbm_to_vmem [thread:$0]  %s19, 2048, %s696, [#allocation9], 128, 128, 8
        $region84: #{hybrid_classifier_forward.1} parent=11 // pred_fallthru
          _
        // Predicated region
        $region85: #{hybrid_classifier_forward.1} parent=11 // pred_check
          %p702 = pneg %p489
        $region86: #{hybrid_classifier_forward.1} parent=11 // pred_check_branch
          %704 = sbr.rel (%p702) target = $region88
        $region87: #{hybrid_classifier_forward.1} parent=11 // pred_region
          _
        $region88: #{hybrid_classifier_forward.1} parent=11 // pred_fallthru
          _
        // Predicated region
        $region89: #{hybrid_classifier_forward.1} parent=11 // pred_check
          %p705 = pneg %p510
        $region90: #{hybrid_classifier_forward.1} parent=11 // pred_check_branch
          %707 = sbr.rel (%p705) target = $region92
        $region91: #{hybrid_classifier_forward.1} parent=11 // pred_region
          %s709 = ssub.s32 2048, 2048
          %710 = vsyncadd [#allocation12], %s709
          %s711 = sshll.u32 [#allocation11], 4
          %s712 = int_to_ptr.vmem [resolvable:$true] %s711
          %717 = dma.hbm_to_vmem [thread:$0]  %s21, 2048, %s712, [#allocation12], 128, 128, 8
        $region92: #{hybrid_classifier_forward.1} parent=11 // pred_fallthru
          _
        // Predicated region
        $region93: #{hybrid_classifier_forward.1} parent=11 // pred_check
          %p718 = pneg %p531
        $region94: #{hybrid_classifier_forward.1} parent=11 // pred_check_branch
          %720 = sbr.rel (%p718) target = $region96
        $region95: #{hybrid_classifier_forward.1} parent=11 // pred_region
          _
        $region96: #{hybrid_classifier_forward.1} parent=11 // pred_fallthru
          _
      $region12: #{hybrid_classifier_forward.1} parent=5 // pred_fallthru
        _
      %p721 = scmp.lt.s32.totalorder %s38, 2
      // Predicated region
      $region97: #{hybrid_classifier_forward.1} parent=5 // pred_check
        %p722 = pneg %p721
      $region98: #{hybrid_classifier_forward.1} parent=5 // pred_check_branch
        %724 = sbr.rel (%p722) target = $region100
      $region99: #{hybrid_classifier_forward.1} parent=5 // pred_region
        // Predicated region
        $region101: #{hybrid_classifier_forward.1} parent=99 // pred_check
          %p725 = pneg %p58
        $region102: #{hybrid_classifier_forward.1} parent=99 // pred_check_branch
          %727 = sbr.rel (%p725) target = $region104
        $region103: #{hybrid_classifier_forward.1} parent=99 // pred_region
          %p728 = scmp.lt.s32.totalorder %s38, 1
          %s729 = scalar_select %p728, %s38, 1
          %s730 = smul.addr %s729, 8
          %s731 = scalar_lea.vmem %s0, %s730
        $region104: #{hybrid_classifier_forward.1} parent=99 // pred_fallthru
          _
        // Predicated region
        $region105: #{hybrid_classifier_forward.1} parent=99 // pred_check
          %p732 = pneg %p105
        $region106: #{hybrid_classifier_forward.1} parent=99 // pred_check_branch
          %734 = sbr.rel (%p732) target = $region108
        $region107: #{hybrid_classifier_forward.1} parent=99 // pred_region
          %p735 = scmp.lt.s32.totalorder %s38, 1
          %s736 = scalar_select %p735, %s38, 1
          %s737 = scalar_lea.vmem %s2, %s736
        $region108: #{hybrid_classifier_forward.1} parent=99 // pred_fallthru
          _
      $region100: #{hybrid_classifier_forward.1} parent=5 // pred_fallthru
        _
      %p738 = scmp.le.s32.totalorder 1, %s38
      %p739 = scmp.lt.s32.totalorder %s38, 3
      %p740 = pnand %p738, %p739
      %p741 = pneg %p740
      // Predicated region
      $region109: #{hybrid_classifier_forward.1} parent=5 // pred_check
        _
      $region110: #{hybrid_classifier_forward.1} parent=5 // pred_check_branch
        %743 = sbr.rel (%p740) target = $region112
      $region111: #{hybrid_classifier_forward.1} parent=5 // pred_region
        %s744 = ssub.s32 %s38, 1
        // Predicated region
        $region113: #{hybrid_classifier_forward.1} parent=111 // pred_check
          %p745 = pneg %p174
        $region114: #{hybrid_classifier_forward.1} parent=111 // pred_check_branch
          %747 = sbr.rel (%p745) target = $region116
        $region115: #{hybrid_classifier_forward.1} parent=111 // pred_region
          %748 = dma.done [#allocation3], 12288
        $region116: #{hybrid_classifier_forward.1} parent=111 // pred_fallthru
          _
        // Predicated region
        $region117: #{hybrid_classifier_forward.1} parent=111 // pred_check
          %p749 = pneg %p216
        $region118: #{hybrid_classifier_forward.1} parent=111 // pred_check_branch
          %751 = sbr.rel (%p749) target = $region120
        $region119: #{hybrid_classifier_forward.1} parent=111 // pred_region
          %752 = dma.done [#allocation6], 4096
        $region120: #{hybrid_classifier_forward.1} parent=111 // pred_fallthru
          _
        // Predicated region
        $region121: #{hybrid_classifier_forward.1} parent=111 // pred_check
          %p753 = pneg %p300
        $region122: #{hybrid_classifier_forward.1} parent=111 // pred_check_branch
          %755 = sbr.rel (%p753) target = $region124
        $region123: #{hybrid_classifier_forward.1} parent=111 // pred_region
          %756 = dma.done [#allocation6], 8192
        $region124: #{hybrid_classifier_forward.1} parent=111 // pred_fallthru
          _
        // Predicated region
        $region125: #{hybrid_classifier_forward.1} parent=111 // pred_check
          %p757 = pneg %p342
        $region126: #{hybrid_classifier_forward.1} parent=111 // pred_check_branch
          %759 = sbr.rel (%p757) target = $region128
        $region127: #{hybrid_classifier_forward.1} parent=111 // pred_region
          %760 = dma.done [#allocation9], 8192
        $region128: #{hybrid_classifier_forward.1} parent=111 // pred_fallthru
          _
        // Predicated region
        $region129: #{hybrid_classifier_forward.1} parent=111 // pred_check
          %p761 = pneg %p468
        $region130: #{hybrid_classifier_forward.1} parent=111 // pred_check_branch
          %763 = sbr.rel (%p761) target = $region132
        $region131: #{hybrid_classifier_forward.1} parent=111 // pred_region
          %764 = dma.done [#allocation9], 2048
        $region132: #{hybrid_classifier_forward.1} parent=111 // pred_fallthru
          _
        // Predicated region
        $region133: #{hybrid_classifier_forward.1} parent=111 // pred_check
          %p765 = pneg %p510
        $region134: #{hybrid_classifier_forward.1} parent=111 // pred_check_branch
          %767 = sbr.rel (%p765) target = $region136
        $region135: #{hybrid_classifier_forward.1} parent=111 // pred_region
          %768 = dma.done [#allocation12], 2048
        $region136: #{hybrid_classifier_forward.1} parent=111 // pred_fallthru
          _
        %p769 = scmp.lt.s32.totalorder %s43, 1
        %s770 = scalar_select %p769, %s43, 1
        %s771 = smul.addr %s770, 8
        %s772 = scalar_lea.vmem %s0, %s771
        %p773 = pneg %p64
        %p774 = pneg %p61
        %p775 = pneg %p85
        %p776 = pneg %p82
        %p777 = scmp.lt.s32.totalorder %s43, 1
        %s778 = scalar_select %p777, %s43, 1
        %s779 = scalar_lea.vmem %s2, %s778
        %p780 = pneg %p111
        %p781 = pneg %p108
        %p782 = pneg %p132
        %p783 = pneg %p129
        %p784 = pneg %p153
        %p785 = pneg %p150
        %p786 = pneg %p174
        %p787 = pneg %p171
        %p788 = pneg %p195
        %p789 = pneg %p192
        %p790 = pneg %p216
        %p791 = pneg %p213
        %p792 = pneg %p237
        %p793 = pneg %p234
        %p794 = pneg %p258
        %p795 = pneg %p255
        %p796 = pneg %p279
        %p797 = pneg %p276
        %p798 = pneg %p300
        %p799 = pneg %p297
        %p800 = pneg %p321
        %p801 = pneg %p318
        %p802 = pneg %p342
        %p803 = pneg %p339
        %p804 = pneg %p363
        %p805 = pneg %p360
        %p806 = pneg %p384
        %p807 = pneg %p381
        %p808 = pneg %p405
        %p809 = pneg %p402
        %p810 = pneg %p426
        %p811 = pneg %p423
        %p812 = pneg %p447
        %p813 = pneg %p444
        %p814 = pneg %p468
        %p815 = pneg %p465
        %p816 = pneg %p489
        %p817 = pneg %p486
        %p818 = pneg %p510
        %p819 = pneg %p507
        %p820 = pneg %p531
        %p821 = pneg %p528
        %p822 = pneg %p557
        %p823 = pneg %p554
        %s824 = sand.u32 %s544, 1
        %s825 = scalar_lea.sflag [#allocation4], %s824
        %s826 = sand.u32 %s544, 1
        %s827 = scalar_lea.vmem [#allocation13], %s826
        %p828 = pneg %p583
        %p829 = pneg %p580
        %p830 = scmp.lt.s32.totalorder %s43, 1
        %s831 = scalar_select %p830, %s43, 1
        %s832 = smul.addr %s831, 8
        %s833 = scalar_lea.vmem %s24, %s832
        %p834 = scmp.lt.s32.totalorder %s43, 1
        %s835 = scalar_select %p834, %s43, 1
        %s836 = smul.addr %s835, 8
        %s837 = scalar_lea.vmem %s0, %s836
        %p838 = scmp.lt.s32.totalorder %s43, 1
        %s839 = scalar_select %p838, %s43, 1
        %s840 = scalar_lea.vmem %s2, %s839
        %p841 = scmp.lt.s32.totalorder %s43, 1
        %s842 = scalar_select %p841, %s43, 1
        %s843 = smul.addr %s842, 8
        %s844 = scalar_lea.vmem %s24, %s843
        %v845 = vld [vmem:[%s837] sm:$0xff]
        %v846 = vld [vmem:[%s1] sm:$0xff]
        %v847 = vadd.f32 %v845, %v846
        %v848 = vld [vmem:[%s3] sm:$0x1]
        %v849 = vld [vmem:[%s4] sm:$0x1]
        %850 = vadd.xlane.f32.xlu0 %v847
        %v851 = vpop.xlane.xlu0 %850
        %v852 = vrcp.pop 128.0
        %v853 = vmul.f32 %v851, %v852
        %v854 = vsub.f32 %v847, %v853
        %v855 = vmul.f32 %v854, %v854
        %856 = vadd.xlane.f32.xlu0 %v855
        %v857 = vpop.xlane.xlu0 %856
        %v858 = vmul.f32 %v857, %v852
        %v859 = vadd.f32 %v858, 1e-12
        %v860 = vrsqrt.pop %v859
        %v861 = vmul.f32 %v854, %v860
        %v863 = vlaneseq
        %v864 = vshrl.u32 %v863, 7
        %v865 = vsub.s32 0, %v864
        %v866 = vrot.slane %v848, %v865
        %v868 = vmul.f32 %v861, %v866
        %v870 = vlaneseq
        %v871 = vshrl.u32 %v870, 7
        %v872 = vsub.s32 0, %v871
        %v873 = vrot.slane %v849, %v872
        %v875 = vadd.f32 %v868, %v873
        %v876 = vld [vmem:[%s840] sm:$0x1]
        %v877 = vlaneseq
        %v878 = vand.u32 %v877, 127
        %vm879 = vcmp.ge.s32.totalorder %v878, 0
        %vm880 = vcmp.lt.s32.totalorder %v878, 64
        %vm881 = vmand %vm879, %vm880
        %v882 = vsel %vm881, 1, 0
        %v883 = vcvt.s32.f32 %v882
        %vm884 = vcmp.ge.s32.totalorder %v878, 64
        %vm885 = vcmp.lt.s32.totalorder %v878, 128
        %vm886 = vmand %vm884, %vm885
        %v887 = vsel %vm886, 1, 0
        %v888 = vcvt.s32.f32 %v887
        %v889 = vld [vmem:[#allocation2] sm:$0xff]
        %v890 = vld [vmem:[#allocation2 + $0x8] sm:$0xff]
        %v891 = vld [vmem:[#allocation2 + $0x10] sm:$0xff]
        %v892 = vld [vmem:[#allocation2 + $0x18] sm:$0xff]
        %v893 = vld [vmem:[#allocation2 + $0x20] sm:$0xff]
        %v894 = vld [vmem:[#allocation2 + $0x28] sm:$0xff]
        %v895 = vld [vmem:[#allocation2 + $0x30] sm:$0xff]
        %v896 = vld [vmem:[#allocation2 + $0x38] sm:$0xff]
        %v897 = vld [vmem:[#allocation2 + $0x40] sm:$0xff]
        %v898 = vld [vmem:[#allocation2 + $0x48] sm:$0xff]
        %v899 = vld [vmem:[#allocation2 + $0x50] sm:$0xff]
        %v900 = vld [vmem:[#allocation2 + $0x58] sm:$0xff]
        %v901 = vld [vmem:[#allocation2 + $0x60] sm:$0xff]
        %v902 = vld [vmem:[#allocation2 + $0x68] sm:$0xff]
        %v903 = vld [vmem:[#allocation2 + $0x70] sm:$0xff]
        %v904 = vld [vmem:[#allocation2 + $0x78] sm:$0xff]
        %v905 = vld [vmem:[#allocation2 + $0x80] sm:$0xff]
        %v906 = vld [vmem:[#allocation2 + $0x88] sm:$0xff]
        %v907 = vld [vmem:[#allocation2 + $0x90] sm:$0xff]
        %v908 = vld [vmem:[#allocation2 + $0x98] sm:$0xff]
        %v909 = vld [vmem:[#allocation2 + $0xa0] sm:$0xff]
        %v910 = vld [vmem:[#allocation2 + $0xa8] sm:$0xff]
        %v911 = vld [vmem:[#allocation2 + $0xb0] sm:$0xff]
        %v912 = vld [vmem:[#allocation2 + $0xb8] sm:$0xff]
        %v913 = vld [vmem:[#allocation2 + $0xc0] sm:$0xff]
        %v914 = vld [vmem:[#allocation2 + $0xc8] sm:$0xff]
        %v915 = vld [vmem:[#allocation2 + $0xd0] sm:$0xff]
        %v916 = vld [vmem:[#allocation2 + $0xd8] sm:$0xff]
        %v917 = vld [vmem:[#allocation2 + $0xe0] sm:$0xff]
        %v918 = vld [vmem:[#allocation2 + $0xe8] sm:$0xff]
        %v919 = vld [vmem:[#allocation2 + $0xf0] sm:$0xff]
        %v920 = vld [vmem:[#allocation2 + $0xf8] sm:$0xff]
        %v921 = vld [vmem:[#allocation2 + $0x100] sm:$0xff]
        %v922 = vld [vmem:[#allocation2 + $0x108] sm:$0xff]
        %v923 = vld [vmem:[#allocation2 + $0x110] sm:$0xff]
        %v924 = vld [vmem:[#allocation2 + $0x118] sm:$0xff]
        %v925 = vld [vmem:[#allocation2 + $0x120] sm:$0xff]
        %v926 = vld [vmem:[#allocation2 + $0x128] sm:$0xff]
        %v927 = vld [vmem:[#allocation2 + $0x130] sm:$0xff]
        %v928 = vld [vmem:[#allocation2 + $0x138] sm:$0xff]
        %v929 = vld [vmem:[#allocation2 + $0x140] sm:$0xff]
        %v930 = vld [vmem:[#allocation2 + $0x148] sm:$0xff]
        %v931 = vld [vmem:[#allocation2 + $0x150] sm:$0xff]
        %v932 = vld [vmem:[#allocation2 + $0x158] sm:$0xff]
        %v933 = vld [vmem:[#allocation2 + $0x160] sm:$0xff]
        %v934 = vld [vmem:[#allocation2 + $0x168] sm:$0xff]
        %v935 = vld [vmem:[#allocation2 + $0x170] sm:$0xff]
        %v936 = vld [vmem:[#allocation2 + $0x178] sm:$0xff]
        %v937 = vld [vmem:[%s6] sm:$0x7]
        %v939 = vlaneseq
        %v940 = vshrl.u32 %v939, 7
        %v941 = vsub.s32 0, %v940
        %v942 = vrot.slane %v937, %v941
        %v943 = vlaneseq
        %v944 = vshrl.u32 %v943, 7
        %v945 = vsub.s32 1, %v944
        %v946 = vrot.slane %v937, %v945
        %v947 = vlaneseq
        %v948 = vshrl.u32 %v947, 7
        %v949 = vsub.s32 2, %v948
        %v950 = vrot.slane %v937, %v949
        %954 = vmatprep.subr.mxu0 %v890
        %955 = vmatpush1.msra.mxu0 %v889
        %956 = vmatprep.subr.mxu0 %v893
        %957 = vmatpush1.msra.mxu0 %v892
        %958 = vmatprep.subr.mxu0 %v896
        %959 = vmatpush1.msra.mxu0 %v895
        %960 = vmatprep.subr.mxu0 %v899
        %961 = vmatpush1.msra.mxu0 %v898
        %962 = vmatprep.subr.mxu0 %v902
        %963 = vmatpush1.msra.mxu0 %v901
        %964 = vmatprep.subr.mxu0 %v905
        %965 = vmatpush1.msra.mxu0 %v904
        %966 = vmatprep.subr.mxu0 %v908
        %967 = vmatpush1.msra.mxu0 %v907
        %968 = vmatprep.subr.mxu0 %v911
        %969 = vmatpush1.msra.mxu0 %v910
        %970 = vmatprep.subr.mxu0 %v914
        %971 = vmatpush1.msra.mxu0 %v913
        %972 = vmatprep.subr.mxu0 %v917
        %973 = vmatpush1.msra.mxu0 %v916
        %974 = vmatprep.subr.mxu0 %v920
        %975 = vmatpush1.msra.mxu0 %v919
        %976 = vmatprep.subr.mxu0 %v923
        %977 = vmatpush1.msra.mxu0 %v922
        %978 = vmatprep.subr.mxu0 %v926
        %979 = vmatpush1.msra.mxu0 %v925
        %980 = vmatprep.subr.mxu0 %v929
        %981 = vmatpush1.msra.mxu0 %v928
        %982 = vmatprep.subr.mxu0 %v932
        %983 = vmatpush1.msra.mxu0 %v931
        %984 = vmatprep.subr.mxu0 %v935
        %985 = vmatpush1.msra.mxu0 %v934
        %986 = vmatprep.subr.mxu0 0.0
        %987 = vmatpush1.msra.mxu0 0.0
        %988 = vmatprep.subr.mxu0 0.0
        %989 = vmatpush1.msra.mxu0 0.0
        %990 = vmatprep.subr.mxu0 0.0
        %991 = vmatpush1.msra.mxu0 0.0
        %992 = vmatprep.subr.mxu0 0.0
        %993 = vmatpush1.msra.mxu0 0.0
        %994 = vmatprep.subr.mxu0 0.0
        %995 = vmatpush1.msra.mxu0 0.0
        %996 = vmatprep.subr.mxu0 0.0
        %997 = vmatpush1.msra.mxu0 0.0
        %998 = vmatprep.subr.mxu0 0.0
        %999 = vmatpush1.msra.mxu0 0.0
        %1000 = vmatprep.subr.mxu0 0.0
        %1001 = vmatpush1.msra.mxu0 0.0
        %1002 = vmatprep.subr.mxu0 0.0
        %1003 = vmatpush1.msra.mxu0 0.0
        %1004 = vmatprep.subr.mxu0 0.0
        %1005 = vmatpush1.msra.mxu0 0.0
        %1006 = vmatprep.subr.mxu0 0.0
        %1007 = vmatpush1.msra.mxu0 0.0
        %1008 = vmatprep.subr.mxu0 0.0
        %1009 = vmatpush1.msra.mxu0 0.0
        %1010 = vmatprep.subr.mxu0 0.0
        %1011 = vmatpush1.msra.mxu0 0.0
        %1012 = vmatprep.subr.mxu0 0.0
        %1013 = vmatpush1.msra.mxu0 0.0
        %1014 = vmatprep.subr.mxu0 0.0
        %1015 = vmatpush1.msra.mxu0 0.0
        %1016 = vmatprep.subr.mxu0 0.0
        %1017 = vmatpush1.msra.mxu0 0.0
        %1018 = vmatprep.mubr.f32.mxu0 0.0
        %1019 = vmatmul.mubr.f32.gmra.mrb[0].mxu0 %v875
        %v1020 = vpop.f32.mrb[0].mxu0
        %v1021 = vadd.f32 %v942, %v1020
        %v1022 = vpop.f32.mrb[0].mxu0
        %v1023 = vadd.f32 %v946, %v1022
        %1024 = vdwg.mxu0
        %1025 = vmatprep.subr.mxu0 0.0
        %1026 = vmatpush1.msra.mxu0 %v891
        %1027 = vmatprep.subr.mxu0 0.0
        %1028 = vmatpush1.msra.mxu0 %v894
        %1029 = vmatprep.subr.mxu0 0.0
        %1030 = vmatpush1.msra.mxu0 %v897
        %1031 = vmatprep.subr.mxu0 0.0
        %1032 = vmatpush1.msra.mxu0 %v900
        %1033 = vmatprep.subr.mxu0 0.0
        %1034 = vmatpush1.msra.mxu0 %v903
        %1035 = vmatprep.subr.mxu0 0.0
        %1036 = vmatpush1.msra.mxu0 %v906
        %1037 = vmatprep.subr.mxu0 0.0
        %1038 = vmatpush1.msra.mxu0 %v909
        %1039 = vmatprep.subr.mxu0 0.0
        %1040 = vmatpush1.msra.mxu0 %v912
        %1041 = vmatprep.subr.mxu0 0.0
        %1042 = vmatpush1.msra.mxu0 %v915
        %1043 = vmatprep.subr.mxu0 0.0
        %1044 = vmatpush1.msra.mxu0 %v918
        %1045 = vmatprep.subr.mxu0 0.0
        %1046 = vmatpush1.msra.mxu0 %v921
        %1047 = vmatprep.subr.mxu0 0.0
        %1048 = vmatpush1.msra.mxu0 %v924
        %1049 = vmatprep.subr.mxu0 0.0
        %1050 = vmatpush1.msra.mxu0 %v927
        %1051 = vmatprep.subr.mxu0 0.0
        %1052 = vmatpush1.msra.mxu0 %v930
        %1053 = vmatprep.subr.mxu0 0.0
        %1054 = vmatpush1.msra.mxu0 %v933
        %1055 = vmatprep.subr.mxu0 0.0
        %1056 = vmatpush1.msra.mxu0 %v936
        %1057 = vmatprep.subr.mxu0 0.0
        %1058 = vmatpush1.msra.mxu0 0.0
        %1059 = vmatprep.subr.mxu0 0.0
        %1060 = vmatpush1.msra.mxu0 0.0
        %1061 = vmatprep.subr.mxu0 0.0
        %1062 = vmatpush1.msra.mxu0 0.0
        %1063 = vmatprep.subr.mxu0 0.0
        %1064 = vmatpush1.msra.mxu0 0.0
        %1065 = vmatprep.subr.mxu0 0.0
        %1066 = vmatpush1.msra.mxu0 0.0
        %1067 = vmatprep.subr.mxu0 0.0
        %1068 = vmatpush1.msra.mxu0 0.0
        %1069 = vmatprep.subr.mxu0 0.0
        %1070 = vmatpush1.msra.mxu0 0.0
        %1071 = vmatprep.subr.mxu0 0.0
        %1072 = vmatpush1.msra.mxu0 0.0
        %1073 = vmatprep.subr.mxu0 0.0
        %1074 = vmatpush1.msra.mxu0 0.0
        %1075 = vmatprep.subr.mxu0 0.0
        %1076 = vmatpush1.msra.mxu0 0.0
        %1077 = vmatprep.subr.mxu0 0.0
        %1078 = vmatpush1.msra.mxu0 0.0
        %1079 = vmatprep.subr.mxu0 0.0
        %1080 = vmatpush1.msra.mxu0 0.0
        %1081 = vmatprep.subr.mxu0 0.0
        %1082 = vmatpush1.msra.mxu0 0.0
        %1083 = vmatprep.subr.mxu0 0.0
        %1084 = vmatpush1.msra.mxu0 0.0
        %1085 = vmatprep.subr.mxu0 0.0
        %1086 = vmatpush1.msra.mxu0 0.0
        %1087 = vmatprep.subr.mxu0 0.0
        %1088 = vmatpush1.msra.mxu0 0.0
        %1089 = vmatprep.mubr.f32.mxu0 0.0
        %1090 = vmatmul.mubr.f32.gmra.mrb[0].mxu0 %v875
        %v1091 = vpop.f32.mrb[0].mxu0
        %v1092 = vadd.f32 %v950, %v1091
        %v1093 = vpop.f32.mrb[0].mxu0
        %1094 = vdwg.mxu0
        %v1095 = vmul.f32 %v1021, %v883
        %v1097 = vlaneseq
        %v1098 = vshrl.u32 %v1097, 7
        %v1099 = vsub.s32 0, %v1098
        %v1100 = vrot.slane %v876, %v1099
        %1102 = vmatprep.subr.mxu0 0.0
        %1103 = vmatpush1.xpose.msra.mxu0 %v1023
        %1104 = vmatprep.subr.mxu0 0.0
        %1105 = vmatpush1.xpose.msra.mxu0 0.0
        %1106 = vmatprep.subr.mxu0 0.0
        %1107 = vmatpush1.xpose.msra.mxu0 0.0
        %1108 = vmatprep.subr.mxu0 0.0
        %1109 = vmatpush1.xpose.msra.mxu0 0.0
        %1110 = vmatprep.subr.mxu0 0.0
        %1111 = vmatpush1.xpose.msra.mxu0 0.0
        %1112 = vmatprep.subr.mxu0 0.0
        %1113 = vmatpush1.xpose.msra.mxu0 0.0
        %1114 = vmatprep.subr.mxu0 0.0
        %1115 = vmatpush1.xpose.msra.mxu0 0.0
        %1116 = vmatprep.subr.mxu0 0.0
        %1117 = vmatpush1.xpose.msra.mxu0 0.0
        %1118 = vmatprep.subr.mxu0 0.0
        %1119 = vmatpush1.xpose.msra.mxu0 0.0
        %1120 = vmatprep.subr.mxu0 0.0
        %1121 = vmatpush1.xpose.msra.mxu0 0.0
        %1122 = vmatprep.subr.mxu0 0.0
        %1123 = vmatpush1.xpose.msra.mxu0 0.0
        %1124 = vmatprep.subr.mxu0 0.0
        %1125 = vmatpush1.xpose.msra.mxu0 0.0
        %1126 = vmatprep.subr.mxu0 0.0
        %1127 = vmatpush1.xpose.msra.mxu0 0.0
        %1128 = vmatprep.subr.mxu0 0.0
        %1129 = vmatpush1.xpose.msra.mxu0 0.0
        %1130 = vmatprep.subr.mxu0 0.0
        %1131 = vmatpush1.xpose.msra.mxu0 0.0
        %1132 = vmatprep.subr.mxu0 0.0
        %1133 = vmatpush1.xpose.msra.mxu0 0.0
        %1134 = vmatprep.subr.mxu0 0.0
        %1135 = vmatpush1.xpose.msra.mxu0 0.0
        %1136 = vmatprep.subr.mxu0 0.0
        %1137 = vmatpush1.xpose.msra.mxu0 0.0
        %1138 = vmatprep.subr.mxu0 0.0
        %1139 = vmatpush1.xpose.msra.mxu0 0.0
        %1140 = vmatprep.subr.mxu0 0.0
        %1141 = vmatpush1.xpose.msra.mxu0 0.0
        %1142 = vmatprep.subr.mxu0 0.0
        %1143 = vmatpush1.xpose.msra.mxu0 0.0
        %1144 = vmatprep.subr.mxu0 0.0
        %1145 = vmatpush1.xpose.msra.mxu0 0.0
        %1146 = vmatprep.subr.mxu0 0.0
        %1147 = vmatpush1.xpose.msra.mxu0 0.0
        %1148 = vmatprep.subr.mxu0 0.0
        %1149 = vmatpush1.xpose.msra.mxu0 0.0
        %1150 = vmatprep.subr.mxu0 0.0
        %1151 = vmatpush1.xpose.msra.mxu0 0.0
        %1152 = vmatprep.subr.mxu0 0.0
        %1153 = vmatpush1.xpose.msra.mxu0 0.0
        %1154 = vmatprep.subr.mxu0 0.0
        %1155 = vmatpush1.xpose.msra.mxu0 0.0
        %1156 = vmatprep.subr.mxu0 0.0
        %1157 = vmatpush1.xpose.msra.mxu0 0.0
        %1158 = vmatprep.subr.mxu0 0.0
        %1159 = vmatpush1.xpose.msra.mxu0 0.0
        %1160 = vmatprep.subr.mxu0 0.0
        %1161 = vmatpush1.xpose.msra.mxu0 0.0
        %1162 = vmatprep.subr.mxu0 0.0
        %1163 = vmatpush1.xpose.msra.mxu0 0.0
        %1164 = vmatprep.subr.mxu0 0.0
        %1165 = vmatpush1.xpose.msra.mxu0 0.0
        %1166 = vmatprep.mubr.f32.mxu0 0.0
        %1167 = vmatmul.mubr.f32.gmra.mrb[0].mxu0 %v1095
        %v1168 = vpop.f32.mrb[0].mxu0
        %v1169 = vadd.f32 %v1100, %v1168
        %v1170 = vpop.f32.mrb[0].mxu0
        %1171 = vdwg.mxu0
        %vm1172 = vcmask 64512
        %v1173 = vsel %vm1172, %v1169, -inf
        %1174 = vmax.xlane.f32.xlu0 %v1173
        %v1175 = vpop.xlane.xlu0 %1174
        %v1176 = vsub.f32 %v1169, %v1175
        %v1177 = vmul.f32 %v1176, 1.442695
        %v1178 = vpow.pop %v1177
        %v1179 = vsel %vm1172, %v1178, 0.0
        %1180 = vadd.xlane.f32.xlu0 %v1179
        %v1181 = vpop.xlane.xlu0 %1180
        %v1182 = vrcp.pop %v1181
        %v1183 = vmul.f32 %v1178, %v1182
        %v1184 = vmul.f32 %v1092, %v883
        %v1185 = vmul.f32 %v1021, %v888
        %1186 = vmatprep.subr.mxu0 0.0
        %1187 = vmatpush1.xpose.msra.mxu0 %v1023
        %1188 = vmatprep.subr.mxu0 0.0
        %1189 = vmatpush1.xpose.msra.mxu0 0.0
        %1190 = vmatprep.subr.mxu0 0.0
        %1191 = vmatpush1.xpose.msra.mxu0 0.0
        %1192 = vmatprep.subr.mxu0 0.0
        %1193 = vmatpush1.xpose.msra.mxu0 0.0
        %1194 = vmatprep.subr.mxu0 0.0
        %1195 = vmatpush1.xpose.msra.mxu0 0.0
        %1196 = vmatprep.subr.mxu0 0.0
        %1197 = vmatpush1.xpose.msra.mxu0 0.0
        %1198 = vmatprep.subr.mxu0 0.0
        %1199 = vmatpush1.xpose.msra.mxu0 0.0
        %1200 = vmatprep.subr.mxu0 0.0
        %1201 = vmatpush1.xpose.msra.mxu0 0.0
        %1202 = vmatprep.subr.mxu0 0.0
        %1203 = vmatpush1.xpose.msra.mxu0 0.0
        %1204 = vmatprep.subr.mxu0 0.0
        %1205 = vmatpush1.xpose.msra.mxu0 0.0
        %1206 = vmatprep.subr.mxu0 0.0
        %1207 = vmatpush1.xpose.msra.mxu0 0.0
        %1208 = vmatprep.subr.mxu0 0.0
        %1209 = vmatpush1.xpose.msra.mxu0 0.0
        %1210 = vmatprep.subr.mxu0 0.0
        %1211 = vmatpush1.xpose.msra.mxu0 0.0
        %1212 = vmatprep.subr.mxu0 0.0
        %1213 = vmatpush1.xpose.msra.mxu0 0.0
        %1214 = vmatprep.subr.mxu0 0.0
        %1215 = vmatpush1.xpose.msra.mxu0 0.0
        %1216 = vmatprep.subr.mxu0 0.0
        %1217 = vmatpush1.xpose.msra.mxu0 0.0
        %1218 = vmatprep.subr.mxu0 0.0
        %1219 = vmatpush1.xpose.msra.mxu0 0.0
        %1220 = vmatprep.subr.mxu0 0.0
        %1221 = vmatpush1.xpose.msra.mxu0 0.0
        %1222 = vmatprep.subr.mxu0 0.0
        %1223 = vmatpush1.xpose.msra.mxu0 0.0
        %1224 = vmatprep.subr.mxu0 0.0
        %1225 = vmatpush1.xpose.msra.mxu0 0.0
        %1226 = vmatprep.subr.mxu0 0.0
        %1227 = vmatpush1.xpose.msra.mxu0 0.0
        %1228 = vmatprep.subr.mxu0 0.0
        %1229 = vmatpush1.xpose.msra.mxu0 0.0
        %1230 = vmatprep.subr.mxu0 0.0
        %1231 = vmatpush1.xpose.msra.mxu0 0.0
        %1232 = vmatprep.subr.mxu0 0.0
        %1233 = vmatpush1.xpose.msra.mxu0 0.0
        %1234 = vmatprep.subr.mxu0 0.0
        %1235 = vmatpush1.xpose.msra.mxu0 0.0
        %1236 = vmatprep.subr.mxu0 0.0
        %1237 = vmatpush1.xpose.msra.mxu0 0.0
        %1238 = vmatprep.subr.mxu0 0.0
        %1239 = vmatpush1.xpose.msra.mxu0 0.0
        %1240 = vmatprep.subr.mxu0 0.0
        %1241 = vmatpush1.xpose.msra.mxu0 0.0
        %1242 = vmatprep.subr.mxu0 0.0
        %1243 = vmatpush1.xpose.msra.mxu0 0.0
        %1244 = vmatprep.subr.mxu0 0.0
        %1245 = vmatpush1.xpose.msra.mxu0 0.0
        %1246 = vmatprep.subr.mxu0 0.0
        %1247 = vmatpush1.xpose.msra.mxu0 0.0
        %1248 = vmatprep.subr.mxu0 0.0
        %1249 = vmatpush1.xpose.msra.mxu0 0.0
        %1250 = vmatprep.mubr.f32.mxu0 0.0
        %1251 = vmatmul.mubr.f32.gmra.mrb[0].mxu0 %v1185
        %v1252 = vpop.f32.mrb[0].mxu0
        %v1253 = vadd.f32 %v1100, %v1252
        %v1254 = vpop.f32.mrb[0].mxu0
        %1255 = vdwg.mxu0
        %v1256 = vsel %vm1172, %v1253, -inf
        %1257 = vmax.xlane.f32.xlu0 %v1256
        %v1258 = vpop.xlane.xlu0 %1257
        %v1259 = vsub.f32 %v1253, %v1258
        %v1260 = vmul.f32 %v1259, 1.442695
        %v1261 = vpow.pop %v1260
        %v1262 = vsel %vm1172, %v1261, 0.0
        %1263 = vadd.xlane.f32.xlu0 %v1262
        %v1264 = vpop.xlane.xlu0 %1263
        %v1265 = vrcp.pop %v1264
        %v1266 = vmul.f32 %v1261, %v1265
        %v1267 = vmul.f32 %v1092, %v888
        %v1269 = vsel %vm1172, %v1266, 0
        %1271 = vmatprep.subr.mxu0 0.0
        %1272 = vmatpush1.msra.mxu0 %v1267
        %1273 = vmatprep.subr.mxu0 0.0
        %1274 = vmatpush1.msra.mxu0 0.0
        %1275 = vmatprep.subr.mxu0 0.0
        %1276 = vmatpush1.msra.mxu0 0.0
        %1277 = vmatprep.subr.mxu0 0.0
        %1278 = vmatpush1.msra.mxu0 0.0
        %1279 = vmatprep.subr.mxu0 0.0
        %1280 = vmatpush1.msra.mxu0 0.0
        %1281 = vmatprep.subr.mxu0 0.0
        %1282 = vmatpush1.msra.mxu0 0.0
        %1283 = vmatprep.subr.mxu0 0.0
        %1284 = vmatpush1.msra.mxu0 0.0
        %1285 = vmatprep.subr.mxu0 0.0
        %1286 = vmatpush1.msra.mxu0 0.0
        %1287 = vmatprep.subr.mxu0 0.0
        %1288 = vmatpush1.msra.mxu0 0.0
        %1289 = vmatprep.subr.mxu0 0.0
        %1290 = vmatpush1.msra.mxu0 0.0
        %1291 = vmatprep.subr.mxu0 0.0
        %1292 = vmatpush1.msra.mxu0 0.0
        %1293 = vmatprep.subr.mxu0 0.0
        %1294 = vmatpush1.msra.mxu0 0.0
        %1295 = vmatprep.subr.mxu0 0.0
        %1296 = vmatpush1.msra.mxu0 0.0
        %1297 = vmatprep.subr.mxu0 0.0
        %1298 = vmatpush1.msra.mxu0 0.0
        %1299 = vmatprep.subr.mxu0 0.0
        %1300 = vmatpush1.msra.mxu0 0.0
        %1301 = vmatprep.subr.mxu0 0.0
        %1302 = vmatpush1.msra.mxu0 0.0
        %1303 = vmatprep.subr.mxu0 0.0
        %1304 = vmatpush1.msra.mxu0 0.0
        %1305 = vmatprep.subr.mxu0 0.0
        %1306 = vmatpush1.msra.mxu0 0.0
        %1307 = vmatprep.subr.mxu0 0.0
        %1308 = vmatpush1.msra.mxu0 0.0
        %1309 = vmatprep.subr.mxu0 0.0
        %1310 = vmatpush1.msra.mxu0 0.0
        %1311 = vmatprep.subr.mxu0 0.0
        %1312 = vmatpush1.msra.mxu0 0.0
        %1313 = vmatprep.subr.mxu0 0.0
        %1314 = vmatpush1.msra.mxu0 0.0
        %1315 = vmatprep.subr.mxu0 0.0
        %1316 = vmatpush1.msra.mxu0 0.0
        %1317 = vmatprep.subr.mxu0 0.0
        %1318 = vmatpush1.msra.mxu0 0.0
        %1319 = vmatprep.subr.mxu0 0.0
        %1320 = vmatpush1.msra.mxu0 0.0
        %1321 = vmatprep.subr.mxu0 0.0
        %1322 = vmatpush1.msra.mxu0 0.0
        %1323 = vmatprep.subr.mxu0 0.0
        %1324 = vmatpush1.msra.mxu0 0.0
        %1325 = vmatprep.subr.mxu0 0.0
        %1326 = vmatpush1.msra.mxu0 0.0
        %1327 = vmatprep.subr.mxu0 0.0
        %1328 = vmatpush1.msra.mxu0 0.0
        %1329 = vmatprep.subr.mxu0 0.0
        %1330 = vmatpush1.msra.mxu0 0.0
        %1331 = vmatprep.subr.mxu0 0.0
        %1332 = vmatpush1.msra.mxu0 0.0
        %1333 = vmatprep.subr.mxu0 0.0
        %1334 = vmatpush1.msra.mxu0 0.0
        %1335 = vmatprep.mubr.f32.mxu0 0.0
        %1336 = vmatmul.mubr.f32.gmra.mrb[0].mxu0 %v1269
        %v1337 = vpop.f32.mrb[0].mxu0
        %v1338 = vadd.f32 0.0, %v1337
        %v1339 = vpop.f32.mrb[0].mxu0
        %1340 = vdwg.mxu0
        %v1342 = vsel %vm1172, %v1183, 0
        %1344 = vmatprep.subr.mxu0 0.0
        %1345 = vmatpush1.msra.mxu0 %v1184
        %1346 = vmatprep.subr.mxu0 0.0
        %1347 = vmatpush1.msra.mxu0 0.0
        %1348 = vmatprep.subr.mxu0 0.0
        %1349 = vmatpush1.msra.mxu0 0.0
        %1350 = vmatprep.subr.mxu0 0.0
        %1351 = vmatpush1.msra.mxu0 0.0
        %1352 = vmatprep.subr.mxu0 0.0
        %1353 = vmatpush1.msra.mxu0 0.0
        %1354 = vmatprep.subr.mxu0 0.0
        %1355 = vmatpush1.msra.mxu0 0.0
        %1356 = vmatprep.subr.mxu0 0.0
        %1357 = vmatpush1.msra.mxu0 0.0
        %1358 = vmatprep.subr.mxu0 0.0
        %1359 = vmatpush1.msra.mxu0 0.0
        %1360 = vmatprep.subr.mxu0 0.0
        %1361 = vmatpush1.msra.mxu0 0.0
        %1362 = vmatprep.subr.mxu0 0.0
        %1363 = vmatpush1.msra.mxu0 0.0
        %1364 = vmatprep.subr.mxu0 0.0
        %1365 = vmatpush1.msra.mxu0 0.0
        %1366 = vmatprep.subr.mxu0 0.0
        %1367 = vmatpush1.msra.mxu0 0.0
        %1368 = vmatprep.subr.mxu0 0.0
        %1369 = vmatpush1.msra.mxu0 0.0
        %1370 = vmatprep.subr.mxu0 0.0
        %1371 = vmatpush1.msra.mxu0 0.0
        %1372 = vmatprep.subr.mxu0 0.0
        %1373 = vmatpush1.msra.mxu0 0.0
        %1374 = vmatprep.subr.mxu0 0.0
        %1375 = vmatpush1.msra.mxu0 0.0
        %1376 = vmatprep.subr.mxu0 0.0
        %1377 = vmatpush1.msra.mxu0 0.0
        %1378 = vmatprep.subr.mxu0 0.0
        %1379 = vmatpush1.msra.mxu0 0.0
        %1380 = vmatprep.subr.mxu0 0.0
        %1381 = vmatpush1.msra.mxu0 0.0
        %1382 = vmatprep.subr.mxu0 0.0
        %1383 = vmatpush1.msra.mxu0 0.0
        %1384 = vmatprep.subr.mxu0 0.0
        %1385 = vmatpush1.msra.mxu0 0.0
        %1386 = vmatprep.subr.mxu0 0.0
        %1387 = vmatpush1.msra.mxu0 0.0
        %1388 = vmatprep.subr.mxu0 0.0
        %1389 = vmatpush1.msra.mxu0 0.0
        %1390 = vmatprep.subr.mxu0 0.0
        %1391 = vmatpush1.msra.mxu0 0.0
        %1392 = vmatprep.subr.mxu0 0.0
        %1393 = vmatpush1.msra.mxu0 0.0
        %1394 = vmatprep.subr.mxu0 0.0
        %1395 = vmatpush1.msra.mxu0 0.0
        %1396 = vmatprep.subr.mxu0 0.0
        %1397 = vmatpush1.msra.mxu0 0.0
        %1398 = vmatprep.subr.mxu0 0.0
        %1399 = vmatpush1.msra.mxu0 0.0
        %1400 = vmatprep.subr.mxu0 0.0
        %1401 = vmatpush1.msra.mxu0 0.0
        %1402 = vmatprep.subr.mxu0 0.0
        %1403 = vmatpush1.msra.mxu0 0.0
        %1404 = vmatprep.subr.mxu0 0.0
        %1405 = vmatpush1.msra.mxu0 0.0
        %1406 = vmatprep.subr.mxu0 0.0
        %1407 = vmatpush1.msra.mxu0 0.0
        %1408 = vmatprep.mubr.f32.mxu0 0.0
        %1409 = vmatmul.mubr.f32.gmra.mrb[0].mxu0 %v1342
        %v1410 = vpop.f32.mrb[0].mxu0
        %v1411 = vadd.f32 %v1338, %v1410
        %v1412 = vpop.f32.mrb[0].mxu0
        %1413 = vdwg.mxu0
        %v1414 = vld [vmem:[#allocation5] sm:$0xff]
        %v1415 = vld [vmem:[#allocation5 + $0x8] sm:$0xff]
        %v1416 = vld [vmem:[#allocation5 + $0x10] sm:$0xff]
        %v1417 = vld [vmem:[#allocation5 + $0x18] sm:$0xff]
        %v1418 = vld [vmem:[#allocation5 + $0x20] sm:$0xff]
        %v1419 = vld [vmem:[#allocation5 + $0x28] sm:$0xff]
        %v1420 = vld [vmem:[#allocation5 + $0x30] sm:$0xff]
        %v1421 = vld [vmem:[#allocation5 + $0x38] sm:$0xff]
        %v1422 = vld [vmem:[#allocation5 + $0x40] sm:$0xff]
        %v1423 = vld [vmem:[#allocation5 + $0x48] sm:$0xff]
        %v1424 = vld [vmem:[#allocation5 + $0x50] sm:$0xff]
        %v1425 = vld [vmem:[#allocation5 + $0x58] sm:$0xff]
        %v1426 = vld [vmem:[#allocation5 + $0x60] sm:$0xff]
        %v1427 = vld [vmem:[#allocation5 + $0x68] sm:$0xff]
        %v1428 = vld [vmem:[#allocation5 + $0x70] sm:$0xff]
        %v1429 = vld [vmem:[#allocation5 + $0x78] sm:$0xff]
        %v1430 = vld [vmem:[%s8] sm:$0x1]
        %v1432 = vlaneseq
        %v1433 = vshrl.u32 %v1432, 7
        %v1434 = vsub.s32 0, %v1433
        %v1435 = vrot.slane %v1430, %v1434
        %1437 = vmatprep.subr.mxu0 0.0
        %1438 = vmatpush1.msra.mxu0 %v1414
        %1439 = vmatprep.subr.mxu0 0.0
        %1440 = vmatpush1.msra.mxu0 %v1415
        %1441 = vmatprep.subr.mxu0 0.0
        %1442 = vmatpush1.msra.mxu0 %v1416
        %1443 = vmatprep.subr.mxu0 0.0
        %1444 = vmatpush1.msra.mxu0 %v1417
        %1445 = vmatprep.subr.mxu0 0.0
        %1446 = vmatpush1.msra.mxu0 %v1418
        %1447 = vmatprep.subr.mxu0 0.0
        %1448 = vmatpush1.msra.mxu0 %v1419
        %1449 = vmatprep.subr.mxu0 0.0
        %1450 = vmatpush1.msra.mxu0 %v1420
        %1451 = vmatprep.subr.mxu0 0.0
        %1452 = vmatpush1.msra.mxu0 %v1421
        %1453 = vmatprep.subr.mxu0 0.0
        %1454 = vmatpush1.msra.mxu0 %v1422
        %1455 = vmatprep.subr.mxu0 0.0
        %1456 = vmatpush1.msra.mxu0 %v1423
        %1457 = vmatprep.subr.mxu0 0.0
        %1458 = vmatpush1.msra.mxu0 %v1424
        %1459 = vmatprep.subr.mxu0 0.0
        %1460 = vmatpush1.msra.mxu0 %v1425
        %1461 = vmatprep.subr.mxu0 0.0
        %1462 = vmatpush1.msra.mxu0 %v1426
        %1463 = vmatprep.subr.mxu0 0.0
        %1464 = vmatpush1.msra.mxu0 %v1427
        %1465 = vmatprep.subr.mxu0 0.0
        %1466 = vmatpush1.msra.mxu0 %v1428
        %1467 = vmatprep.subr.mxu0 0.0
        %1468 = vmatpush1.msra.mxu0 %v1429
        %1469 = vmatprep.subr.mxu0 0.0
        %1470 = vmatpush1.msra.mxu0 0.0
        %1471 = vmatprep.subr.mxu0 0.0
        %1472 = vmatpush1.msra.mxu0 0.0
        %1473 = vmatprep.subr.mxu0 0.0
        %1474 = vmatpush1.msra.mxu0 0.0
        %1475 = vmatprep.subr.mxu0 0.0
        %1476 = vmatpush1.msra.mxu0 0.0
        %1477 = vmatprep.subr.mxu0 0.0
        %1478 = vmatpush1.msra.mxu0 0.0
        %1479 = vmatprep.subr.mxu0 0.0
        %1480 = vmatpush1.msra.mxu0 0.0
        %1481 = vmatprep.subr.mxu0 0.0
        %1482 = vmatpush1.msra.mxu0 0.0
        %1483 = vmatprep.subr.mxu0 0.0
        %1484 = vmatpush1.msra.mxu0 0.0
        %1485 = vmatprep.subr.mxu0 0.0
        %1486 = vmatpush1.msra.mxu0 0.0
        %1487 = vmatprep.subr.mxu0 0.0
        %1488 = vmatpush1.msra.mxu0 0.0
        %1489 = vmatprep.subr.mxu0 0.0
        %1490 = vmatpush1.msra.mxu0 0.0
        %1491 = vmatprep.subr.mxu0 0.0
        %1492 = vmatpush1.msra.mxu0 0.0
        %1493 = vmatprep.subr.mxu0 0.0
        %1494 = vmatpush1.msra.mxu0 0.0
        %1495 = vmatprep.subr.mxu0 0.0
        %1496 = vmatpush1.msra.mxu0 0.0
        %1497 = vmatprep.subr.mxu0 0.0
        %1498 = vmatpush1.msra.mxu0 0.0
        %1499 = vmatprep.subr.mxu0 0.0
        %1500 = vmatpush1.msra.mxu0 0.0
        %1501 = vmatprep.mubr.f32.mxu0 0.0
        %1502 = vmatmul.mubr.f32.gmra.mrb[0].mxu0 %v1411
        %v1503 = vpop.f32.mrb[0].mxu0
        %v1504 = vadd.f32 %v1435, %v1503
        %v1505 = vpop.f32.mrb[0].mxu0
        %1506 = vdwg.mxu0
        %v1507 = vadd.f32 %v1504, %v875
        %v1508 = vld [vmem:[%s9] sm:$0x1]
        %v1509 = vld [vmem:[%s10] sm:$0x1]
        %1510 = vadd.xlane.f32.xlu0 %v1507
        %v1511 = vpop.xlane.xlu0 %1510
        %v1512 = vmul.f32 %v1511, %v852
        %v1513 = vsub.f32 %v1507, %v1512
        %v1514 = vmul.f32 %v1513, %v1513
        %1515 = vadd.xlane.f32.xlu0 %v1514
        %v1516 = vpop.xlane.xlu0 %1515
        %v1517 = vmul.f32 %v1516, %v852
        %v1518 = vadd.f32 %v1517, 1e-12
        %v1519 = vrsqrt.pop %v1518
        %v1520 = vmul.f32 %v1513, %v1519
        %v1522 = vlaneseq
        %v1523 = vshrl.u32 %v1522, 7
        %v1524 = vsub.s32 0, %v1523
        %v1525 = vrot.slane %v1508, %v1524
        %v1527 = vmul.f32 %v1520, %v1525
        %v1529 = vlaneseq
        %v1530 = vshrl.u32 %v1529, 7
        %v1531 = vsub.s32 0, %v1530
        %v1532 = vrot.slane %v1509, %v1531
        %v1534 = vadd.f32 %v1527, %v1532
        %v1535 = vld [vmem:[#allocation7] sm:$0xff]
        %v1536 = vld [vmem:[#allocation7 + $0x8] sm:$0xff]
        %v1537 = vld [vmem:[#allocation7 + $0x10] sm:$0xff]
        %v1538 = vld [vmem:[#allocation7 + $0x18] sm:$0xff]
        %v1539 = vld [vmem:[#allocation7 + $0x20] sm:$0xff]
        %v1540 = vld [vmem:[#allocation7 + $0x28] sm:$0xff]
        %v1541 = vld [vmem:[#allocation7 + $0x30] sm:$0xff]
        %v1542 = vld [vmem:[#allocation7 + $0x38] sm:$0xff]
        %v1543 = vld [vmem:[#allocation7 + $0x40] sm:$0xff]
        %v1544 = vld [vmem:[#allocation7 + $0x48] sm:$0xff]
        %v1545 = vld [vmem:[#allocation7 + $0x50] sm:$0xff]
        %v1546 = vld [vmem:[#allocation7 + $0x58] sm:$0xff]
        %v1547 = vld [vmem:[#allocation7 + $0x60] sm:$0xff]
        %v1548 = vld [vmem:[#allocation7 + $0x68] sm:$0xff]
        %v1549 = vld [vmem:[#allocation7 + $0x70] sm:$0xff]
        %v1550 = vld [vmem:[#allocation7 + $0x78] sm:$0xff]
        %v1551 = vld [vmem:[#allocation7 + $0x80] sm:$0xff]
        %v1552 = vld [vmem:[#allocation7 + $0x88] sm:$0xff]
        %v1553 = vld [vmem:[#allocation7 + $0x90] sm:$0xff]
        %v1554 = vld [vmem:[#allocation7 + $0x98] sm:$0xff]
        %v1555 = vld [vmem:[#allocation7 + $0xa0] sm:$0xff]
        %v1556 = vld [vmem:[#allocation7 + $0xa8] sm:$0xff]
        %v1557 = vld [vmem:[#allocation7 + $0xb0] sm:$0xff]
        %v1558 = vld [vmem:[#allocation7 + $0xb8] sm:$0xff]
        %v1559 = vld [vmem:[#allocation7 + $0xc0] sm:$0xff]
        %v1560 = vld [vmem:[#allocation7 + $0xc8] sm:$0xff]
        %v1561 = vld [vmem:[#allocation7 + $0xd0] sm:$0xff]
        %v1562 = vld [vmem:[#allocation7 + $0xd8] sm:$0xff]
        %v1563 = vld [vmem:[#allocation7 + $0xe0] sm:$0xff]
        %v1564 = vld [vmem:[#allocation7 + $0xe8] sm:$0xff]
        %v1565 = vld [vmem:[#allocation7 + $0xf0] sm:$0xff]
        %v1566 = vld [vmem:[#allocation7 + $0xf8] sm:$0xff]
        %v1567 = vld [vmem:[%s12] sm:$0x3]
        %v1569 = vlaneseq
        %v1570 = vshrl.u32 %v1569, 7
        %v1571 = vsub.s32 0, %v1570
        %v1572 = vrot.slane %v1567, %v1571
        %v1573 = vlaneseq
        %v1574 = vshrl.u32 %v1573, 7
        %v1575 = vsub.s32 1, %v1574
        %v1576 = vrot.slane %v1567, %v1575
        %1579 = vmatprep.subr.mxu0 %v1536
        %1580 = vmatpush1.msra.mxu0 %v1535
        %1581 = vmatprep.subr.mxu0 %v1538
        %1582 = vmatpush1.msra.mxu0 %v1537
        %1583 = vmatprep.subr.mxu0 %v1540
        %1584 = vmatpush1.msra.mxu0 %v1539
        %1585 = vmatprep.subr.mxu0 %v1542
        %1586 = vmatpush1.msra.mxu0 %v1541
        %1587 = vmatprep.subr.mxu0 %v1544
        %1588 = vmatpush1.msra.mxu0 %v1543
        %1589 = vmatprep.subr.mxu0 %v1546
        %1590 = vmatpush1.msra.mxu0 %v1545
        %1591 = vmatprep.subr.mxu0 %v1548
        %1592 = vmatpush1.msra.mxu0 %v1547
        %1593 = vmatprep.subr.mxu0 %v1550
        %1594 = vmatpush1.msra.mxu0 %v1549
        %1595 = vmatprep.subr.mxu0 %v1552
        %1596 = vmatpush1.msra.mxu0 %v1551
        %1597 = vmatprep.subr.mxu0 %v1554
        %1598 = vmatpush1.msra.mxu0 %v1553
        %1599 = vmatprep.subr.mxu0 %v1556
        %1600 = vmatpush1.msra.mxu0 %v1555
        %1601 = vmatprep.subr.mxu0 %v1558
        %1602 = vmatpush1.msra.mxu0 %v1557
        %1603 = vmatprep.subr.mxu0 %v1560
        %1604 = vmatpush1.msra.mxu0 %v1559
        %1605 = vmatprep.subr.mxu0 %v1562
        %1606 = vmatpush1.msra.mxu0 %v1561
        %1607 = vmatprep.subr.mxu0 %v1564
        %1608 = vmatpush1.msra.mxu0 %v1563
        %1609 = vmatprep.subr.mxu0 %v1566
        %1610 = vmatpush1.msra.mxu0 %v1565
        %1611 = vmatprep.subr.mxu0 0.0
        %1612 = vmatpush1.msra.mxu0 0.0
        %1613 = vmatprep.subr.mxu0 0.0
        %1614 = vmatpush1.msra.mxu0 0.0
        %1615 = vmatprep.subr.mxu0 0.0
        %1616 = vmatpush1.msra.mxu0 0.0
        %1617 = vmatprep.subr.mxu0 0.0
        %1618 = vmatpush1.msra.mxu0 0.0
        %1619 = vmatprep.subr.mxu0 0.0
        %1620 = vmatpush1.msra.mxu0 0.0
        %1621 = vmatprep.subr.mxu0 0.0
        %1622 = vmatpush1.msra.mxu0 0.0
        %1623 = vmatprep.subr.mxu0 0.0
        %1624 = vmatpush1.msra.mxu0 0.0
        %1625 = vmatprep.subr.mxu0 0.0
        %1626 = vmatpush1.msra.mxu0 0.0
        %1627 = vmatprep.subr.mxu0 0.0
        %1628 = vmatpush1.msra.mxu0 0.0
        %1629 = vmatprep.subr.mxu0 0.0
        %1630 = vmatpush1.msra.mxu0 0.0
        %1631 = vmatprep.subr.mxu0 0.0
        %1632 = vmatpush1.msra.mxu0 0.0
        %1633 = vmatprep.subr.mxu0 0.0
        %1634 = vmatpush1.msra.mxu0 0.0
        %1635 = vmatprep.subr.mxu0 0.0
        %1636 = vmatpush1.msra.mxu0 0.0
        %1637 = vmatprep.subr.mxu0 0.0
        %1638 = vmatpush1.msra.mxu0 0.0
        %1639 = vmatprep.subr.mxu0 0.0
        %1640 = vmatpush1.msra.mxu0 0.0
        %1641 = vmatprep.subr.mxu0 0.0
        %1642 = vmatpush1.msra.mxu0 0.0
        %1643 = vmatprep.mubr.f32.mxu0 0.0
        %1644 = vmatmul.mubr.f32.gmra.mrb[0].mxu0 %v1534
        %v1645 = vpop.f32.mrb[0].mxu0
        %v1646 = vadd.f32 %v1572, %v1645
        %v1647 = vpop.f32.mrb[0].mxu0
        %v1648 = vadd.f32 %v1576, %v1647
        %1649 = vdwg.mxu0
        %v1650 = vmul.f32 %v1646, 0.5
        %v1651 = vmul.f32 %v1648, 0.5
        %v1652 = vmul.f32 %v1646, 0.70710677
        %v1653 = vmul.f32 %v1648, 0.70710677
        %vm1654 = vcmp.ge.f32.partialorder %v1652, 0.0
        %vm1655 = vcmp.ge.f32.partialorder %v1653, 0.0
        %v1656 = vsel %vm1654, 1.0, -1.0
        %v1657 = vsel %vm1655, 1.0, -1.0
        %v1658 = vand.u32 2147483647, %v1652
        %v1659 = vand.u32 2147483647, %v1653
        %v1660 = vmul.f32 %v1658, 0.3275911
        %v1661 = vmul.f32 %v1659, 0.3275911
        %v1662 = vadd.f32 %v1660, 1.0
        %v1663 = vadd.f32 %v1661, 1.0
        %v1664 = vrcp.pop %v1662
        %v1665 = vmul.f32 1.0, %v1664
        %v1666 = vrcp.pop %v1663
        %v1667 = vmul.f32 1.0, %v1666
        %v1668 = vmul.f32 %v1665, 1.0614054
        %v1669 = vmul.f32 %v1667, 1.0614054
        %v1670 = vadd.f32 %v1668, -1.4531521
        %v1671 = vadd.f32 %v1669, -1.4531521
        %v1672 = vmul.f32 %v1670, %v1665
        %v1673 = vmul.f32 %v1671, %v1667
        %v1674 = vadd.f32 %v1672, 1.4214138
        %v1675 = vadd.f32 %v1673, 1.4214138
        %v1676 = vmul.f32 %v1674, %v1665
        %v1677 = vmul.f32 %v1675, %v1667
        %v1678 = vadd.f32 %v1676, -0.28449672
        %v1679 = vadd.f32 %v1677, -0.28449672
        %v1680 = vmul.f32 %v1678, %v1665
        %v1681 = vmul.f32 %v1679, %v1667
        %v1682 = vadd.f32 %v1680, 0.2548296
        %v1683 = vadd.f32 %v1681, 0.2548296
        %v1684 = vmul.f32 %v1682, %v1665
        %v1685 = vmul.f32 %v1683, %v1667
        %v1686 = vsub.f32 0.0, %v1658
        %v1687 = vsub.f32 0.0, %v1659
        %v1688 = vmul.f32 %v1686, %v1658
        %v1689 = vmul.f32 %v1687, %v1659
        %v1690 = vmul.f32 %v1688, 1.442695
        %v1691 = vpow.pop %v1690
        %v1692 = vmul.f32 %v1689, 1.442695
        %v1693 = vpow.pop %v1692
        %v1694 = vmul.f32 %v1684, %v1691
        %v1695 = vmul.f32 %v1685, %v1693
        %v1696 = vsub.f32 1.0, %v1694
        %v1697 = vsub.f32 1.0, %v1695
        %v1698 = vmul.f32 %v1656, %v1696
        %v1699 = vmul.f32 %v1657, %v1697
        %v1700 = vadd.f32 %v1698, 1.0
        %v1701 = vadd.f32 %v1699, 1.0
        %v1702 = vmul.f32 %v1650, %v1700
        %v1703 = vmul.f32 %v1651, %v1701
        %v1704 = vld [vmem:[#allocation8] sm:$0xff]
        %v1705 = vld [vmem:[#allocation8 + $0x8] sm:$0xff]
        %v1706 = vld [vmem:[#allocation8 + $0x10] sm:$0xff]
        %v1707 = vld [vmem:[#allocation8 + $0x18] sm:$0xff]
        %v1708 = vld [vmem:[#allocation8 + $0x20] sm:$0xff]
        %v1709 = vld [vmem:[#allocation8 + $0x28] sm:$0xff]
        %v1710 = vld [vmem:[#allocation8 + $0x30] sm:$0xff]
        %v1711 = vld [vmem:[#allocation8 + $0x38] sm:$0xff]
        %v1712 = vld [vmem:[#allocation8 + $0x40] sm:$0xff]
        %v1713 = vld [vmem:[#allocation8 + $0x48] sm:$0xff]
        %v1714 = vld [vmem:[#allocation8 + $0x50] sm:$0xff]
        %v1715 = vld [vmem:[#allocation8 + $0x58] sm:$0xff]
        %v1716 = vld [vmem:[#allocation8 + $0x60] sm:$0xff]
        %v1717 = vld [vmem:[#allocation8 + $0x68] sm:$0xff]
        %v1718 = vld [vmem:[#allocation8 + $0x70] sm:$0xff]
        %v1719 = vld [vmem:[#allocation8 + $0x78] sm:$0xff]
        %v1720 = vld [vmem:[#allocation8 + $0x80] sm:$0xff]
        %v1721 = vld [vmem:[#allocation8 + $0x88] sm:$0xff]
        %v1722 = vld [vmem:[#allocation8 + $0x90] sm:$0xff]
        %v1723 = vld [vmem:[#allocation8 + $0x98] sm:$0xff]
        %v1724 = vld [vmem:[#allocation8 + $0xa0] sm:$0xff]
        %v1725 = vld [vmem:[#allocation8 + $0xa8] sm:$0xff]
        %v1726 = vld [vmem:[#allocation8 + $0xb0] sm:$0xff]
        %v1727 = vld [vmem:[#allocation8 + $0xb8] sm:$0xff]
        %v1728 = vld [vmem:[#allocation8 + $0xc0] sm:$0xff]
        %v1729 = vld [vmem:[#allocation8 + $0xc8] sm:$0xff]
        %v1730 = vld [vmem:[#allocation8 + $0xd0] sm:$0xff]
        %v1731 = vld [vmem:[#allocation8 + $0xd8] sm:$0xff]
        %v1732 = vld [vmem:[#allocation8 + $0xe0] sm:$0xff]
        %v1733 = vld [vmem:[#allocation8 + $0xe8] sm:$0xff]
        %v1734 = vld [vmem:[#allocation8 + $0xf0] sm:$0xff]
        %v1735 = vld [vmem:[#allocation8 + $0xf8] sm:$0xff]
        %v1736 = vld [vmem:[%s14] sm:$0x1]
        %v1738 = vlaneseq
        %v1739 = vshrl.u32 %v1738, 7
        %v1740 = vsub.s32 0, %v1739
        %v1741 = vrot.slane %v1736, %v1740
        %1743 = vmatprep.subr.mxu0 0.0
        %1744 = vmatpush1.msra.mxu0 %v1704
        %1745 = vmatprep.subr.mxu0 0.0
        %1746 = vmatpush1.msra.mxu0 %v1705
        %1747 = vmatprep.subr.mxu0 0.0
        %1748 = vmatpush1.msra.mxu0 %v1706
        %1749 = vmatprep.subr.mxu0 0.0
        %1750 = vmatpush1.msra.mxu0 %v1707
        %1751 = vmatprep.subr.mxu0 0.0
        %1752 = vmatpush1.msra.mxu0 %v1708
        %1753 = vmatprep.subr.mxu0 0.0
        %1754 = vmatpush1.msra.mxu0 %v1709
        %1755 = vmatprep.subr.mxu0 0.0
        %1756 = vmatpush1.msra.mxu0 %v1710
        %1757 = vmatprep.subr.mxu0 0.0
        %1758 = vmatpush1.msra.mxu0 %v1711
        %1759 = vmatprep.subr.mxu0 0.0
        %1760 = vmatpush1.msra.mxu0 %v1712
        %1761 = vmatprep.subr.mxu0 0.0
        %1762 = vmatpush1.msra.mxu0 %v1713
        %1763 = vmatprep.subr.mxu0 0.0
        %1764 = vmatpush1.msra.mxu0 %v1714
        %1765 = vmatprep.subr.mxu0 0.0
        %1766 = vmatpush1.msra.mxu0 %v1715
        %1767 = vmatprep.subr.mxu0 0.0
        %1768 = vmatpush1.msra.mxu0 %v1716
        %1769 = vmatprep.subr.mxu0 0.0
        %1770 = vmatpush1.msra.mxu0 %v1717
        %1771 = vmatprep.subr.mxu0 0.0
        %1772 = vmatpush1.msra.mxu0 %v1718
        %1773 = vmatprep.subr.mxu0 0.0
        %1774 = vmatpush1.msra.mxu0 %v1719
        %1775 = vmatprep.subr.mxu0 0.0
        %1776 = vmatpush1.msra.mxu0 %v1720
        %1777 = vmatprep.subr.mxu0 0.0
        %1778 = vmatpush1.msra.mxu0 %v1721
        %1779 = vmatprep.subr.mxu0 0.0
        %1780 = vmatpush1.msra.mxu0 %v1722
        %1781 = vmatprep.subr.mxu0 0.0
        %1782 = vmatpush1.msra.mxu0 %v1723
        %1783 = vmatprep.subr.mxu0 0.0
        %1784 = vmatpush1.msra.mxu0 %v1724
        %1785 = vmatprep.subr.mxu0 0.0
        %1786 = vmatpush1.msra.mxu0 %v1725
        %1787 = vmatprep.subr.mxu0 0.0
        %1788 = vmatpush1.msra.mxu0 %v1726
        %1789 = vmatprep.subr.mxu0 0.0
        %1790 = vmatpush1.msra.mxu0 %v1727
        %1791 = vmatprep.subr.mxu0 0.0
        %1792 = vmatpush1.msra.mxu0 %v1728
        %1793 = vmatprep.subr.mxu0 0.0
        %1794 = vmatpush1.msra.mxu0 %v1729
        %1795 = vmatprep.subr.mxu0 0.0
        %1796 = vmatpush1.msra.mxu0 %v1730
        %1797 = vmatprep.subr.mxu0 0.0
        %1798 = vmatpush1.msra.mxu0 %v1731
        %1799 = vmatprep.subr.mxu0 0.0
        %1800 = vmatpush1.msra.mxu0 %v1732
        %1801 = vmatprep.subr.mxu0 0.0
        %1802 = vmatpush1.msra.mxu0 %v1733
        %1803 = vmatprep.subr.mxu0 0.0
        %1804 = vmatpush1.msra.mxu0 %v1734
        %1805 = vmatprep.subr.mxu0 0.0
        %1806 = vmatpush1.msra.mxu0 %v1735
        %1807 = vmatprep.mubr.f32.mxu0 %v1703
        %1808 = vmatmul.mubr.f32.gmra.mrb[0].mxu0 %v1702
        %v1809 = vpop.f32.mrb[0].mxu0
        %v1810 = vadd.f32 %v1741, %v1809
        %v1811 = vpop.f32.mrb[0].mxu0
        %1812 = vdwg.mxu0
        %v1813 = vadd.f32 %v1810, %v1534
        %v1814 = vld [vmem:[%s15] sm:$0x1]
        %v1815 = vld [vmem:[%s16] sm:$0x1]
        %1816 = vadd.xlane.f32.xlu0 %v1813
        %v1817 = vpop.xlane.xlu0 %1816
        %v1818 = vmul.f32 %v1817, %v852
        %v1819 = vsub.f32 %v1813, %v1818
        %v1820 = vmul.f32 %v1819, %v1819
        %1821 = vadd.xlane.f32.xlu0 %v1820
        %v1822 = vpop.xlane.xlu0 %1821
        %v1823 = vmul.f32 %v1822, %v852
        %v1824 = vadd.f32 %v1823, 1e-12
        %v1825 = vrsqrt.pop %v1824
        %v1826 = vmul.f32 %v1819, %v1825
        %v1828 = vlaneseq
        %v1829 = vshrl.u32 %v1828, 7
        %v1830 = vsub.s32 0, %v1829
        %v1831 = vrot.slane %v1814, %v1830
        %v1833 = vmul.f32 %v1826, %v1831
        %v1835 = vlaneseq
        %v1836 = vshrl.u32 %v1835, 7
        %v1837 = vsub.s32 0, %v1836
        %v1838 = vrot.slane %v1815, %v1837
        %v1840 = vadd.f32 %v1833, %v1838
        %s1841 = scalar_lea.vmem [#allocation2], 384
        %v1842 = vld [vmem:[%s1841] sm:$0xff]
        %v1843 = vld [vmem:[%s1841 + $0x8] sm:$0xff]
        %v1844 = vld [vmem:[%s1841 + $0x10] sm:$0xff]
        %v1845 = vld [vmem:[%s1841 + $0x18] sm:$0xff]
        %v1846 = vld [vmem:[%s1841 + $0x20] sm:$0xff]
        %v1847 = vld [vmem:[%s1841 + $0x28] sm:$0xff]
        %v1848 = vld [vmem:[%s1841 + $0x30] sm:$0xff]
        %v1849 = vld [vmem:[%s1841 + $0x38] sm:$0xff]
        %v1850 = vld [vmem:[%s1841 + $0x40] sm:$0xff]
        %v1851 = vld [vmem:[%s1841 + $0x48] sm:$0xff]
        %v1852 = vld [vmem:[%s1841 + $0x50] sm:$0xff]
        %v1853 = vld [vmem:[%s1841 + $0x58] sm:$0xff]
        %v1854 = vld [vmem:[%s1841 + $0x60] sm:$0xff]
        %v1855 = vld [vmem:[%s1841 + $0x68] sm:$0xff]
        %v1856 = vld [vmem:[%s1841 + $0x70] sm:$0xff]
        %v1857 = vld [vmem:[%s1841 + $0x78] sm:$0xff]
        %v1858 = vld [vmem:[%s1841 + $0x80] sm:$0xff]
        %v1859 = vld [vmem:[%s1841 + $0x88] sm:$0xff]
        %v1860 = vld [vmem:[%s1841 + $0x90] sm:$0xff]
        %v1861 = vld [vmem:[%s1841 + $0x98] sm:$0xff]
        %v1862 = vld [vmem:[%s1841 + $0xa0] sm:$0xff]
        %v1863 = vld [vmem:[%s1841 + $0xa8] sm:$0xff]
        %v1864 = vld [vmem:[%s1841 + $0xb0] sm:$0xff]
        %v1865 = vld [vmem:[%s1841 + $0xb8] sm:$0xff]
        %v1866 = vld [vmem:[%s1841 + $0xc0] sm:$0xff]
        %v1867 = vld [vmem:[%s1841 + $0xc8] sm:$0xff]
        %v1868 = vld [vmem:[%s1841 + $0xd0] sm:$0xff]
        %v1869 = vld [vmem:[%s1841 + $0xd8] sm:$0xff]
        %v1870 = vld [vmem:[%s1841 + $0xe0] sm:$0xff]
        %v1871 = vld [vmem:[%s1841 + $0xe8] sm:$0xff]
        %v1872 = vld [vmem:[%s1841 + $0xf0] sm:$0xff]
        %v1873 = vld [vmem:[%s1841 + $0xf8] sm:$0xff]
        %v1874 = vld [vmem:[%s1841 + $0x100] sm:$0xff]
        %v1875 = vld [vmem:[%s1841 + $0x108] sm:$0xff]
        %v1876 = vld [vmem:[%s1841 + $0x110] sm:$0xff]
        %v1877 = vld [vmem:[%s1841 + $0x118] sm:$0xff]
        %v1878 = vld [vmem:[%s1841 + $0x120] sm:$0xff]
        %v1879 = vld [vmem:[%s1841 + $0x128] sm:$0xff]
        %v1880 = vld [vmem:[%s1841 + $0x130] sm:$0xff]
        %v1881 = vld [vmem:[%s1841 + $0x138] sm:$0xff]
        %v1882 = vld [vmem:[%s1841 + $0x140] sm:$0xff]
        %v1883 = vld [vmem:[%s1841 + $0x148] sm:$0xff]
        %v1884 = vld [vmem:[%s1841 + $0x150] sm:$0xff]
        %v1885 = vld [vmem:[%s1841 + $0x158] sm:$0xff]
        %v1886 = vld [vmem:[%s1841 + $0x160] sm:$0xff]
        %v1887 = vld [vmem:[%s1841 + $0x168] sm:$0xff]
        %v1888 = vld [vmem:[%s1841 + $0x170] sm:$0xff]
        %v1889 = vld [vmem:[%s1841 + $0x178] sm:$0xff]
        %s1890 = scalar_lea.vmem %s6, 3
        %v1891 = vld [vmem:[%s1890] sm:$0x7]
        %v1893 = vlaneseq
        %v1894 = vshrl.u32 %v1893, 7
        %v1895 = vsub.s32 0, %v1894
        %v1896 = vrot.slane %v1891, %v1895
        %v1897 = vlaneseq
        %v1898 = vshrl.u32 %v1897, 7
        %v1899 = vsub.s32 1, %v1898
        %v1900 = vrot.slane %v1891, %v1899
        %v1901 = vlaneseq
        %v1902 = vshrl.u32 %v1901, 7
        %v1903 = vsub.s32 2, %v1902
        %v1904 = vrot.slane %v1891, %v1903
        %1908 = vmatprep.subr.mxu0 %v1843
        %1909 = vmatpush1.msra.mxu0 %v1842
        %1910 = vmatprep.subr.mxu0 %v1846
        %1911 = vmatpush1.msra.mxu0 %v1845
        %1912 = vmatprep.subr.mxu0 %v1849
        %1913 = vmatpush1.msra.mxu0 %v1848
        %1914 = vmatprep.subr.mxu0 %v1852
        %1915 = vmatpush1.msra.mxu0 %v1851
        %1916 = vmatprep.subr.mxu0 %v1855
        %1917 = vmatpush1.msra.mxu0 %v1854
        %1918 = vmatprep.subr.mxu0 %v1858
        %1919 = vmatpush1.msra.mxu0 %v1857
        %1920 = vmatprep.subr.mxu0 %v1861
        %1921 = vmatpush1.msra.mxu0 %v1860
        %1922 = vmatprep.subr.mxu0 %v1864
        %1923 = vmatpush1.msra.mxu0 %v1863
        %1924 = vmatprep.subr.mxu0 %v1867
        %1925 = vmatpush1.msra.mxu0 %v1866
        %1926 = vmatprep.subr.mxu0 %v1870
        %1927 = vmatpush1.msra.mxu0 %v1869
        %1928 = vmatprep.subr.mxu0 %v1873
        %1929 = vmatpush1.msra.mxu0 %v1872
        %1930 = vmatprep.subr.mxu0 %v1876
        %1931 = vmatpush1.msra.mxu0 %v1875
        %1932 = vmatprep.subr.mxu0 %v1879
        %1933 = vmatpush1.msra.mxu0 %v1878
        %1934 = vmatprep.subr.mxu0 %v1882
        %1935 = vmatpush1.msra.mxu0 %v1881
        %1936 = vmatprep.subr.mxu0 %v1885
        %1937 = vmatpush1.msra.mxu0 %v1884
        %1938 = vmatprep.subr.mxu0 %v1888
        %1939 = vmatpush1.msra.mxu0 %v1887
        %1940 = vmatprep.subr.mxu0 0.0
        %1941 = vmatpush1.msra.mxu0 0.0
        %1942 = vmatprep.subr.mxu0 0.0
        %1943 = vmatpush1.msra.mxu0 0.0
        %1944 = vmatprep.subr.mxu0 0.0
        %1945 = vmatpush1.msra.mxu0 0.0
        %1946 = vmatprep.subr.mxu0 0.0
        %1947 = vmatpush1.msra.mxu0 0.0
        %1948 = vmatprep.subr.mxu0 0.0
        %1949 = vmatpush1.msra.mxu0 0.0
        %1950 = vmatprep.subr.mxu0 0.0
        %1951 = vmatpush1.msra.mxu0 0.0
        %1952 = vmatprep.subr.mxu0 0.0
        %1953 = vmatpush1.msra.mxu0 0.0
        %1954 = vmatprep.subr.mxu0 0.0
        %1955 = vmatpush1.msra.mxu0 0.0
        %1956 = vmatprep.subr.mxu0 0.0
        %1957 = vmatpush1.msra.mxu0 0.0
        %1958 = vmatprep.subr.mxu0 0.0
        %1959 = vmatpush1.msra.mxu0 0.0
        %1960 = vmatprep.subr.mxu0 0.0
        %1961 = vmatpush1.msra.mxu0 0.0
        %1962 = vmatprep.subr.mxu0 0.0
        %1963 = vmatpush1.msra.mxu0 0.0
        %1964 = vmatprep.subr.mxu0 0.0
        %1965 = vmatpush1.msra.mxu0 0.0
        %1966 = vmatprep.subr.mxu0 0.0
        %1967 = vmatpush1.msra.mxu0 0.0
        %1968 = vmatprep.subr.mxu0 0.0
        %1969 = vmatpush1.msra.mxu0 0.0
        %1970 = vmatprep.subr.mxu0 0.0
        %1971 = vmatpush1.msra.mxu0 0.0
        %1972 = vmatprep.mubr.f32.mxu0 0.0
        %1973 = vmatmul.mubr.f32.gmra.mrb[0].mxu0 %v1840
        %v1974 = vpop.f32.mrb[0].mxu0
        %v1975 = vadd.f32 %v1896, %v1974
        %v1976 = vpop.f32.mrb[0].mxu0
        %v1977 = vadd.f32 %v1900, %v1976
        %1978 = vdwg.mxu0
        %1979 = vmatprep.subr.mxu0 0.0
        %1980 = vmatpush1.msra.mxu0 %v1844
        %1981 = vmatprep.subr.mxu0 0.0
        %1982 = vmatpush1.msra.mxu0 %v1847
        %1983 = vmatprep.subr.mxu0 0.0
        %1984 = vmatpush1.msra.mxu0 %v1850
        %1985 = vmatprep.subr.mxu0 0.0
        %1986 = vmatpush1.msra.mxu0 %v1853
        %1987 = vmatprep.subr.mxu0 0.0
        %1988 = vmatpush1.msra.mxu0 %v1856
        %1989 = vmatprep.subr.mxu0 0.0
        %1990 = vmatpush1.msra.mxu0 %v1859
        %1991 = vmatprep.subr.mxu0 0.0
        %1992 = vmatpush1.msra.mxu0 %v1862
        %1993 = vmatprep.subr.mxu0 0.0
        %1994 = vmatpush1.msra.mxu0 %v1865
        %1995 = vmatprep.subr.mxu0 0.0
        %1996 = vmatpush1.msra.mxu0 %v1868
        %1997 = vmatprep.subr.mxu0 0.0
        %1998 = vmatpush1.msra.mxu0 %v1871
        %1999 = vmatprep.subr.mxu0 0.0
        %2000 = vmatpush1.msra.mxu0 %v1874
        %2001 = vmatprep.subr.mxu0 0.0
        %2002 = vmatpush1.msra.mxu0 %v1877
        %2003 = vmatprep.subr.mxu0 0.0
        %2004 = vmatpush1.msra.mxu0 %v1880
        %2005 = vmatprep.subr.mxu0 0.0
        %2006 = vmatpush1.msra.mxu0 %v1883
        %2007 = vmatprep.subr.mxu0 0.0
        %2008 = vmatpush1.msra.mxu0 %v1886
        %2009 = vmatprep.subr.mxu0 0.0
        %2010 = vmatpush1.msra.mxu0 %v1889
        %2011 = vmatprep.subr.mxu0 0.0
        %2012 = vmatpush1.msra.mxu0 0.0
        %2013 = vmatprep.subr.mxu0 0.0
        %2014 = vmatpush1.msra.mxu0 0.0
        %2015 = vmatprep.subr.mxu0 0.0
        %2016 = vmatpush1.msra.mxu0 0.0
        %2017 = vmatprep.subr.mxu0 0.0
        %2018 = vmatpush1.msra.mxu0 0.0
        %2019 = vmatprep.subr.mxu0 0.0
        %2020 = vmatpush1.msra.mxu0 0.0
        %2021 = vmatprep.subr.mxu0 0.0
        %2022 = vmatpush1.msra.mxu0 0.0
        %2023 = vmatprep.subr.mxu0 0.0
        %2024 = vmatpush1.msra.mxu0 0.0
        %2025 = vmatprep.subr.mxu0 0.0
        %2026 = vmatpush1.msra.mxu0 0.0
        %2027 = vmatprep.subr.mxu0 0.0
        %2028 = vmatpush1.msra.mxu0 0.0
        %2029 = vmatprep.subr.mxu0 0.0
        %2030 = vmatpush1.msra.mxu0 0.0
        %2031 = vmatprep.subr.mxu0 0.0
        %2032 = vmatpush1.msra.mxu0 0.0
        %2033 = vmatprep.subr.mxu0 0.0
        %2034 = vmatpush1.msra.mxu0 0.0
        %2035 = vmatprep.subr.mxu0 0.0
        %2036 = vmatpush1.msra.mxu0 0.0
        %2037 = vmatprep.subr.mxu0 0.0
        %2038 = vmatpush1.msra.mxu0 0.0
        %2039 = vmatprep.subr.mxu0 0.0
        %2040 = vmatpush1.msra.mxu0 0.0
        %2041 = vmatprep.subr.mxu0 0.0
        %2042 = vmatpush1.msra.mxu0 0.0
        %2043 = vmatprep.mubr.f32.mxu0 0.0
        %2044 = vmatmul.mubr.f32.gmra.mrb[0].mxu0 %v1840
        %v2045 = vpop.f32.mrb[0].mxu0
        %v2046 = vadd.f32 %v1904, %v2045
        %v2047 = vpop.f32.mrb[0].mxu0
        %2048 = vdwg.mxu0
        %v2049 = vmul.f32 %v1975, %v883
        %2050 = vmatprep.subr.mxu0 0.0
        %2051 = vmatpush1.xpose.msra.mxu0 %v1977
        %2052 = vmatprep.subr.mxu0 0.0
        %2053 = vmatpush1.xpose.msra.mxu0 0.0
        %2054 = vmatprep.subr.mxu0 0.0
        %2055 = vmatpush1.xpose.msra.mxu0 0.0
        %2056 = vmatprep.subr.mxu0 0.0
        %2057 = vmatpush1.xpose.msra.mxu0 0.0
        %2058 = vmatprep.subr.mxu0 0.0
        %2059 = vmatpush1.xpose.msra.mxu0 0.0
        %2060 = vmatprep.subr.mxu0 0.0
        %2061 = vmatpush1.xpose.msra.mxu0 0.0
        %2062 = vmatprep.subr.mxu0 0.0
        %2063 = vmatpush1.xpose.msra.mxu0 0.0
        %2064 = vmatprep.subr.mxu0 0.0
        %2065 = vmatpush1.xpose.msra.mxu0 0.0
        %2066 = vmatprep.subr.mxu0 0.0
        %2067 = vmatpush1.xpose.msra.mxu0 0.0
        %2068 = vmatprep.subr.mxu0 0.0
        %2069 = vmatpush1.xpose.msra.mxu0 0.0
        %2070 = vmatprep.subr.mxu0 0.0
        %2071 = vmatpush1.xpose.msra.mxu0 0.0
        %2072 = vmatprep.subr.mxu0 0.0
        %2073 = vmatpush1.xpose.msra.mxu0 0.0
        %2074 = vmatprep.subr.mxu0 0.0
        %2075 = vmatpush1.xpose.msra.mxu0 0.0
        %2076 = vmatprep.subr.mxu0 0.0
        %2077 = vmatpush1.xpose.msra.mxu0 0.0
        %2078 = vmatprep.subr.mxu0 0.0
        %2079 = vmatpush1.xpose.msra.mxu0 0.0
        %2080 = vmatprep.subr.mxu0 0.0
        %2081 = vmatpush1.xpose.msra.mxu0 0.0
        %2082 = vmatprep.subr.mxu0 0.0
        %2083 = vmatpush1.xpose.msra.mxu0 0.0
        %2084 = vmatprep.subr.mxu0 0.0
        %2085 = vmatpush1.xpose.msra.mxu0 0.0
        %2086 = vmatprep.subr.mxu0 0.0
        %2087 = vmatpush1.xpose.msra.mxu0 0.0
        %2088 = vmatprep.subr.mxu0 0.0
        %2089 = vmatpush1.xpose.msra.mxu0 0.0
        %2090 = vmatprep.subr.mxu0 0.0
        %2091 = vmatpush1.xpose.msra.mxu0 0.0
        %2092 = vmatprep.subr.mxu0 0.0
        %2093 = vmatpush1.xpose.msra.mxu0 0.0
        %2094 = vmatprep.subr.mxu0 0.0
        %2095 = vmatpush1.xpose.msra.mxu0 0.0
        %2096 = vmatprep.subr.mxu0 0.0
        %2097 = vmatpush1.xpose.msra.mxu0 0.0
        %2098 = vmatprep.subr.mxu0 0.0
        %2099 = vmatpush1.xpose.msra.mxu0 0.0
        %2100 = vmatprep.subr.mxu0 0.0
        %2101 = vmatpush1.xpose.msra.mxu0 0.0
        %2102 = vmatprep.subr.mxu0 0.0
        %2103 = vmatpush1.xpose.msra.mxu0 0.0
        %2104 = vmatprep.subr.mxu0 0.0
        %2105 = vmatpush1.xpose.msra.mxu0 0.0
        %2106 = vmatprep.subr.mxu0 0.0
        %2107 = vmatpush1.xpose.msra.mxu0 0.0
        %2108 = vmatprep.subr.mxu0 0.0
        %2109 = vmatpush1.xpose.msra.mxu0 0.0
        %2110 = vmatprep.subr.mxu0 0.0
        %2111 = vmatpush1.xpose.msra.mxu0 0.0
        %2112 = vmatprep.subr.mxu0 0.0
        %2113 = vmatpush1.xpose.msra.mxu0 0.0
        %2114 = vmatprep.mubr.f32.mxu0 0.0
        %2115 = vmatmul.mubr.f32.gmra.mrb[0].mxu0 %v2049
        %v2116 = vpop.f32.mrb[0].mxu0
        %v2117 = vadd.f32 %v1100, %v2116
        %v2118 = vpop.f32.mrb[0].mxu0
        %2119 = vdwg.mxu0
        %v2120 = vsel %vm1172, %v2117, -inf
        %2121 = vmax.xlane.f32.xlu0 %v2120
        %v2122 = vpop.xlane.xlu0 %2121
        %v2123 = vsub.f32 %v2117, %v2122
        %v2124 = vmul.f32 %v2123, 1.442695
        %v2125 = vpow.pop %v2124
        %v2126 = vsel %vm1172, %v2125, 0.0
        %2127 = vadd.xlane.f32.xlu0 %v2126
        %v2128 = vpop.xlane.xlu0 %2127
        %v2129 = vrcp.pop %v2128
        %v2130 = vmul.f32 %v2125, %v2129
        %v2131 = vmul.f32 %v2046, %v883
        %v2132 = vmul.f32 %v1975, %v888
        %2133 = vmatprep.subr.mxu0 0.0
        %2134 = vmatpush1.xpose.msra.mxu0 %v1977
        %2135 = vmatprep.subr.mxu0 0.0
        %2136 = vmatpush1.xpose.msra.mxu0 0.0
        %2137 = vmatprep.subr.mxu0 0.0
        %2138 = vmatpush1.xpose.msra.mxu0 0.0
        %2139 = vmatprep.subr.mxu0 0.0
        %2140 = vmatpush1.xpose.msra.mxu0 0.0
        %2141 = vmatprep.subr.mxu0 0.0
        %2142 = vmatpush1.xpose.msra.mxu0 0.0
        %2143 = vmatprep.subr.mxu0 0.0
        %2144 = vmatpush1.xpose.msra.mxu0 0.0
        %2145 = vmatprep.subr.mxu0 0.0
        %2146 = vmatpush1.xpose.msra.mxu0 0.0
        %2147 = vmatprep.subr.mxu0 0.0
        %2148 = vmatpush1.xpose.msra.mxu0 0.0
        %2149 = vmatprep.subr.mxu0 0.0
        %2150 = vmatpush1.xpose.msra.mxu0 0.0
        %2151 = vmatprep.subr.mxu0 0.0
        %2152 = vmatpush1.xpose.msra.mxu0 0.0
        %2153 = vmatprep.subr.mxu0 0.0
        %2154 = vmatpush1.xpose.msra.mxu0 0.0
        %2155 = vmatprep.subr.mxu0 0.0
        %2156 = vmatpush1.xpose.msra.mxu0 0.0
        %2157 = vmatprep.subr.mxu0 0.0
        %2158 = vmatpush1.xpose.msra.mxu0 0.0
        %2159 = vmatprep.subr.mxu0 0.0
        %2160 = vmatpush1.xpose.msra.mxu0 0.0
        %2161 = vmatprep.subr.mxu0 0.0
        %2162 = vmatpush1.xpose.msra.mxu0 0.0
        %2163 = vmatprep.subr.mxu0 0.0
        %2164 = vmatpush1.xpose.msra.mxu0 0.0
        %2165 = vmatprep.subr.mxu0 0.0
        %2166 = vmatpush1.xpose.msra.mxu0 0.0
        %2167 = vmatprep.subr.mxu0 0.0
        %2168 = vmatpush1.xpose.msra.mxu0 0.0
        %2169 = vmatprep.subr.mxu0 0.0
        %2170 = vmatpush1.xpose.msra.mxu0 0.0
        %2171 = vmatprep.subr.mxu0 0.0
        %2172 = vmatpush1.xpose.msra.mxu0 0.0
        %2173 = vmatprep.subr.mxu0 0.0
        %2174 = vmatpush1.xpose.msra.mxu0 0.0
        %2175 = vmatprep.subr.mxu0 0.0
        %2176 = vmatpush1.xpose.msra.mxu0 0.0
        %2177 = vmatprep.subr.mxu0 0.0
        %2178 = vmatpush1.xpose.msra.mxu0 0.0
        %2179 = vmatprep.subr.mxu0 0.0
        %2180 = vmatpush1.xpose.msra.mxu0 0.0
        %2181 = vmatprep.subr.mxu0 0.0
        %2182 = vmatpush1.xpose.msra.mxu0 0.0
        %2183 = vmatprep.subr.mxu0 0.0
        %2184 = vmatpush1.xpose.msra.mxu0 0.0
        %2185 = vmatprep.subr.mxu0 0.0
        %2186 = vmatpush1.xpose.msra.mxu0 0.0
        %2187 = vmatprep.subr.mxu0 0.0
        %2188 = vmatpush1.xpose.msra.mxu0 0.0
        %2189 = vmatprep.subr.mxu0 0.0
        %2190 = vmatpush1.xpose.msra.mxu0 0.0
        %2191 = vmatprep.subr.mxu0 0.0
        %2192 = vmatpush1.xpose.msra.mxu0 0.0
        %2193 = vmatprep.subr.mxu0 0.0
        %2194 = vmatpush1.xpose.msra.mxu0 0.0
        %2195 = vmatprep.subr.mxu0 0.0
        %2196 = vmatpush1.xpose.msra.mxu0 0.0
        %2197 = vmatprep.mubr.f32.mxu0 0.0
        %2198 = vmatmul.mubr.f32.gmra.mrb[0].mxu0 %v2132
        %v2199 = vpop.f32.mrb[0].mxu0
        %v2200 = vadd.f32 %v1100, %v2199
        %v2201 = vpop.f32.mrb[0].mxu0
        %2202 = vdwg.mxu0
        %v2203 = vsel %vm1172, %v2200, -inf
        %2204 = vmax.xlane.f32.xlu0 %v2203
        %v2205 = vpop.xlane.xlu0 %2204
        %v2206 = vsub.f32 %v2200, %v2205
        %v2207 = vmul.f32 %v2206, 1.442695
        %v2208 = vpow.pop %v2207
        %v2209 = vsel %vm1172, %v2208, 0.0
        %2210 = vadd.xlane.f32.xlu0 %v2209
        %v2211 = vpop.xlane.xlu0 %2210
        %v2212 = vrcp.pop %v2211
        %v2213 = vmul.f32 %v2208, %v2212
        %v2214 = vmul.f32 %v2046, %v888
        %v2216 = vsel %vm1172, %v2213, 0
        %2218 = vmatprep.subr.mxu0 0.0
        %2219 = vmatpush1.msra.mxu0 %v2214
        %2220 = vmatprep.subr.mxu0 0.0
        %2221 = vmatpush1.msra.mxu0 0.0
        %2222 = vmatprep.subr.mxu0 0.0
        %2223 = vmatpush1.msra.mxu0 0.0
        %2224 = vmatprep.subr.mxu0 0.0
        %2225 = vmatpush1.msra.mxu0 0.0
        %2226 = vmatprep.subr.mxu0 0.0
        %2227 = vmatpush1.msra.mxu0 0.0
        %2228 = vmatprep.subr.mxu0 0.0
        %2229 = vmatpush1.msra.mxu0 0.0
        %2230 = vmatprep.subr.mxu0 0.0
        %2231 = vmatpush1.msra.mxu0 0.0
        %2232 = vmatprep.subr.mxu0 0.0
        %2233 = vmatpush1.msra.mxu0 0.0
        %2234 = vmatprep.subr.mxu0 0.0
        %2235 = vmatpush1.msra.mxu0 0.0
        %2236 = vmatprep.subr.mxu0 0.0
        %2237 = vmatpush1.msra.mxu0 0.0
        %2238 = vmatprep.subr.mxu0 0.0
        %2239 = vmatpush1.msra.mxu0 0.0
        %2240 = vmatprep.subr.mxu0 0.0
        %2241 = vmatpush1.msra.mxu0 0.0
        %2242 = vmatprep.subr.mxu0 0.0
        %2243 = vmatpush1.msra.mxu0 0.0
        %2244 = vmatprep.subr.mxu0 0.0
        %2245 = vmatpush1.msra.mxu0 0.0
        %2246 = vmatprep.subr.mxu0 0.0
        %2247 = vmatpush1.msra.mxu0 0.0
        %2248 = vmatprep.subr.mxu0 0.0
        %2249 = vmatpush1.msra.mxu0 0.0
        %2250 = vmatprep.subr.mxu0 0.0
        %2251 = vmatpush1.msra.mxu0 0.0
        %2252 = vmatprep.subr.mxu0 0.0
        %2253 = vmatpush1.msra.mxu0 0.0
        %2254 = vmatprep.subr.mxu0 0.0
        %2255 = vmatpush1.msra.mxu0 0.0
        %2256 = vmatprep.subr.mxu0 0.0
        %2257 = vmatpush1.msra.mxu0 0.0
        %2258 = vmatprep.subr.mxu0 0.0
        %2259 = vmatpush1.msra.mxu0 0.0
        %2260 = vmatprep.subr.mxu0 0.0
        %2261 = vmatpush1.msra.mxu0 0.0
        %2262 = vmatprep.subr.mxu0 0.0
        %2263 = vmatpush1.msra.mxu0 0.0
        %2264 = vmatprep.subr.mxu0 0.0
        %2265 = vmatpush1.msra.mxu0 0.0
        %2266 = vmatprep.subr.mxu0 0.0
        %2267 = vmatpush1.msra.mxu0 0.0
        %2268 = vmatprep.subr.mxu0 0.0
        %2269 = vmatpush1.msra.mxu0 0.0
        %2270 = vmatprep.subr.mxu0 0.0
        %2271 = vmatpush1.msra.mxu0 0.0
        %2272 = vmatprep.subr.mxu0 0.0
        %2273 = vmatpush1.msra.mxu0 0.0
        %2274 = vmatprep.subr.mxu0 0.0
        %2275 = vmatpush1.msra.mxu0 0.0
        %2276 = vmatprep.subr.mxu0 0.0
        %2277 = vmatpush1.msra.mxu0 0.0
        %2278 = vmatprep.subr.mxu0 0.0
        %2279 = vmatpush1.msra.mxu0 0.0
        %2280 = vmatprep.subr.mxu0 0.0
        %2281 = vmatpush1.msra.mxu0 0.0
        %2282 = vmatprep.mubr.f32.mxu0 0.0
        %2283 = vmatmul.mubr.f32.gmra.mrb[0].mxu0 %v2216
        %v2284 = vpop.f32.mrb[0].mxu0
        %v2285 = vadd.f32 0.0, %v2284
        %v2286 = vpop.f32.mrb[0].mxu0
        %2287 = vdwg.mxu0
        %v2289 = vsel %vm1172, %v2130, 0
        %2291 = vmatprep.subr.mxu0 0.0
        %2292 = vmatpush1.msra.mxu0 %v2131
        %2293 = vmatprep.subr.mxu0 0.0
        %2294 = vmatpush1.msra.mxu0 0.0
        %2295 = vmatprep.subr.mxu0 0.0
        %2296 = vmatpush1.msra.mxu0 0.0
        %2297 = vmatprep.subr.mxu0 0.0
        %2298 = vmatpush1.msra.mxu0 0.0
        %2299 = vmatprep.subr.mxu0 0.0
        %2300 = vmatpush1.msra.mxu0 0.0
        %2301 = vmatprep.subr.mxu0 0.0
        %2302 = vmatpush1.msra.mxu0 0.0
        %2303 = vmatprep.subr.mxu0 0.0
        %2304 = vmatpush1.msra.mxu0 0.0
        %2305 = vmatprep.subr.mxu0 0.0
        %2306 = vmatpush1.msra.mxu0 0.0
        %2307 = vmatprep.subr.mxu0 0.0
        %2308 = vmatpush1.msra.mxu0 0.0
        %2309 = vmatprep.subr.mxu0 0.0
        %2310 = vmatpush1.msra.mxu0 0.0
        %2311 = vmatprep.subr.mxu0 0.0
        %2312 = vmatpush1.msra.mxu0 0.0
        %2313 = vmatprep.subr.mxu0 0.0
        %2314 = vmatpush1.msra.mxu0 0.0
        %2315 = vmatprep.subr.mxu0 0.0
        %2316 = vmatpush1.msra.mxu0 0.0
        %2317 = vmatprep.subr.mxu0 0.0
        %2318 = vmatpush1.msra.mxu0 0.0
        %2319 = vmatprep.subr.mxu0 0.0
        %2320 = vmatpush1.msra.mxu0 0.0
        %2321 = vmatprep.subr.mxu0 0.0
        %2322 = vmatpush1.msra.mxu0 0.0
        %2323 = vmatprep.subr.mxu0 0.0
        %2324 = vmatpush1.msra.mxu0 0.0
        %2325 = vmatprep.subr.mxu0 0.0
        %2326 = vmatpush1.msra.mxu0 0.0
        %2327 = vmatprep.subr.mxu0 0.0
        %2328 = vmatpush1.msra.mxu0 0.0
        %2329 = vmatprep.subr.mxu0 0.0
        %2330 = vmatpush1.msra.mxu0 0.0
        %2331 = vmatprep.subr.mxu0 0.0
        %2332 = vmatpush1.msra.mxu0 0.0
        %2333 = vmatprep.subr.mxu0 0.0
        %2334 = vmatpush1.msra.mxu0 0.0
        %2335 = vmatprep.subr.mxu0 0.0
        %2336 = vmatpush1.msra.mxu0 0.0
        %2337 = vmatprep.subr.mxu0 0.0
        %2338 = vmatpush1.msra.mxu0 0.0
        %2339 = vmatprep.subr.mxu0 0.0
        %2340 = vmatpush1.msra.mxu0 0.0
        %2341 = vmatprep.subr.mxu0 0.0
        %2342 = vmatpush1.msra.mxu0 0.0
        %2343 = vmatprep.subr.mxu0 0.0
        %2344 = vmatpush1.msra.mxu0 0.0
        %2345 = vmatprep.subr.mxu0 0.0
        %2346 = vmatpush1.msra.mxu0 0.0
        %2347 = vmatprep.subr.mxu0 0.0
        %2348 = vmatpush1.msra.mxu0 0.0
        %2349 = vmatprep.subr.mxu0 0.0
        %2350 = vmatpush1.msra.mxu0 0.0
        %2351 = vmatprep.subr.mxu0 0.0
        %2352 = vmatpush1.msra.mxu0 0.0
        %2353 = vmatprep.subr.mxu0 0.0
        %2354 = vmatpush1.msra.mxu0 0.0
        %2355 = vmatprep.mubr.f32.mxu0 0.0
        %2356 = vmatmul.mubr.f32.gmra.mrb[0].mxu0 %v2289
        %v2357 = vpop.f32.mrb[0].mxu0
        %v2358 = vadd.f32 %v2285, %v2357
        %v2359 = vpop.f32.mrb[0].mxu0
        %2360 = vdwg.mxu0
        %s2361 = scalar_lea.vmem [#allocation5], 128
        %v2362 = vld [vmem:[%s2361] sm:$0xff]
        %v2363 = vld [vmem:[%s2361 + $0x8] sm:$0xff]
        %v2364 = vld [vmem:[%s2361 + $0x10] sm:$0xff]
        %v2365 = vld [vmem:[%s2361 + $0x18] sm:$0xff]
        %v2366 = vld [vmem:[%s2361 + $0x20] sm:$0xff]
        %v2367 = vld [vmem:[%s2361 + $0x28] sm:$0xff]
        %v2368 = vld [vmem:[%s2361 + $0x30] sm:$0xff]
        %v2369 = vld [vmem:[%s2361 + $0x38] sm:$0xff]
        %v2370 = vld [vmem:[%s2361 + $0x40] sm:$0xff]
        %v2371 = vld [vmem:[%s2361 + $0x48] sm:$0xff]
        %v2372 = vld [vmem:[%s2361 + $0x50] sm:$0xff]
        %v2373 = vld [vmem:[%s2361 + $0x58] sm:$0xff]
        %v2374 = vld [vmem:[%s2361 + $0x60] sm:$0xff]
        %v2375 = vld [vmem:[%s2361 + $0x68] sm:$0xff]
        %v2376 = vld [vmem:[%s2361 + $0x70] sm:$0xff]
        %v2377 = vld [vmem:[%s2361 + $0x78] sm:$0xff]
        %s2378 = scalar_lea.vmem %s8, 1
        %v2379 = vld [vmem:[%s2378] sm:$0x1]
        %v2381 = vlaneseq
        %v2382 = vshrl.u32 %v2381, 7
        %v2383 = vsub.s32 0, %v2382
        %v2384 = vrot.slane %v2379, %v2383
        %2386 = vmatprep.subr.mxu0 0.0
        %2387 = vmatpush1.msra.mxu0 %v2362
        %2388 = vmatprep.subr.mxu0 0.0
        %2389 = vmatpush1.msra.mxu0 %v2363
        %2390 = vmatprep.subr.mxu0 0.0
        %2391 = vmatpush1.msra.mxu0 %v2364
        %2392 = vmatprep.subr.mxu0 0.0
        %2393 = vmatpush1.msra.mxu0 %v2365
        %2394 = vmatprep.subr.mxu0 0.0
        %2395 = vmatpush1.msra.mxu0 %v2366
        %2396 = vmatprep.subr.mxu0 0.0
        %2397 = vmatpush1.msra.mxu0 %v2367
        %2398 = vmatprep.subr.mxu0 0.0
        %2399 = vmatpush1.msra.mxu0 %v2368
        %2400 = vmatprep.subr.mxu0 0.0
        %2401 = vmatpush1.msra.mxu0 %v2369
        %2402 = vmatprep.subr.mxu0 0.0
        %2403 = vmatpush1.msra.mxu0 %v2370
        %2404 = vmatprep.subr.mxu0 0.0
        %2405 = vmatpush1.msra.mxu0 %v2371
        %2406 = vmatprep.subr.mxu0 0.0
        %2407 = vmatpush1.msra.mxu0 %v2372
        %2408 = vmatprep.subr.mxu0 0.0
        %2409 = vmatpush1.msra.mxu0 %v2373
        %2410 = vmatprep.subr.mxu0 0.0
        %2411 = vmatpush1.msra.mxu0 %v2374
        %2412 = vmatprep.subr.mxu0 0.0
        %2413 = vmatpush1.msra.mxu0 %v2375
        %2414 = vmatprep.subr.mxu0 0.0
        %2415 = vmatpush1.msra.mxu0 %v2376
        %2416 = vmatprep.subr.mxu0 0.0
        %2417 = vmatpush1.msra.mxu0 %v2377
        %2418 = vmatprep.subr.mxu0 0.0
        %2419 = vmatpush1.msra.mxu0 0.0
        %2420 = vmatprep.subr.mxu0 0.0
        %2421 = vmatpush1.msra.mxu0 0.0
        %2422 = vmatprep.subr.mxu0 0.0
        %2423 = vmatpush1.msra.mxu0 0.0
        %2424 = vmatprep.subr.mxu0 0.0
        %2425 = vmatpush1.msra.mxu0 0.0
        %2426 = vmatprep.subr.mxu0 0.0
        %2427 = vmatpush1.msra.mxu0 0.0
        %2428 = vmatprep.subr.mxu0 0.0
        %2429 = vmatpush1.msra.mxu0 0.0
        %2430 = vmatprep.subr.mxu0 0.0
        %2431 = vmatpush1.msra.mxu0 0.0
        %2432 = vmatprep.subr.mxu0 0.0
        %2433 = vmatpush1.msra.mxu0 0.0
        %2434 = vmatprep.subr.mxu0 0.0
        %2435 = vmatpush1.msra.mxu0 0.0
        %2436 = vmatprep.subr.mxu0 0.0
        %2437 = vmatpush1.msra.mxu0 0.0
        %2438 = vmatprep.subr.mxu0 0.0
        %2439 = vmatpush1.msra.mxu0 0.0
        %2440 = vmatprep.subr.mxu0 0.0
        %2441 = vmatpush1.msra.mxu0 0.0
        %2442 = vmatprep.subr.mxu0 0.0
        %2443 = vmatpush1.msra.mxu0 0.0
        %2444 = vmatprep.subr.mxu0 0.0
        %2445 = vmatpush1.msra.mxu0 0.0
        %2446 = vmatprep.subr.mxu0 0.0
        %2447 = vmatpush1.msra.mxu0 0.0
        %2448 = vmatprep.subr.mxu0 0.0
        %2449 = vmatpush1.msra.mxu0 0.0
        %2450 = vmatprep.mubr.f32.mxu0 0.0
        %2451 = vmatmul.mubr.f32.gmra.mrb[0].mxu0 %v2358
        %v2452 = vpop.f32.mrb[0].mxu0
        %v2453 = vadd.f32 %v2384, %v2452
        %v2454 = vpop.f32.mrb[0].mxu0
        %2455 = vdwg.mxu0
        %v2456 = vadd.f32 %v2453, %v1840
        %s2457 = scalar_lea.vmem %s9, 1
        %v2458 = vld [vmem:[%s2457] sm:$0x1]
        %s2459 = scalar_lea.vmem %s10, 1
        %v2460 = vld [vmem:[%s2459] sm:$0x1]
        %2461 = vadd.xlane.f32.xlu0 %v2456
        %v2462 = vpop.xlane.xlu0 %2461
        %v2463 = vmul.f32 %v2462, %v852
        %v2464 = vsub.f32 %v2456, %v2463
        %v2465 = vmul.f32 %v2464, %v2464
        %2466 = vadd.xlane.f32.xlu0 %v2465
        %v2467 = vpop.xlane.xlu0 %2466
        %v2468 = vmul.f32 %v2467, %v852
        %v2469 = vadd.f32 %v2468, 1e-12
        %v2470 = vrsqrt.pop %v2469
        %v2471 = vmul.f32 %v2464, %v2470
        %v2473 = vlaneseq
        %v2474 = vshrl.u32 %v2473, 7
        %v2475 = vsub.s32 0, %v2474
        %v2476 = vrot.slane %v2458, %v2475
        %v2478 = vmul.f32 %v2471, %v2476
        %v2480 = vlaneseq
        %v2481 = vshrl.u32 %v2480, 7
        %v2482 = vsub.s32 0, %v2481
        %v2483 = vrot.slane %v2460, %v2482
        %v2485 = vadd.f32 %v2478, %v2483
        %s2486 = scalar_lea.vmem [#allocation7], 256
        %v2487 = vld [vmem:[%s2486] sm:$0xff]
        %v2488 = vld [vmem:[%s2486 + $0x8] sm:$0xff]
        %v2489 = vld [vmem:[%s2486 + $0x10] sm:$0xff]
        %v2490 = vld [vmem:[%s2486 + $0x18] sm:$0xff]
        %v2491 = vld [vmem:[%s2486 + $0x20] sm:$0xff]
        %v2492 = vld [vmem:[%s2486 + $0x28] sm:$0xff]
        %v2493 = vld [vmem:[%s2486 + $0x30] sm:$0xff]
        %v2494 = vld [vmem:[%s2486 + $0x38] sm:$0xff]
        %v2495 = vld [vmem:[%s2486 + $0x40] sm:$0xff]
        %v2496 = vld [vmem:[%s2486 + $0x48] sm:$0xff]
        %v2497 = vld [vmem:[%s2486 + $0x50] sm:$0xff]
        %v2498 = vld [vmem:[%s2486 + $0x58] sm:$0xff]
        %v2499 = vld [vmem:[%s2486 + $0x60] sm:$0xff]
        %v2500 = vld [vmem:[%s2486 + $0x68] sm:$0xff]
        %v2501 = vld [vmem:[%s2486 + $0x70] sm:$0xff]
        %v2502 = vld [vmem:[%s2486 + $0x78] sm:$0xff]
        %v2503 = vld [vmem:[%s2486 + $0x80] sm:$0xff]
        %v2504 = vld [vmem:[%s2486 + $0x88] sm:$0xff]
        %v2505 = vld [vmem:[%s2486 + $0x90] sm:$0xff]
        %v2506 = vld [vmem:[%s2486 + $0x98] sm:$0xff]
        %v2507 = vld [vmem:[%s2486 + $0xa0] sm:$0xff]
        %v2508 = vld [vmem:[%s2486 + $0xa8] sm:$0xff]
        %v2509 = vld [vmem:[%s2486 + $0xb0] sm:$0xff]
        %v2510 = vld [vmem:[%s2486 + $0xb8] sm:$0xff]
        %v2511 = vld [vmem:[%s2486 + $0xc0] sm:$0xff]
        %v2512 = vld [vmem:[%s2486 + $0xc8] sm:$0xff]
        %v2513 = vld [vmem:[%s2486 + $0xd0] sm:$0xff]
        %v2514 = vld [vmem:[%s2486 + $0xd8] sm:$0xff]
        %v2515 = vld [vmem:[%s2486 + $0xe0] sm:$0xff]
        %v2516 = vld [vmem:[%s2486 + $0xe8] sm:$0xff]
        %v2517 = vld [vmem:[%s2486 + $0xf0] sm:$0xff]
        %v2518 = vld [vmem:[%s2486 + $0xf8] sm:$0xff]
        %s2519 = scalar_lea.vmem %s12, 2
        %v2520 = vld [vmem:[%s2519] sm:$0x3]
        %v2522 = vlaneseq
        %v2523 = vshrl.u32 %v2522, 7
        %v2524 = vsub.s32 0, %v2523
        %v2525 = vrot.slane %v2520, %v2524
        %v2526 = vlaneseq
        %v2527 = vshrl.u32 %v2526, 7
        %v2528 = vsub.s32 1, %v2527
        %v2529 = vrot.slane %v2520, %v2528
        %2532 = vmatprep.subr.mxu0 %v2488
        %2533 = vmatpush1.msra.mxu0 %v2487
        %2534 = vmatprep.subr.mxu0 %v2490
        %2535 = vmatpush1.msra.mxu0 %v2489
        %2536 = vmatprep.subr.mxu0 %v2492
        %2537 = vmatpush1.msra.mxu0 %v2491
        %2538 = vmatprep.subr.mxu0 %v2494
        %2539 = vmatpush1.msra.mxu0 %v2493
        %2540 = vmatprep.subr.mxu0 %v2496
        %2541 = vmatpush1.msra.mxu0 %v2495
        %2542 = vmatprep.subr.mxu0 %v2498
        %2543 = vmatpush1.msra.mxu0 %v2497
        %2544 = vmatprep.subr.mxu0 %v2500
        %2545 = vmatpush1.msra.mxu0 %v2499
        %2546 = vmatprep.subr.mxu0 %v2502
        %2547 = vmatpush1.msra.mxu0 %v2501
        %2548 = vmatprep.subr.mxu0 %v2504
        %2549 = vmatpush1.msra.mxu0 %v2503
        %2550 = vmatprep.subr.mxu0 %v2506
        %2551 = vmatpush1.msra.mxu0 %v2505
        %2552 = vmatprep.subr.mxu0 %v2508
        %2553 = vmatpush1.msra.mxu0 %v2507
        %2554 = vmatprep.subr.mxu0 %v2510
        %2555 = vmatpush1.msra.mxu0 %v2509
        %2556 = vmatprep.subr.mxu0 %v2512
        %2557 = vmatpush1.msra.mxu0 %v2511
        %2558 = vmatprep.subr.mxu0 %v2514
        %2559 = vmatpush1.msra.mxu0 %v2513
        %2560 = vmatprep.subr.mxu0 %v2516
        %2561 = vmatpush1.msra.mxu0 %v2515
        %2562 = vmatprep.subr.mxu0 %v2518
        %2563 = vmatpush1.msra.mxu0 %v2517
        %2564 = vmatprep.subr.mxu0 0.0
        %2565 = vmatpush1.msra.mxu0 0.0
        %2566 = vmatprep.subr.mxu0 0.0
        %2567 = vmatpush1.msra.mxu0 0.0
        %2568 = vmatprep.subr.mxu0 0.0
        %2569 = vmatpush1.msra.mxu0 0.0
        %2570 = vmatprep.subr.mxu0 0.0
        %2571 = vmatpush1.msra.mxu0 0.0
        %2572 = vmatprep.subr.mxu0 0.0
        %2573 = vmatpush1.msra.mxu0 0.0
        %2574 = vmatprep.subr.mxu0 0.0
        %2575 = vmatpush1.msra.mxu0 0.0
        %2576 = vmatprep.subr.mxu0 0.0
        %2577 = vmatpush1.msra.mxu0 0.0
        %2578 = vmatprep.subr.mxu0 0.0
        %2579 = vmatpush1.msra.mxu0 0.0
        %2580 = vmatprep.subr.mxu0 0.0
        %2581 = vmatpush1.msra.mxu0 0.0
        %2582 = vmatprep.subr.mxu0 0.0
        %2583 = vmatpush1.msra.mxu0 0.0
        %2584 = vmatprep.subr.mxu0 0.0
        %2585 = vmatpush1.msra.mxu0 0.0
        %2586 = vmatprep.subr.mxu0 0.0
        %2587 = vmatpush1.msra.mxu0 0.0
        %2588 = vmatprep.subr.mxu0 0.0
        %2589 = vmatpush1.msra.mxu0 0.0
        %2590 = vmatprep.subr.mxu0 0.0
        %2591 = vmatpush1.msra.mxu0 0.0
        %2592 = vmatprep.subr.mxu0 0.0
        %2593 = vmatpush1.msra.mxu0 0.0
        %2594 = vmatprep.subr.mxu0 0.0
        %2595 = vmatpush1.msra.mxu0 0.0
        %2596 = vmatprep.mubr.f32.mxu0 0.0
        %2597 = vmatmul.mubr.f32.gmra.mrb[0].mxu0 %v2485
        %v2598 = vpop.f32.mrb[0].mxu0
        %v2599 = vadd.f32 %v2525, %v2598
        %v2600 = vpop.f32.mrb[0].mxu0
        %v2601 = vadd.f32 %v2529, %v2600
        %2602 = vdwg.mxu0
        %v2603 = vmul.f32 %v2599, 0.5
        %v2604 = vmul.f32 %v2601, 0.5
        %v2605 = vmul.f32 %v2599, 0.70710677
        %v2606 = vmul.f32 %v2601, 0.70710677
        %vm2607 = vcmp.ge.f32.partialorder %v2605, 0.0
        %vm2608 = vcmp.ge.f32.partialorder %v2606, 0.0
        %v2609 = vsel %vm2607, 1.0, -1.0
        %v2610 = vsel %vm2608, 1.0, -1.0
        %v2611 = vand.u32 2147483647, %v2605
        %v2612 = vand.u32 2147483647, %v2606
        %v2613 = vmul.f32 %v2611, 0.3275911
        %v2614 = vmul.f32 %v2612, 0.3275911
        %v2615 = vadd.f32 %v2613, 1.0
        %v2616 = vadd.f32 %v2614, 1.0
        %v2617 = vrcp.pop %v2615
        %v2618 = vmul.f32 1.0, %v2617
        %v2619 = vrcp.pop %v2616
        %v2620 = vmul.f32 1.0, %v2619
        %v2621 = vmul.f32 %v2618, 1.0614054
        %v2622 = vmul.f32 %v2620, 1.0614054
        %v2623 = vadd.f32 %v2621, -1.4531521
        %v2624 = vadd.f32 %v2622, -1.4531521
        %v2625 = vmul.f32 %v2623, %v2618
        %v2626 = vmul.f32 %v2624, %v2620
        %v2627 = vadd.f32 %v2625, 1.4214138
        %v2628 = vadd.f32 %v2626, 1.4214138
        %v2629 = vmul.f32 %v2627, %v2618
        %v2630 = vmul.f32 %v2628, %v2620
        %v2631 = vadd.f32 %v2629, -0.28449672
        %v2632 = vadd.f32 %v2630, -0.28449672
        %v2633 = vmul.f32 %v2631, %v2618
        %v2634 = vmul.f32 %v2632, %v2620
        %v2635 = vadd.f32 %v2633, 0.2548296
        %v2636 = vadd.f32 %v2634, 0.2548296
        %v2637 = vmul.f32 %v2635, %v2618
        %v2638 = vmul.f32 %v2636, %v2620
        %v2639 = vsub.f32 0.0, %v2611
        %v2640 = vsub.f32 0.0, %v2612
        %v2641 = vmul.f32 %v2639, %v2611
        %v2642 = vmul.f32 %v2640, %v2612
        %v2643 = vmul.f32 %v2641, 1.442695
        %v2644 = vpow.pop %v2643
        %v2645 = vmul.f32 %v2642, 1.442695
        %v2646 = vpow.pop %v2645
        %v2647 = vmul.f32 %v2637, %v2644
        %v2648 = vmul.f32 %v2638, %v2646
        %v2649 = vsub.f32 1.0, %v2647
        %v2650 = vsub.f32 1.0, %v2648
        %v2651 = vmul.f32 %v2609, %v2649
        %v2652 = vmul.f32 %v2610, %v2650
        %v2653 = vadd.f32 %v2651, 1.0
        %v2654 = vadd.f32 %v2652, 1.0
        %v2655 = vmul.f32 %v2603, %v2653
        %v2656 = vmul.f32 %v2604, %v2654
        %s2657 = scalar_lea.vmem [#allocation8], 256
        %v2658 = vld [vmem:[%s2657] sm:$0xff]
        %v2659 = vld [vmem:[%s2657 + $0x8] sm:$0xff]
        %v2660 = vld [vmem:[%s2657 + $0x10] sm:$0xff]
        %v2661 = vld [vmem:[%s2657 + $0x18] sm:$0xff]
        %v2662 = vld [vmem:[%s2657 + $0x20] sm:$0xff]
        %v2663 = vld [vmem:[%s2657 + $0x28] sm:$0xff]
        %v2664 = vld [vmem:[%s2657 + $0x30] sm:$0xff]
        %v2665 = vld [vmem:[%s2657 + $0x38] sm:$0xff]
        %v2666 = vld [vmem:[%s2657 + $0x40] sm:$0xff]
        %v2667 = vld [vmem:[%s2657 + $0x48] sm:$0xff]
        %v2668 = vld [vmem:[%s2657 + $0x50] sm:$0xff]
        %v2669 = vld [vmem:[%s2657 + $0x58] sm:$0xff]
        %v2670 = vld [vmem:[%s2657 + $0x60] sm:$0xff]
        %v2671 = vld [vmem:[%s2657 + $0x68] sm:$0xff]
        %v2672 = vld [vmem:[%s2657 + $0x70] sm:$0xff]
        %v2673 = vld [vmem:[%s2657 + $0x78] sm:$0xff]
        %v2674 = vld [vmem:[%s2657 + $0x80] sm:$0xff]
        %v2675 = vld [vmem:[%s2657 + $0x88] sm:$0xff]
        %v2676 = vld [vmem:[%s2657 + $0x90] sm:$0xff]
        %v2677 = vld [vmem:[%s2657 + $0x98] sm:$0xff]
        %v2678 = vld [vmem:[%s2657 + $0xa0] sm:$0xff]
        %v2679 = vld [vmem:[%s2657 + $0xa8] sm:$0xff]
        %v2680 = vld [vmem:[%s2657 + $0xb0] sm:$0xff]
        %v2681 = vld [vmem:[%s2657 + $0xb8] sm:$0xff]
        %v2682 = vld [vmem:[%s2657 + $0xc0] sm:$0xff]
        %v2683 = vld [vmem:[%s2657 + $0xc8] sm:$0xff]
        %v2684 = vld [vmem:[%s2657 + $0xd0] sm:$0xff]
        %v2685 = vld [vmem:[%s2657 + $0xd8] sm:$0xff]
        %v2686 = vld [vmem:[%s2657 + $0xe0] sm:$0xff]
        %v2687 = vld [vmem:[%s2657 + $0xe8] sm:$0xff]
        %v2688 = vld [vmem:[%s2657 + $0xf0] sm:$0xff]
        %v2689 = vld [vmem:[%s2657 + $0xf8] sm:$0xff]
        %s2690 = scalar_lea.vmem %s14, 1
        %v2691 = vld [vmem:[%s2690] sm:$0x1]
        %v2693 = vlaneseq
        %v2694 = vshrl.u32 %v2693, 7
        %v2695 = vsub.s32 0, %v2694
        %v2696 = vrot.slane %v2691, %v2695
        %2698 = vmatprep.subr.mxu0 0.0
        %2699 = vmatpush1.msra.mxu0 %v2658
        %2700 = vmatprep.subr.mxu0 0.0
        %2701 = vmatpush1.msra.mxu0 %v2659
        %2702 = vmatprep.subr.mxu0 0.0
        %2703 = vmatpush1.msra.mxu0 %v2660
        %2704 = vmatprep.subr.mxu0 0.0
        %2705 = vmatpush1.msra.mxu0 %v2661
        %2706 = vmatprep.subr.mxu0 0.0
        %2707 = vmatpush1.msra.mxu0 %v2662
        %2708 = vmatprep.subr.mxu0 0.0
        %2709 = vmatpush1.msra.mxu0 %v2663
        %2710 = vmatprep.subr.mxu0 0.0
        %2711 = vmatpush1.msra.mxu0 %v2664
        %2712 = vmatprep.subr.mxu0 0.0
        %2713 = vmatpush1.msra.mxu0 %v2665
        %2714 = vmatprep.subr.mxu0 0.0
        %2715 = vmatpush1.msra.mxu0 %v2666
        %2716 = vmatprep.subr.mxu0 0.0
        %2717 = vmatpush1.msra.mxu0 %v2667
        %2718 = vmatprep.subr.mxu0 0.0
        %2719 = vmatpush1.msra.mxu0 %v2668
        %2720 = vmatprep.subr.mxu0 0.0
        %2721 = vmatpush1.msra.mxu0 %v2669
        %2722 = vmatprep.subr.mxu0 0.0
        %2723 = vmatpush1.msra.mxu0 %v2670
        %2724 = vmatprep.subr.mxu0 0.0
        %2725 = vmatpush1.msra.mxu0 %v2671
        %2726 = vmatprep.subr.mxu0 0.0
        %2727 = vmatpush1.msra.mxu0 %v2672
        %2728 = vmatprep.subr.mxu0 0.0
        %2729 = vmatpush1.msra.mxu0 %v2673
        %2730 = vmatprep.subr.mxu0 0.0
        %2731 = vmatpush1.msra.mxu0 %v2674
        %2732 = vmatprep.subr.mxu0 0.0
        %2733 = vmatpush1.msra.mxu0 %v2675
        %2734 = vmatprep.subr.mxu0 0.0
        %2735 = vmatpush1.msra.mxu0 %v2676
        %2736 = vmatprep.subr.mxu0 0.0
        %2737 = vmatpush1.msra.mxu0 %v2677
        %2738 = vmatprep.subr.mxu0 0.0
        %2739 = vmatpush1.msra.mxu0 %v2678
        %2740 = vmatprep.subr.mxu0 0.0
        %2741 = vmatpush1.msra.mxu0 %v2679
        %2742 = vmatprep.subr.mxu0 0.0
        %2743 = vmatpush1.msra.mxu0 %v2680
        %2744 = vmatprep.subr.mxu0 0.0
        %2745 = vmatpush1.msra.mxu0 %v2681
        %2746 = vmatprep.subr.mxu0 0.0
        %2747 = vmatpush1.msra.mxu0 %v2682
        %2748 = vmatprep.subr.mxu0 0.0
        %2749 = vmatpush1.msra.mxu0 %v2683
        %2750 = vmatprep.subr.mxu0 0.0
        %2751 = vmatpush1.msra.mxu0 %v2684
        %2752 = vmatprep.subr.mxu0 0.0
        %2753 = vmatpush1.msra.mxu0 %v2685
        %2754 = vmatprep.subr.mxu0 0.0
        %2755 = vmatpush1.msra.mxu0 %v2686
        %2756 = vmatprep.subr.mxu0 0.0
        %2757 = vmatpush1.msra.mxu0 %v2687
        %2758 = vmatprep.subr.mxu0 0.0
        %2759 = vmatpush1.msra.mxu0 %v2688
        %2760 = vmatprep.subr.mxu0 0.0
        %2761 = vmatpush1.msra.mxu0 %v2689
        %2762 = vmatprep.mubr.f32.mxu0 %v2656
        %2763 = vmatmul.mubr.f32.gmra.mrb[0].mxu0 %v2655
        %v2764 = vpop.f32.mrb[0].mxu0
        %v2765 = vadd.f32 %v2696, %v2764
        %v2766 = vpop.f32.mrb[0].mxu0
        %2767 = vdwg.mxu0
        %v2768 = vadd.f32 %v2765, %v2485
        %s2769 = scalar_lea.vmem %s15, 1
        %v2770 = vld [vmem:[%s2769] sm:$0x1]
        %s2771 = scalar_lea.vmem %s16, 1
        %v2772 = vld [vmem:[%s2771] sm:$0x1]
        %2773 = vadd.xlane.f32.xlu0 %v2768
        %v2774 = vpop.xlane.xlu0 %2773
        %v2775 = vmul.f32 %v2774, %v852
        %v2776 = vsub.f32 %v2768, %v2775
        %v2777 = vmul.f32 %v2776, %v2776
        %2778 = vadd.xlane.f32.xlu0 %v2777
        %v2779 = vpop.xlane.xlu0 %2778
        %v2780 = vmul.f32 %v2779, %v852
        %v2781 = vadd.f32 %v2780, 1e-12
        %v2782 = vrsqrt.pop %v2781
        %v2783 = vmul.f32 %v2776, %v2782
        %v2785 = vlaneseq
        %v2786 = vshrl.u32 %v2785, 7
        %v2787 = vsub.s32 0, %v2786
        %v2788 = vrot.slane %v2770, %v2787
        %v2790 = vmul.f32 %v2783, %v2788
        %v2792 = vlaneseq
        %v2793 = vshrl.u32 %v2792, 7
        %v2794 = vsub.s32 0, %v2793
        %v2795 = vrot.slane %v2772, %v2794
        %v2797 = vadd.f32 %v2790, %v2795
        %v2798 = vld [vmem:[%s17] sm:$0xff]
        %v2799 = vld [vmem:[%s17 + $0x8] sm:$0xff]
        %v2800 = vld [vmem:[%s17 + $0x10] sm:$0xff]
        %v2801 = vld [vmem:[%s17 + $0x18] sm:$0xff]
        %v2802 = vld [vmem:[%s17 + $0x20] sm:$0xff]
        %v2803 = vld [vmem:[%s17 + $0x28] sm:$0xff]
        %v2804 = vld [vmem:[%s17 + $0x30] sm:$0xff]
        %v2805 = vld [vmem:[%s17 + $0x38] sm:$0xff]
        %v2806 = vld [vmem:[%s17 + $0x40] sm:$0xff]
        %v2807 = vld [vmem:[%s17 + $0x48] sm:$0xff]
        %v2808 = vld [vmem:[%s17 + $0x50] sm:$0xff]
        %v2809 = vld [vmem:[%s17 + $0x58] sm:$0xff]
        %v2810 = vld [vmem:[%s17 + $0x60] sm:$0xff]
        %v2811 = vld [vmem:[%s17 + $0x68] sm:$0xff]
        %v2812 = vld [vmem:[%s17 + $0x70] sm:$0xff]
        %v2813 = vld [vmem:[%s17 + $0x78] sm:$0xff]
        %v2814 = vld [vmem:[%s18] sm:$0x1]
        %2815 = vmatprep.subr.mxu0 0.0
        %2816 = vmatpush1.msra.mxu0 %v2798
        %2817 = vmatprep.subr.mxu0 0.0
        %2818 = vmatpush1.msra.mxu0 %v2799
        %2819 = vmatprep.subr.mxu0 0.0
        %2820 = vmatpush1.msra.mxu0 %v2800
        %2821 = vmatprep.subr.mxu0 0.0
        %2822 = vmatpush1.msra.mxu0 %v2801
        %2823 = vmatprep.subr.mxu0 0.0
        %2824 = vmatpush1.msra.mxu0 %v2802
        %2825 = vmatprep.subr.mxu0 0.0
        %2826 = vmatpush1.msra.mxu0 %v2803
        %2827 = vmatprep.subr.mxu0 0.0
        %2828 = vmatpush1.msra.mxu0 %v2804
        %2829 = vmatprep.subr.mxu0 0.0
        %2830 = vmatpush1.msra.mxu0 %v2805
        %2831 = vmatprep.subr.mxu0 0.0
        %2832 = vmatpush1.msra.mxu0 %v2806
        %2833 = vmatprep.subr.mxu0 0.0
        %2834 = vmatpush1.msra.mxu0 %v2807
        %2835 = vmatprep.subr.mxu0 0.0
        %2836 = vmatpush1.msra.mxu0 %v2808
        %2837 = vmatprep.subr.mxu0 0.0
        %2838 = vmatpush1.msra.mxu0 %v2809
        %2839 = vmatprep.subr.mxu0 0.0
        %2840 = vmatpush1.msra.mxu0 %v2810
        %2841 = vmatprep.subr.mxu0 0.0
        %2842 = vmatpush1.msra.mxu0 %v2811
        %2843 = vmatprep.subr.mxu0 0.0
        %2844 = vmatpush1.msra.mxu0 %v2812
        %2845 = vmatprep.subr.mxu0 0.0
        %2846 = vmatpush1.msra.mxu0 %v2813
        %2847 = vmatprep.subr.mxu0 0.0
        %2848 = vmatpush1.msra.mxu0 0.0
        %2849 = vmatprep.subr.mxu0 0.0
        %2850 = vmatpush1.msra.mxu0 0.0
        %2851 = vmatprep.subr.mxu0 0.0
        %2852 = vmatpush1.msra.mxu0 0.0
        %2853 = vmatprep.subr.mxu0 0.0
        %2854 = vmatpush1.msra.mxu0 0.0
        %2855 = vmatprep.subr.mxu0 0.0
        %2856 = vmatpush1.msra.mxu0 0.0
        %2857 = vmatprep.subr.mxu0 0.0
        %2858 = vmatpush1.msra.mxu0 0.0
        %2859 = vmatprep.subr.mxu0 0.0
        %2860 = vmatpush1.msra.mxu0 0.0
        %2861 = vmatprep.subr.mxu0 0.0
        %2862 = vmatpush1.msra.mxu0 0.0
        %2863 = vmatprep.subr.mxu0 0.0
        %2864 = vmatpush1.msra.mxu0 0.0
        %2865 = vmatprep.subr.mxu0 0.0
        %2866 = vmatpush1.msra.mxu0 0.0
        %2867 = vmatprep.subr.mxu0 0.0
        %2868 = vmatpush1.msra.mxu0 0.0
        %2869 = vmatprep.subr.mxu0 0.0
        %2870 = vmatpush1.msra.mxu0 0.0
        %2871 = vmatprep.subr.mxu0 0.0
        %2872 = vmatpush1.msra.mxu0 0.0
        %2873 = vmatprep.subr.mxu0 0.0
        %2874 = vmatpush1.msra.mxu0 0.0
        %2875 = vmatprep.subr.mxu0 0.0
        %2876 = vmatpush1.msra.mxu0 0.0
        %2877 = vmatprep.subr.mxu0 0.0
        %2878 = vmatpush1.msra.mxu0 0.0
        %2879 = vmatprep.mubr.f32.mxu0 0.0
        %2880 = vmatmul.mubr.f32.gmra.mrb[0].mxu0 %v2797
        %v2881 = vpop.f32.mrb[0].mxu0
        %v2882 = vadd.f32 %v2814, %v2881
        %v2883 = vpop.f32.mrb[0].mxu0
        %2884 = vdwg.mxu0
        %v2885 = vld [vmem:[#allocation10] sm:$0xff]
        %v2886 = vld [vmem:[#allocation10 + $0x8] sm:$0xff]
        %v2887 = vld [vmem:[#allocation10 + $0x10] sm:$0xff]
        %v2888 = vld [vmem:[#allocation10 + $0x18] sm:$0xff]
        %v2889 = vld [vmem:[#allocation10 + $0x20] sm:$0xff]
        %v2890 = vld [vmem:[#allocation10 + $0x28] sm:$0xff]
        %v2891 = vld [vmem:[#allocation10 + $0x30] sm:$0xff]
        %v2892 = vld [vmem:[#allocation10 + $0x38] sm:$0xff]
        %v2893 = vld [vmem:[#allocation10 + $0x40] sm:$0xff]
        %v2894 = vld [vmem:[#allocation10 + $0x48] sm:$0xff]
        %v2895 = vld [vmem:[#allocation10 + $0x50] sm:$0xff]
        %v2896 = vld [vmem:[#allocation10 + $0x58] sm:$0xff]
        %v2897 = vld [vmem:[#allocation10 + $0x60] sm:$0xff]
        %v2898 = vld [vmem:[#allocation10 + $0x68] sm:$0xff]
        %v2899 = vld [vmem:[#allocation10 + $0x70] sm:$0xff]
        %v2900 = vld [vmem:[#allocation10 + $0x78] sm:$0xff]
        %v2901 = vld [vmem:[%s20] sm:$0x1]
        %2902 = vmatprep.subr.mxu0 0.0
        %2903 = vmatpush1.msra.mxu0 %v2885
        %2904 = vmatprep.subr.mxu0 0.0
        %2905 = vmatpush1.msra.mxu0 %v2886
        %2906 = vmatprep.subr.mxu0 0.0
        %2907 = vmatpush1.msra.mxu0 %v2887
        %2908 = vmatprep.subr.mxu0 0.0
        %2909 = vmatpush1.msra.mxu0 %v2888
        %2910 = vmatprep.subr.mxu0 0.0
        %2911 = vmatpush1.msra.mxu0 %v2889
        %2912 = vmatprep.subr.mxu0 0.0
        %2913 = vmatpush1.msra.mxu0 %v2890
        %2914 = vmatprep.subr.mxu0 0.0
        %2915 = vmatpush1.msra.mxu0 %v2891
        %2916 = vmatprep.subr.mxu0 0.0
        %2917 = vmatpush1.msra.mxu0 %v2892
        %2918 = vmatprep.subr.mxu0 0.0
        %2919 = vmatpush1.msra.mxu0 %v2893
        %2920 = vmatprep.subr.mxu0 0.0
        %2921 = vmatpush1.msra.mxu0 %v2894
        %2922 = vmatprep.subr.mxu0 0.0
        %2923 = vmatpush1.msra.mxu0 %v2895
        %2924 = vmatprep.subr.mxu0 0.0
        %2925 = vmatpush1.msra.mxu0 %v2896
        %2926 = vmatprep.subr.mxu0 0.0
        %2927 = vmatpush1.msra.mxu0 %v2897
        %2928 = vmatprep.subr.mxu0 0.0
        %2929 = vmatpush1.msra.mxu0 %v2898
        %2930 = vmatprep.subr.mxu0 0.0
        %2931 = vmatpush1.msra.mxu0 %v2899
        %2932 = vmatprep.subr.mxu0 0.0
        %2933 = vmatpush1.msra.mxu0 %v2900
        %2934 = vmatprep.subr.mxu0 0.0
        %2935 = vmatpush1.msra.mxu0 0.0
        %2936 = vmatprep.subr.mxu0 0.0
        %2937 = vmatpush1.msra.mxu0 0.0
        %2938 = vmatprep.subr.mxu0 0.0
        %2939 = vmatpush1.msra.mxu0 0.0
        %2940 = vmatprep.subr.mxu0 0.0
        %2941 = vmatpush1.msra.mxu0 0.0
        %2942 = vmatprep.subr.mxu0 0.0
        %2943 = vmatpush1.msra.mxu0 0.0
        %2944 = vmatprep.subr.mxu0 0.0
        %2945 = vmatpush1.msra.mxu0 0.0
        %2946 = vmatprep.subr.mxu0 0.0
        %2947 = vmatpush1.msra.mxu0 0.0
        %2948 = vmatprep.subr.mxu0 0.0
        %2949 = vmatpush1.msra.mxu0 0.0
        %2950 = vmatprep.subr.mxu0 0.0
        %2951 = vmatpush1.msra.mxu0 0.0
        %2952 = vmatprep.subr.mxu0 0.0
        %2953 = vmatpush1.msra.mxu0 0.0
        %2954 = vmatprep.subr.mxu0 0.0
        %2955 = vmatpush1.msra.mxu0 0.0
        %2956 = vmatprep.subr.mxu0 0.0
        %2957 = vmatpush1.msra.mxu0 0.0
        %2958 = vmatprep.subr.mxu0 0.0
        %2959 = vmatpush1.msra.mxu0 0.0
        %2960 = vmatprep.subr.mxu0 0.0
        %2961 = vmatpush1.msra.mxu0 0.0
        %2962 = vmatprep.subr.mxu0 0.0
        %2963 = vmatpush1.msra.mxu0 0.0
        %2964 = vmatprep.subr.mxu0 0.0
        %2965 = vmatpush1.msra.mxu0 0.0
        %2966 = vmatprep.mubr.f32.mxu0 0.0
        %2967 = vmatmul.mubr.f32.gmra.mrb[0].mxu0 %v2882
        %v2968 = vpop.f32.mrb[0].mxu0
        %v2969 = vadd.f32 %v2901, %v2968
        %v2970 = vpop.f32.mrb[0].mxu0
        %2971 = vdwg.mxu0
        %2972 = vst [vmem:[%s827] sm:$0x1] %v2969
        %v2973 = vld [vmem:[#allocation11] sm:$0xff]
        %v2974 = vld [vmem:[#allocation11 + $0x8] sm:$0xff]
        %v2975 = vld [vmem:[#allocation11 + $0x10] sm:$0xff]
        %v2976 = vld [vmem:[#allocation11 + $0x18] sm:$0xff]
        %v2977 = vld [vmem:[#allocation11 + $0x20] sm:$0xff]
        %v2978 = vld [vmem:[#allocation11 + $0x28] sm:$0xff]
        %v2979 = vld [vmem:[#allocation11 + $0x30] sm:$0xff]
        %v2980 = vld [vmem:[#allocation11 + $0x38] sm:$0xff]
        %v2981 = vld [vmem:[#allocation11 + $0x40] sm:$0xff]
        %v2982 = vld [vmem:[#allocation11 + $0x48] sm:$0xff]
        %v2983 = vld [vmem:[#allocation11 + $0x50] sm:$0xff]
        %v2984 = vld [vmem:[#allocation11 + $0x58] sm:$0xff]
        %v2985 = vld [vmem:[#allocation11 + $0x60] sm:$0xff]
        %v2986 = vld [vmem:[#allocation11 + $0x68] sm:$0xff]
        %v2987 = vld [vmem:[#allocation11 + $0x70] sm:$0xff]
        %v2988 = vld [vmem:[#allocation11 + $0x78] sm:$0xff]
        %v2989 = vld [vmem:[%s22] sm:$0x1]
        %v2991 = vlaneseq
        %v2992 = vshrl.u32 %v2991, 7
        %v2993 = vsub.s32 0, %v2992
        %v2994 = vrot.slane %v2989, %v2993
        %2996 = vmatprep.subr.mxu0 0.0
        %2997 = vmatpush1.msra.mxu0 %v2973
        %2998 = vmatprep.subr.mxu0 0.0
        %2999 = vmatpush1.msra.mxu0 %v2974
        %3000 = vmatprep.subr.mxu0 0.0
        %3001 = vmatpush1.msra.mxu0 %v2975
        %3002 = vmatprep.subr.mxu0 0.0
        %3003 = vmatpush1.msra.mxu0 %v2976
        %3004 = vmatprep.subr.mxu0 0.0
        %3005 = vmatpush1.msra.mxu0 %v2977
        %3006 = vmatprep.subr.mxu0 0.0
        %3007 = vmatpush1.msra.mxu0 %v2978
        %3008 = vmatprep.subr.mxu0 0.0
        %3009 = vmatpush1.msra.mxu0 %v2979
        %3010 = vmatprep.subr.mxu0 0.0
        %3011 = vmatpush1.msra.mxu0 %v2980
        %3012 = vmatprep.subr.mxu0 0.0
        %3013 = vmatpush1.msra.mxu0 %v2981
        %3014 = vmatprep.subr.mxu0 0.0
        %3015 = vmatpush1.msra.mxu0 %v2982
        %3016 = vmatprep.subr.mxu0 0.0
        %3017 = vmatpush1.msra.mxu0 %v2983
        %3018 = vmatprep.subr.mxu0 0.0
        %3019 = vmatpush1.msra.mxu0 %v2984
        %3020 = vmatprep.subr.mxu0 0.0
        %3021 = vmatpush1.msra.mxu0 %v2985
        %3022 = vmatprep.subr.mxu0 0.0
        %3023 = vmatpush1.msra.mxu0 %v2986
        %3024 = vmatprep.subr.mxu0 0.0
        %3025 = vmatpush1.msra.mxu0 %v2987
        %3026 = vmatprep.subr.mxu0 0.0
        %3027 = vmatpush1.msra.mxu0 %v2988
        %3028 = vmatprep.subr.mxu0 0.0
        %3029 = vmatpush1.msra.mxu0 0.0
        %3030 = vmatprep.subr.mxu0 0.0
        %3031 = vmatpush1.msra.mxu0 0.0
        %3032 = vmatprep.subr.mxu0 0.0
        %3033 = vmatpush1.msra.mxu0 0.0
        %3034 = vmatprep.subr.mxu0 0.0
        %3035 = vmatpush1.msra.mxu0 0.0
        %3036 = vmatprep.subr.mxu0 0.0
        %3037 = vmatpush1.msra.mxu0 0.0
        %3038 = vmatprep.subr.mxu0 0.0
        %3039 = vmatpush1.msra.mxu0 0.0
        %3040 = vmatprep.subr.mxu0 0.0
        %3041 = vmatpush1.msra.mxu0 0.0
        %3042 = vmatprep.subr.mxu0 0.0
        %3043 = vmatpush1.msra.mxu0 0.0
        %3044 = vmatprep.subr.mxu0 0.0
        %3045 = vmatpush1.msra.mxu0 0.0
        %3046 = vmatprep.subr.mxu0 0.0
        %3047 = vmatpush1.msra.mxu0 0.0
        %3048 = vmatprep.subr.mxu0 0.0
        %3049 = vmatpush1.msra.mxu0 0.0
        %3050 = vmatprep.subr.mxu0 0.0
        %3051 = vmatpush1.msra.mxu0 0.0
        %3052 = vmatprep.subr.mxu0 0.0
        %3053 = vmatpush1.msra.mxu0 0.0
        %3054 = vmatprep.subr.mxu0 0.0
        %3055 = vmatpush1.msra.mxu0 0.0
        %3056 = vmatprep.subr.mxu0 0.0
        %3057 = vmatpush1.msra.mxu0 0.0
        %3058 = vmatprep.subr.mxu0 0.0
        %3059 = vmatpush1.msra.mxu0 0.0
        %3060 = vmatprep.mubr.f32.mxu0 0.0
        %3061 = vmatmul.mubr.f32.gmra.mrb[0].mxu0 %v2797
        %v3062 = vpop.f32.mrb[0].mxu0
        %v3063 = vadd.f32 %v2994, %v3062
        %v3064 = vpop.f32.mrb[0].mxu0
        %3065 = vdwg.mxu0
        %3066 = vst [vmem:[%s844] sm:$0xff] %v3063
        %s3067 = sand.u32 %s544, 1
        %s3068 = scalar_lea.sflag [#allocation4], %s3067
        %s3069 = sand.u32 %s544, 1
        %s3070 = scalar_lea.vmem [#allocation13], %s3069
        %p3071 = scmp.lt.s32.totalorder %s43, 1
        %s3072 = scalar_select %p3071, %s43, 1
        %s3073 = smul.addr %s3072, 8
        %s3074 = scalar_lea.vmem %s24, %s3073
        // Predicated region
        $region137: #{hybrid_classifier_forward.1} parent=111 // pred_check
          %p3075 = pneg %p554
        $region138: #{hybrid_classifier_forward.1} parent=111 // pred_check_branch
          %3077 = sbr.rel (%p3075) target = $region140
        $region139: #{hybrid_classifier_forward.1} parent=111 // pred_region
          %s3079 = ssub.s32 16, 16
          %3080 = vsyncadd %s3068, %s3079
          %s3081 = smul.addr %s43, 16
          %s3082 = scalar_lea.hbm %s23, %s3081
          %s3084 = sshll.u32 %s3070, 4
          %s3085 = int_to_ptr.vmem [resolvable:$true] %s3084
          %3087 = dma.vmem_to_hbm [thread:$0]  %s3085, 16, %s3082, %s3068
        $region140: #{hybrid_classifier_forward.1} parent=111 // pred_fallthru
          _
        // Predicated region
        $region141: #{hybrid_classifier_forward.1} parent=111 // pred_check
          %p3088 = pneg %p580
        $region142: #{hybrid_classifier_forward.1} parent=111 // pred_check_branch
          %3090 = sbr.rel (%p3088) target = $region144
        $region143: #{hybrid_classifier_forward.1} parent=111 // pred_region
          _
        $region144: #{hybrid_classifier_forward.1} parent=111 // pred_fallthru
          _
      $region112: #{hybrid_classifier_forward.1} parent=5 // pred_fallthru
        _
      %p3091 = scmp.le.s32.totalorder 2, %s38
      // Predicated region
      $region145: #{hybrid_classifier_forward.1} parent=5 // pred_check
        %p3092 = pneg %p3091
      $region146: #{hybrid_classifier_forward.1} parent=5 // pred_check_branch
        %3094 = sbr.rel (%p3092) target = $region148
      $region147: #{hybrid_classifier_forward.1} parent=5 // pred_region
        %s3095 = ssub.s32 %s38, 2
        // Predicated region
        $region149: #{hybrid_classifier_forward.1} parent=147 // pred_check
          %p3096 = pneg %p560
        $region150: #{hybrid_classifier_forward.1} parent=147 // pred_check_branch
          %3098 = sbr.rel (%p3096) target = $region152
        $region151: #{hybrid_classifier_forward.1} parent=147 // pred_region
          %s3099 = sand.u32 %s545, 1
          %s3100 = scalar_lea.sflag [#allocation4], %s3099
          %s3101 = sand.u32 %s545, 1
          %s3102 = scalar_lea.vmem [#allocation13], %s3101
          %3103 = dma.done %s3100, 16
        $region152: #{hybrid_classifier_forward.1} parent=147 // pred_fallthru
          _
        // Predicated region
        $region153: #{hybrid_classifier_forward.1} parent=147 // pred_check
          %p3104 = pneg %p586
        $region154: #{hybrid_classifier_forward.1} parent=147 // pred_check_branch
          %3106 = sbr.rel (%p3104) target = $region156
        $region155: #{hybrid_classifier_forward.1} parent=147 // pred_region
          %p3107 = scmp.lt.s32.totalorder %s44, 1
          %s3108 = scalar_select %p3107, %s44, 1
          %s3109 = smul.addr %s3108, 8
          %s3110 = scalar_lea.vmem %s24, %s3109
        $region156: #{hybrid_classifier_forward.1} parent=147 // pred_fallthru
          _
      $region148: #{hybrid_classifier_forward.1} parent=5 // pred_fallthru
        _
    $region6: #{hybrid_classifier_forward.1} parent=1 // loop_footer
      %s42 = sadd.s32 1, %s38
    $region7: #{hybrid_classifier_forward.1} parent=1 // loop_footer_branch
      %37 = sbr.rel target = $region3
    $region8: #{hybrid_classifier_forward.1} parent=1 // loop_exit
      _
    %3111 = vsyncpa [#allocation3], 1
    %s3112 = scalar_lea.sflag [#allocation3], 1
    %3113 = vsyncpa %s3112, 1
    %3114 = vsyncpa [#allocation6], 1
    %3115 = vsyncpa [#allocation9], 1
    %3116 = vsyncpa [#allocation12], 1
    %3117 = vsyncpa [#allocation4], 1
    %s3118 = scalar_lea.sflag [#allocation4], 1
    %3119 = vsyncpa %s3118, 1

</llo_original>
